<compile_context>
chip_gen: v7x
topology: tpu7x:2x2x1
jax: 0.10.0
libtpu: 0.0.40
codegen_flags: <defaults>
</compile_context>

<pallas_src>
import jax
import jax.numpy as jnp
from jax.experimental import pallas as pl
from jax.experimental.pallas import tpu as pltpu

# ---------------- small, self-consistent hyper-parameters -------------------
B = 2
IMG_C, IMG_H, IMG_W = 3, 16, 16
KH = KW = 3
STRIDE = 4
PAD = 1
FEAT_C = 48                                   # stand-in "backbone feature_dim"
H_OUT = (IMG_H + 2 * PAD - KH) // STRIDE + 1  # 4
W_OUT = (IMG_W + 2 * PAD - KW) // STRIDE + 1  # 4
SEQ = H_OUT * W_OUT                           # 16  (seq_len)
D = 32                                        # out_dim
NHEAD = 4
DH = D // NHEAD                               # 8
M_FEAT = 16                                   # performer random features / head
NM = NHEAD * M_FEAT                           # 64
FF = 4 * D                                    # dim_feedforward (latent_dim)
NUM_LAYERS = 3
LN_EPS = 1e-5
K_RAW = IMG_C * KH * KW                       # 27
KPAD = 32                                     # im2col K padded to a clean tile
BS = B * SEQ                                  # 32 (batch folded into rows)
QKVW = 4 * D                                  # 128: [q | k | v | ones] width

# packed per-layer bf16 matmul blob: rows x 128 lanes
MATS_ROWS = 3 * D + FF                        # 224
R_WQKV, R_WO, R_W1, R_W2 = 0, D, 2 * D, 3 * D
# packed per-layer f32 blob: wlog (2*QKVW rows) + 8 vector rows
VECS_ROWS = 2 * QKVW + 8                      # 264
R_WLOG = 0
R_G1, R_B1LN, R_BQKV, R_BO, R_G2, R_B2LN, R_B1, R_B2 = range(2 * QKVW, 2 * QKVW + 8)


# ---------------- helpers ----------------------------------------------------
def _layernorm(x, gamma, beta):
    # var = E[x^2] - mu^2: two independent reductions instead of a serialized
    # E[(x-mu)^2]; multiply by the constant 1/N instead of jnp.mean.
    inv_n = 1.0 / x.shape[-1]
    mu = jnp.sum(x, axis=-1, keepdims=True) * inv_n
    ms = jnp.sum(x * x, axis=-1, keepdims=True) * inv_n
    var = ms - mu * mu
    return (x - mu) * jax.lax.rsqrt(var + LN_EPS) * gamma + beta


# ---------------- the single fused kernel ------------------------------------
def _fused_kernel(p_ref, convw_ref, convb_ref, projw_ref, pepb_ref,
                  kvm2_ref, pool_ref, mats_ref, vecs_ref, o_ref):
    f32, bf16 = jnp.float32, jnp.bfloat16

    kv_mask2 = kvm2_ref[...]                                          # [NM, 2D] f32

    # ---- stand-in backbone: conv-as-matmul + ReLU (batch folded) ------------
    feat = jnp.dot(p_ref[...], convw_ref[...],
                   preferred_element_type=f32) + convb_ref[...]       # [BS, FEAT_C]
    feat = jnp.maximum(feat, 0.0)

    # ---- projection + (positional encoding with proj bias folded in) --------
    x = jnp.dot(feat.astype(bf16), projw_ref[...],
                preferred_element_type=f32) + pepb_ref[...]           # [BS, D] f32

    # ---- Performer blocks (static unroll over layers) -----------------------
    for l in range(NUM_LAYERS):
        # static sub-views of the packed per-layer weight blobs
        wqkv = mats_ref[l, R_WQKV:R_WQKV + D, :]                      # [D, QKVW] bf16
        wo   = mats_ref[l, R_WO:R_WO + D, 0:D]                        # [D, D]
        w1   = mats_ref[l, R_W1:R_W1 + D, 0:FF]                       # [D, FF]
        w2   = mats_ref[l, R_W2:R_W2 + FF, 0:D]                       # [FF, D]
        wlog = vecs_ref[l, R_WLOG:R_WLOG + 2 * QKVW, 0:2 * NM]        # [2*QKVW, 2*NM] f32
        g1   = vecs_ref[l, R_G1:R_G1 + 1, 0:D]
        b1ln = vecs_ref[l, R_B1LN:R_B1LN + 1, 0:D]
        bqkv = vecs_ref[l, R_BQKV:R_BQKV + 1, :]                      # [1, QKVW]
        bo   = vecs_ref[l, R_BO:R_BO + 1, 0:D]
        g2   = vecs_ref[l, R_G2:R_G2 + 1, 0:D]
        b2ln = vecs_ref[l, R_B2LN:R_B2LN + 1, 0:D]
        b1   = vecs_ref[l, R_B1:R_B1 + 1, 0:FF]
        b2   = vecs_ref[l, R_B2:R_B2 + 1, 0:D]

        # fused QKV projection; trailing bias columns carry a constant 1.0 so
        # the same matmul also emits the [V | ones] block used below.
        x16 = x.astype(bf16)
        qkv = jnp.dot(x16, wqkv, preferred_element_type=f32) + bqkv   # [BS, QKVW] f32
        va = qkv[:, 2 * D:4 * D]                                      # [BS, 2D] = [V | 1s]

        # FAVOR+ log-features for q AND k in one lane-dense (N=128) matmul:
        #   [qkv | qkv^2] @ wlog = [q@omega - 0.5|q|^2  |  k@omega - 0.5|k|^2]
        lhs = jnp.concatenate([qkv, qkv * qkv], axis=-1)              # [BS, 2*QKVW]
        logf = jnp.dot(lhs, wlog, preferred_element_type=f32)         # [BS, 2*NM]
        q_log = logf[:, 0:NM]
        k_log = logf[:, NM:2 * NM]
        # stabilizers (and the 1/sqrt(M) feature scale) cancel in num/den.
        q_feat = jnp.exp(q_log - jnp.max(q_log, axis=-1, keepdims=True))
        k_feat = jnp.exp(k_log - jnp.max(k_log))                      # [BS, NM] f32

        # per-sequence linear attention; the two sequences are independent
        # (statically unrolled), kept entirely in f32.
        nd_parts = []
        for b in range(B):
            lo, hi = b * SEQ, (b + 1) * SEQ
            # K^T @ [V | 1s]  ->  [KV | z] in a single MXU push
            kva = jax.lax.dot_general(k_feat[lo:hi], va[lo:hi],
                                      (((0,), (0,)), ((), ())),
                                      preferred_element_type=f32)     # [NM, 2D]
            rhs = kva * kv_mask2                                      # zero cross-head blocks
            nd_parts.append(jnp.dot(q_feat[lo:hi], rhs,
                                    preferred_element_type=f32))      # [S, 2D] = [num | den]
        nd = jnp.concatenate(nd_parts, axis=0)                        # [BS, 2D]
        num = nd[:, 0:D]
        den = nd[:, D:2 * D]
        head_out = num * pl.reciprocal(den + 1e-6, approx=True)
        attn = jnp.dot(head_out.astype(bf16), wo,
                       preferred_element_type=f32) + bo               # [BS, D]

        # post-LN residual block (dropout = identity in eval mode)
        x = _layernorm(x + attn, g1, b1ln)
        hid = jnp.dot(x.astype(bf16), w1, preferred_element_type=f32) + b1
        hid = jax.nn.gelu(hid, approximate=True)  # TODO(synk): nn.GELU default is erf, not tanh
        ffn = jnp.dot(hid.astype(bf16), w2, preferred_element_type=f32) + b2
        x = _layernorm(x + ffn, g2, b2ln)

    # ---- mean pooling over each sequence as one tiny matmul + single store --
    o_ref[...] = jnp.dot(pool_ref[...], x, preferred_element_type=jnp.float32)


# ---------------- glue: im2col patch extraction (data movement only) ---------
def im2col_nchw(x):
    xp = jnp.pad(x, ((0, 0), (0, 0), (PAD, PAD), (PAD, PAD)))
    cols = []
    for i in range(KH):
        for j in range(KW):
            cols.append(xp[:, :, i:i + STRIDE * H_OUT:STRIDE,
                           j:j + STRIDE * W_OUT:STRIDE])              # [B, C, Ho, Wo]
    patches = jnp.stack(cols, axis=2)                                 # [B, C, KH*KW, Ho, Wo]
    patches = patches.reshape(B, K_RAW, SEQ)                          # (c, ki, kj) ordering
    return patches.transpose(0, 2, 1)                                 # [B, S, C*KH*KW]


# ---------------- deterministic parameter init --------------------------------
def init_params(key):
    keys = iter(jax.random.split(key, 64))
    f32 = jnp.float32

    def nrm(shape, scale):
        return (scale * jax.random.normal(next(keys), shape)).astype(f32)

    qk_scale = DH ** -0.25   # folded into Wq/Wk (bq/bk are zero; if pretrained
                             # q/k biases are ever loaded, scale them too)

    # block-diagonal per-head masks, built on the host (review item)
    head_of_dim = jnp.arange(D) // DH
    head_of_feat = jnp.arange(NM) // M_FEAT
    sq_mask = (head_of_dim[:, None] == head_of_feat[None, :]).astype(f32)   # [D, NM]
    kv_mask = (head_of_feat[:, None] == head_of_dim[None, :]).astype(f32)   # [NM, D]
    kv_mask2 = jnp.concatenate([kv_mask, kv_mask], axis=-1)                 # [NM, 2D]

    conv_w = jnp.pad(nrm((K_RAW, FEAT_C), 0.1), ((0, KPAD - K_RAW), (0, 0)))
    conv_b = jnp.zeros((1, FEAT_C), f32)
    proj_w = nrm((FEAT_C, D), FEAT_C ** -0.5)
    proj_b = jnp.zeros((1, D), f32)
    pe = nrm((SEQ, D), 0.02)               # learnable positional encoding

    # mean-pool matrix: pooled = pool_w @ x_flat  (one MXU op in-kernel)
    pool_w = jnp.repeat(jnp.eye(B, dtype=f32), SEQ, axis=1) / SEQ           # [B, B*SEQ]

    mats_layers, vecs_layers = [], []
    for _ in range(NUM_LAYERS):
        wq = nrm((D, D), D ** -0.5) * qk_scale
        wk = nrm((D, D), D ** -0.5) * qk_scale
        wv = nrm((D, D), D ** -0.5)
        wo = nrm((D, D), D ** -0.5)
        w1 = nrm((D, FF), D ** -0.5)
        w2 = nrm((FF, D), FF ** -0.5)

        # fixed FAVOR+ projections, block-diagonal over heads
        omega = jnp.zeros((D, NM), f32)
        for h in range(NHEAD):
            omega = omega.at[h * DH:(h + 1) * DH,
                             h * M_FEAT:(h + 1) * M_FEAT].set(nrm((DH, M_FEAT), 1.0))

        # fused [Wq|Wk|Wv|0] padded to 128 lanes; bias columns 3D..4D are 1.0
        # so qkv[:, 3D:4D] == 1 and [V | ones] comes out of the same matmul.
        wqkv = jnp.zeros((D, QKVW), f32)
        wqkv = wqkv.at[:, 0:D].set(wq).at[:, D:2 * D].set(wk).at[:, 2 * D:3 * D].set(wv)
        bqkv = jnp.zeros((QKVW,), f32).at[3 * D:QKVW].set(1.0)

        # fused log-feature weight: [qkv | qkv^2] @ wlog = [q_log | k_log]
        wlog = jnp.zeros((2 * QKVW, 2 * NM), f32)
        wlog = wlog.at[0:D, 0:NM].set(omega)                       # q    -> q-features
        wlog = wlog.at[D:2 * D, NM:2 * NM].set(omega)              # k    -> k-features
        wlog = wlog.at[QKVW:QKVW + D, 0:NM].set(-0.5 * sq_mask)    # q^2  -> q-features
        wlog = wlog.at[QKVW + D:QKVW + 2 * D, NM:2 * NM].set(-0.5 * sq_mask)

        mats = jnp.zeros((MATS_ROWS, 128), f32)
        mats = mats.at[R_WQKV:R_WQKV + D, 0:QKVW].set(wqkv)
        mats = mats.at[R_WO:R_WO + D, 0:D].set(wo)
        mats = mats.at[R_W1:R_W1 + D, 0:FF].set(w1)
        mats = mats.at[R_W2:R_W2 + FF, 0:D].set(w2)
        mats_layers.append(mats.astype(jnp.bfloat16))

        vecs = jnp.zeros((VECS_ROWS, 128), f32)
        vecs = vecs.at[R_WLOG:R_WLOG + 2 * QKVW, 0:2 * NM].set(wlog)
        vecs = vecs.at[R_G1, 0:D].set(jnp.ones((D,), f32))
        vecs = vecs.at[R_B1LN, 0:D].set(jnp.zeros((D,), f32))
        vecs = vecs.at[R_BQKV, 0:QKVW].set(bqkv)
        vecs = vecs.at[R_BO, 0:D].set(jnp.zeros((D,), f32))
        vecs = vecs.at[R_G2, 0:D].set(jnp.ones((D,), f32))
        vecs = vecs.at[R_B2LN, 0:D].set(jnp.zeros((D,), f32))
        vecs = vecs.at[R_B1, 0:FF].set(jnp.zeros((FF,), f32))
        vecs = vecs.at[R_B2, 0:D].set(jnp.zeros((D,), f32))
        vecs_layers.append(vecs)

    return {
        "conv_w": conv_w.astype(jnp.bfloat16),        # [KPAD, FEAT_C]
        "conv_b": conv_b,                             # [1, FEAT_C]
        "proj_w": proj_w.astype(jnp.bfloat16),        # [FEAT_C, D]
        "pe_plus_bias": jnp.tile(pe, (B, 1)) + proj_b,  # [B*S, D], proj bias folded in
        "kv_mask2": kv_mask2,                         # [NM, 2D]
        "pool_w": pool_w,                             # [B, B*S]
        "mats": jnp.stack(mats_layers),               # [L, 224, 128] bf16
        "vecs": jnp.stack(vecs_layers),               # [L, 264, 128] f32
    }


# ---------------- full forward: one fused pallas_call (no grid) ---------------
def effnet_performer_encoder(x, params):
    patches = im2col_nchw(x)                                          # [B, S, 27]
    patches = jnp.pad(patches, ((0, 0), (0, 0), (0, KPAD - K_RAW)))
    patches = patches.reshape(BS, KPAD).astype(jnp.bfloat16)          # batch folded

    inputs = (patches, params["conv_w"], params["conv_b"], params["proj_w"],
              params["pe_plus_bias"], params["kv_mask2"], params["pool_w"],
              params["mats"], params["vecs"])

    vmem = pltpu.MemorySpace.VMEM
    return pl.pallas_call(
        _fused_kernel,
        out_shape=jax.ShapeDtypeStruct((B, D), jnp.float32),
        in_specs=[pl.BlockSpec(memory_space=vmem) for _ in inputs],
        out_specs=pl.BlockSpec(memory_space=vmem),
    )(*inputs)


if __name__ == "__main__":
    key = jax.random.PRNGKey(0)
    pkey, xkey = jax.random.split(key)
    params = init_params(pkey)
    x = jax.random.normal(xkey, (B, IMG_C, IMG_H, IMG_W), jnp.float32)

    out = jax.jit(lambda x_: effnet_performer_encoder(x_, params))(x)
    out = jax.block_until_ready(out)

    assert out.shape == (B, D), out.shape
    assert bool(jnp.all(jnp.isfinite(out)))
    print("KERNEL_OK")
</pallas_src>

<mosaic_0001>
module attributes {stable_mosaic.version = 11 : i64} {
  func.func @_fused_kernel(%arg0: memref<32x32xbf16, #tpu.memory_space<vmem>>, %arg1: memref<32x48xbf16, #tpu.memory_space<vmem>>, %arg2: memref<1x48xf32, #tpu.memory_space<vmem>>, %arg3: memref<48x32xbf16, #tpu.memory_space<vmem>>, %arg4: memref<32x32xf32, #tpu.memory_space<vmem>>, %arg5: memref<64x64xf32, #tpu.memory_space<vmem>>, %arg6: memref<2x32xf32, #tpu.memory_space<vmem>>, %arg7: memref<3x224x128xbf16, #tpu.memory_space<vmem>>, %arg8: memref<3x264x128xf32, #tpu.memory_space<vmem>>, %arg9: memref<2x32xf32, #tpu.memory_space<vmem>>) attributes {dimension_semantics = [], scalar_prefetch = 0 : i64, scratch_operands = 0 : i64, tpu.core_type = #tpu.core_type<tc>} {
    %c0 = arith.constant 0 : index
    %c0_0 = arith.constant 0 : index
    %0 = vector.load %arg5[%c0, %c0_0] : memref<64x64xf32, #tpu.memory_space<vmem>>, vector<64x64xf32>
    %c0_1 = arith.constant 0 : index
    %c0_2 = arith.constant 0 : index
    %1 = vector.load %arg0[%c0_1, %c0_2] : memref<32x32xbf16, #tpu.memory_space<vmem>>, vector<32x32xbf16>
    %c0_3 = arith.constant 0 : index
    %c0_4 = arith.constant 0 : index
    %2 = vector.load %arg1[%c0_3, %c0_4] : memref<32x48xbf16, #tpu.memory_space<vmem>>, vector<32x48xbf16>
    %cst = arith.constant dense<0.000000e+00> : vector<32x48xf32>
    %3 = tpu.matmul %1, %2, %cst {dimension_numbers = #tpu.dot_dimension_numbers<[1], [0], [0], [1], [0, 0, 1, 1], [], []>} : vector<32x32xbf16>, vector<32x48xbf16>, vector<32x48xf32> -> vector<32x48xf32>
    %c0_5 = arith.constant 0 : index
    %c0_6 = arith.constant 0 : index
    %4 = vector.load %arg2[%c0_5, %c0_6] : memref<1x48xf32, #tpu.memory_space<vmem>>, vector<1x48xf32>
    %5 = vector.broadcast %4 : vector<1x48xf32> to vector<32x48xf32>
    %6 = arith.addf %3, %5 : vector<32x48xf32>
    %cst_7 = arith.constant 0.000000e+00 : f32
    %7 = vector.broadcast %cst_7 : f32 to vector<32x48xf32>
    %8 = arith.maximumf %6, %7 : vector<32x48xf32>
    %9 = arith.truncf %8 : vector<32x48xf32> to vector<32x48xbf16>
    %c0_8 = arith.constant 0 : index
    %c0_9 = arith.constant 0 : index
    %10 = vector.load %arg3[%c0_8, %c0_9] : memref<48x32xbf16, #tpu.memory_space<vmem>>, vector<48x32xbf16>
    %cst_10 = arith.constant dense<0.000000e+00> : vector<32x32xf32>
    %11 = tpu.matmul %9, %10, %cst_10 {dimension_numbers = #tpu.dot_dimension_numbers<[1], [0], [0], [1], [0, 0, 1, 1], [], []>} : vector<32x48xbf16>, vector<48x32xbf16>, vector<32x32xf32> -> vector<32x32xf32>
    %c0_11 = arith.constant 0 : index
    %c0_12 = arith.constant 0 : index
    %12 = vector.load %arg4[%c0_11, %c0_12] : memref<32x32xf32, #tpu.memory_space<vmem>>, vector<32x32xf32>
    %13 = arith.addf %11, %12 : vector<32x32xf32>
    %c0_13 = arith.constant 0 : index
    %c0_14 = arith.constant 0 : index
    %c0_15 = arith.constant 0 : index
    %14 = vector.load %arg7[%c0_13, %c0_14, %c0_15] : memref<3x224x128xbf16, #tpu.memory_space<vmem>>, vector<1x32x128xbf16>
    %15 = vector.shape_cast %14 : vector<1x32x128xbf16> to vector<32x128xbf16>
    %c0_16 = arith.constant 0 : index
    %c32 = arith.constant 32 : index
    %c0_17 = arith.constant 0 : index
    %16 = vector.load %arg7[%c0_16, %c32, %c0_17] : memref<3x224x128xbf16, #tpu.memory_space<vmem>>, vector<1x32x32xbf16>
    %17 = vector.shape_cast %16 : vector<1x32x32xbf16> to vector<32x32xbf16>
    %c0_18 = arith.constant 0 : index
    %c64 = arith.constant 64 : index
    %c0_19 = arith.constant 0 : index
    %18 = vector.load %arg7[%c0_18, %c64, %c0_19] : memref<3x224x128xbf16, #tpu.memory_space<vmem>>, vector<1x32x128xbf16>
    %19 = vector.shape_cast %18 : vector<1x32x128xbf16> to vector<32x128xbf16>
    %c0_20 = arith.constant 0 : index
    %c96 = arith.constant 96 : index
    %c0_21 = arith.constant 0 : index
    %20 = vector.load %arg7[%c0_20, %c96, %c0_21] : memref<3x224x128xbf16, #tpu.memory_space<vmem>>, vector<1x128x32xbf16>
    %21 = vector.shape_cast %20 : vector<1x128x32xbf16> to vector<128x32xbf16>
    %c0_22 = arith.constant 0 : index
    %c0_23 = arith.constant 0 : index
    %c0_24 = arith.constant 0 : index
    %22 = vector.load %arg8[%c0_22, %c0_23, %c0_24] : memref<3x264x128xf32, #tpu.memory_space<vmem>>, vector<1x256x128xf32>
    %23 = vector.shape_cast %22 : vector<1x256x128xf32> to vector<256x128xf32>
    %c0_25 = arith.constant 0 : index
    %c256 = arith.constant 256 : index
    %c0_26 = arith.constant 0 : index
    %24 = vector.load %arg8[%c0_25, %c256, %c0_26] : memref<3x264x128xf32, #tpu.memory_space<vmem>>, vector<1x1x32xf32>
    %25 = vector.shape_cast %24 : vector<1x1x32xf32> to vector<1x32xf32>
    %c0_27 = arith.constant 0 : index
    %c257 = arith.constant 257 : index
    %c0_28 = arith.constant 0 : index
    %26 = vector.load %arg8[%c0_27, %c257, %c0_28] : memref<3x264x128xf32, #tpu.memory_space<vmem>>, vector<1x1x32xf32>
    %27 = vector.shape_cast %26 : vector<1x1x32xf32> to vector<1x32xf32>
    %c0_29 = arith.constant 0 : index
    %c258 = arith.constant 258 : index
    %c0_30 = arith.constant 0 : index
    %28 = vector.load %arg8[%c0_29, %c258, %c0_30] : memref<3x264x128xf32, #tpu.memory_space<vmem>>, vector<1x1x128xf32>
    %29 = vector.shape_cast %28 : vector<1x1x128xf32> to vector<1x128xf32>
    %c0_31 = arith.constant 0 : index
    %c259 = arith.constant 259 : index
    %c0_32 = arith.constant 0 : index
    %30 = vector.load %arg8[%c0_31, %c259, %c0_32] : memref<3x264x128xf32, #tpu.memory_space<vmem>>, vector<1x1x32xf32>
    %31 = vector.shape_cast %30 : vector<1x1x32xf32> to vector<1x32xf32>
    %c0_33 = arith.constant 0 : index
    %c260 = arith.constant 260 : index
    %c0_34 = arith.constant 0 : index
    %32 = vector.load %arg8[%c0_33, %c260, %c0_34] : memref<3x264x128xf32, #tpu.memory_space<vmem>>, vector<1x1x32xf32>
    %33 = vector.shape_cast %32 : vector<1x1x32xf32> to vector<1x32xf32>
    %c0_35 = arith.constant 0 : index
    %c261 = arith.constant 261 : index
    %c0_36 = arith.constant 0 : index
    %34 = vector.load %arg8[%c0_35, %c261, %c0_36] : memref<3x264x128xf32, #tpu.memory_space<vmem>>, vector<1x1x32xf32>
    %35 = vector.shape_cast %34 : vector<1x1x32xf32> to vector<1x32xf32>
    %c0_37 = arith.constant 0 : index
    %c262 = arith.constant 262 : index
    %c0_38 = arith.constant 0 : index
    %36 = vector.load %arg8[%c0_37, %c262, %c0_38] : memref<3x264x128xf32, #tpu.memory_space<vmem>>, vector<1x1x128xf32>
    %37 = vector.shape_cast %36 : vector<1x1x128xf32> to vector<1x128xf32>
    %c0_39 = arith.constant 0 : index
    %c263 = arith.constant 263 : index
    %c0_40 = arith.constant 0 : index
    %38 = vector.load %arg8[%c0_39, %c263, %c0_40] : memref<3x264x128xf32, #tpu.memory_space<vmem>>, vector<1x1x32xf32>
    %39 = vector.shape_cast %38 : vector<1x1x32xf32> to vector<1x32xf32>
    %40 = arith.truncf %13 : vector<32x32xf32> to vector<32x32xbf16>
    %cst_41 = arith.constant dense<0.000000e+00> : vector<32x128xf32>
    %41 = tpu.matmul %40, %15, %cst_41 {dimension_numbers = #tpu.dot_dimension_numbers<[1], [0], [0], [1], [0, 0, 1, 1], [], []>} : vector<32x32xbf16>, vector<32x128xbf16>, vector<32x128xf32> -> vector<32x128xf32>
    %42 = vector.broadcast %29 : vector<1x128xf32> to vector<32x128xf32>
    %43 = arith.addf %41, %42 : vector<32x128xf32>
    %44 = vector.extract_strided_slice %43 {offsets = [0, 64], sizes = [32, 64], strides = [1, 1]} : vector<32x128xf32> to vector<32x64xf32>
    %45 = arith.mulf %43, %43 : vector<32x128xf32>
    %46 = tpu.concatenate %43, %45 in 1 : vector<32x128xf32>, vector<32x128xf32> -> vector<32x256xf32>
    %cst_42 = arith.constant dense<0.000000e+00> : vector<32x128xf32>
    %47 = tpu.matmul %46, %23, %cst_42 {dimension_numbers = #tpu.dot_dimension_numbers<[1], [0], [0], [1], [0, 0, 1, 1], [], []>} : vector<32x256xf32>, vector<256x128xf32>, vector<32x128xf32> -> vector<32x128xf32>
    %48 = vector.extract_strided_slice %47 {offsets = [0, 0], sizes = [32, 64], strides = [1, 1]} : vector<32x128xf32> to vector<32x64xf32>
    %49 = vector.extract_strided_slice %47 {offsets = [0, 64], sizes = [32, 64], strides = [1, 1]} : vector<32x128xf32> to vector<32x64xf32>
    %cst_43 = arith.constant dense<0xFF800000> : vector<32xf32>
    %50 = vector.multi_reduction <maximumf>, %48, %cst_43 [1] : vector<32x64xf32> to vector<32xf32>
    %51 = vector.shape_cast %50 : vector<32xf32> to vector<32x1xf32>
    %52 = vector.broadcast %51 : vector<32x1xf32> to vector<32x64xf32>
    %53 = arith.subf %48, %52 : vector<32x64xf32>
    %54 = math.exp %53 : vector<32x64xf32>
    %55 = vector.shape_cast %49 : vector<32x64xf32> to vector<1x32x64xf32>
    %cst_44 = arith.constant dense<0xFF800000> : vector<1xf32>
    %56 = vector.multi_reduction <maximumf>, %55, %cst_44 [1, 2] : vector<1x32x64xf32> to vector<1xf32>
    %57 = vector.shape_cast %56 : vector<1xf32> to vector<1x1x1xf32>
    %58 = vector.extract %57[0, 0, 0] : f32 from vector<1x1x1xf32>
    %59 = vector.broadcast %58 : f32 to vector<32x64xf32>
    %60 = arith.subf %49, %59 : vector<32x64xf32>
    %61 = math.exp %60 : vector<32x64xf32>
    %62 = vector.extract_strided_slice %61 {offsets = [0, 0], sizes = [16, 64], strides = [1, 1]} : vector<32x64xf32> to vector<16x64xf32>
    %63 = vector.extract_strided_slice %44 {offsets = [0, 0], sizes = [16, 64], strides = [1, 1]} : vector<32x64xf32> to vector<16x64xf32>
    %cst_45 = arith.constant dense<0.000000e+00> : vector<64x64xf32>
    %64 = tpu.matmul %62, %63, %cst_45 {dimension_numbers = #tpu.dot_dimension_numbers<[0], [0], [1], [1], [0, 1, 1, 1], [], []>} : vector<16x64xf32>, vector<16x64xf32>, vector<64x64xf32> -> vector<64x64xf32>
    %65 = arith.mulf %64, %0 : vector<64x64xf32>
    %66 = vector.extract_strided_slice %54 {offsets = [0, 0], sizes = [16, 64], strides = [1, 1]} : vector<32x64xf32> to vector<16x64xf32>
    %cst_46 = arith.constant dense<0.000000e+00> : vector<16x64xf32>
    %67 = tpu.matmul %66, %65, %cst_46 {dimension_numbers = #tpu.dot_dimension_numbers<[1], [0], [0], [1], [0, 0, 1, 1], [], []>} : vector<16x64xf32>, vector<64x64xf32>, vector<16x64xf32> -> vector<16x64xf32>
    %68 = vector.extract_strided_slice %61 {offsets = [16, 0], sizes = [16, 64], strides = [1, 1]} : vector<32x64xf32> to vector<16x64xf32>
    %69 = vector.extract_strided_slice %44 {offsets = [16, 0], sizes = [16, 64], strides = [1, 1]} : vector<32x64xf32> to vector<16x64xf32>
    %cst_47 = arith.constant dense<0.000000e+00> : vector<64x64xf32>
    %70 = tpu.matmul %68, %69, %cst_47 {dimension_numbers = #tpu.dot_dimension_numbers<[0], [0], [1], [1], [0, 1, 1, 1], [], []>} : vector<16x64xf32>, vector<16x64xf32>, vector<64x64xf32> -> vector<64x64xf32>
    %71 = arith.mulf %70, %0 : vector<64x64xf32>
    %72 = vector.extract_strided_slice %54 {offsets = [16, 0], sizes = [16, 64], strides = [1, 1]} : vector<32x64xf32> to vector<16x64xf32>
    %cst_48 = arith.constant dense<0.000000e+00> : vector<16x64xf32>
    %73 = tpu.matmul %72, %71, %cst_48 {dimension_numbers = #tpu.dot_dimension_numbers<[1], [0], [0], [1], [0, 0, 1, 1], [], []>} : vector<16x64xf32>, vector<64x64xf32>, vector<16x64xf32> -> vector<16x64xf32>
    %74 = tpu.concatenate %67, %73 in 0 : vector<16x64xf32>, vector<16x64xf32> -> vector<32x64xf32>
    %75 = vector.extract_strided_slice %74 {offsets = [0, 0], sizes = [32, 32], strides = [1, 1]} : vector<32x64xf32> to vector<32x32xf32>
    %76 = vector.extract_strided_slice %74 {offsets = [0, 32], sizes = [32, 32], strides = [1, 1]} : vector<32x64xf32> to vector<32x32xf32>
    %cst_49 = arith.constant 9.99999997E-7 : f32
    %77 = vector.broadcast %cst_49 : f32 to vector<32x32xf32>
    %78 = arith.addf %76, %77 : vector<32x32xf32>
    %79 = tpu.reciprocal %78 {approx = true} : vector<32x32xf32> -> vector<32x32xf32>
    %80 = arith.mulf %75, %79 : vector<32x32xf32>
    %81 = arith.truncf %80 : vector<32x32xf32> to vector<32x32xbf16>
    %cst_50 = arith.constant dense<0.000000e+00> : vector<32x32xf32>
    %82 = tpu.matmul %81, %17, %cst_50 {dimension_numbers = #tpu.dot_dimension_numbers<[1], [0], [0], [1], [0, 0, 1, 1], [], []>} : vector<32x32xbf16>, vector<32x32xbf16>, vector<32x32xf32> -> vector<32x32xf32>
    %83 = vector.broadcast %31 : vector<1x32xf32> to vector<32x32xf32>
    %84 = arith.addf %82, %83 : vector<32x32xf32>
    %85 = arith.addf %13, %84 : vector<32x32xf32>
    %cst_51 = arith.constant dense<0.000000e+00> : vector<32xf32>
    %86 = vector.multi_reduction <add>, %85, %cst_51 [1] : vector<32x32xf32> to vector<32xf32>
    %87 = vector.shape_cast %86 : vector<32xf32> to vector<32x1xf32>
    %cst_52 = arith.constant 3.125000e-02 : f32
    %88 = vector.broadcast %cst_52 : f32 to vector<32x1xf32>
    %89 = arith.mulf %87, %88 : vector<32x1xf32>
    %90 = arith.mulf %85, %85 : vector<32x32xf32>
    %cst_53 = arith.constant dense<0.000000e+00> : vector<32xf32>
    %91 = vector.multi_reduction <add>, %90, %cst_53 [1] : vector<32x32xf32> to vector<32xf32>
    %92 = vector.shape_cast %91 : vector<32xf32> to vector<32x1xf32>
    %cst_54 = arith.constant 3.125000e-02 : f32
    %93 = vector.broadcast %cst_54 : f32 to vector<32x1xf32>
    %94 = arith.mulf %92, %93 : vector<32x1xf32>
    %95 = arith.mulf %89, %89 : vector<32x1xf32>
    %96 = arith.subf %94, %95 : vector<32x1xf32>
    %97 = vector.broadcast %89 : vector<32x1xf32> to vector<32x32xf32>
    %98 = arith.subf %85, %97 : vector<32x32xf32>
    %cst_55 = arith.constant 9.99999974E-6 : f32
    %99 = vector.broadcast %cst_55 : f32 to vector<32x1xf32>
    %100 = arith.addf %96, %99 : vector<32x1xf32>
    %101 = math.rsqrt %100 : vector<32x1xf32>
    %102 = vector.broadcast %101 : vector<32x1xf32> to vector<32x32xf32>
    %103 = arith.mulf %98, %102 : vector<32x32xf32>
    %104 = vector.broadcast %25 : vector<1x32xf32> to vector<32x32xf32>
    %105 = arith.mulf %103, %104 : vector<32x32xf32>
    %106 = vector.broadcast %27 : vector<1x32xf32> to vector<32x32xf32>
    %107 = arith.addf %105, %106 : vector<32x32xf32>
    %108 = arith.truncf %107 : vector<32x32xf32> to vector<32x32xbf16>
    %cst_56 = arith.constant dense<0.000000e+00> : vector<32x128xf32>
    %109 = tpu.matmul %108, %19, %cst_56 {dimension_numbers = #tpu.dot_dimension_numbers<[1], [0], [0], [1], [0, 0, 1, 1], [], []>} : vector<32x32xbf16>, vector<32x128xbf16>, vector<32x128xf32> -> vector<32x128xf32>
    %110 = vector.broadcast %37 : vector<1x128xf32> to vector<32x128xf32>
    %111 = arith.addf %109, %110 : vector<32x128xf32>
    %112 = arith.mulf %111, %111 : vector<32x128xf32>
    %113 = arith.mulf %111, %112 : vector<32x128xf32>
    %cst_57 = arith.constant 4.471500e-02 : f32
    %114 = vector.broadcast %cst_57 : f32 to vector<32x128xf32>
    %115 = arith.mulf %114, %113 : vector<32x128xf32>
    %116 = arith.addf %111, %115 : vector<32x128xf32>
    %cst_58 = arith.constant 0.797884583 : f32
    %117 = vector.broadcast %cst_58 : f32 to vector<32x128xf32>
    %118 = arith.mulf %117, %116 : vector<32x128xf32>
    %119 = math.tanh %118 : vector<32x128xf32>
    %cst_59 = arith.constant 1.000000e+00 : f32
    %120 = vector.broadcast %cst_59 : f32 to vector<32x128xf32>
    %121 = arith.addf %120, %119 : vector<32x128xf32>
    %cst_60 = arith.constant 5.000000e-01 : f32
    %122 = vector.broadcast %cst_60 : f32 to vector<32x128xf32>
    %123 = arith.mulf %122, %121 : vector<32x128xf32>
    %124 = arith.mulf %111, %123 : vector<32x128xf32>
    %125 = arith.truncf %124 : vector<32x128xf32> to vector<32x128xbf16>
    %cst_61 = arith.constant dense<0.000000e+00> : vector<32x32xf32>
    %126 = tpu.matmul %125, %21, %cst_61 {dimension_numbers = #tpu.dot_dimension_numbers<[1], [0], [0], [1], [0, 0, 1, 1], [], []>} : vector<32x128xbf16>, vector<128x32xbf16>, vector<32x32xf32> -> vector<32x32xf32>
    %127 = vector.broadcast %39 : vector<1x32xf32> to vector<32x32xf32>
    %128 = arith.addf %126, %127 : vector<32x32xf32>
    %129 = arith.addf %107, %128 : vector<32x32xf32>
    %cst_62 = arith.constant dense<0.000000e+00> : vector<32xf32>
    %130 = vector.multi_reduction <add>, %129, %cst_62 [1] : vector<32x32xf32> to vector<32xf32>
    %131 = vector.shape_cast %130 : vector<32xf32> to vector<32x1xf32>
    %cst_63 = arith.constant 3.125000e-02 : f32
    %132 = vector.broadcast %cst_63 : f32 to vector<32x1xf32>
    %133 = arith.mulf %131, %132 : vector<32x1xf32>
    %134 = arith.mulf %129, %129 : vector<32x32xf32>
    %cst_64 = arith.constant dense<0.000000e+00> : vector<32xf32>
    %135 = vector.multi_reduction <add>, %134, %cst_64 [1] : vector<32x32xf32> to vector<32xf32>
    %136 = vector.shape_cast %135 : vector<32xf32> to vector<32x1xf32>
    %cst_65 = arith.constant 3.125000e-02 : f32
    %137 = vector.broadcast %cst_65 : f32 to vector<32x1xf32>
    %138 = arith.mulf %136, %137 : vector<32x1xf32>
    %139 = arith.mulf %133, %133 : vector<32x1xf32>
    %140 = arith.subf %138, %139 : vector<32x1xf32>
    %141 = vector.broadcast %133 : vector<32x1xf32> to vector<32x32xf32>
    %142 = arith.subf %129, %141 : vector<32x32xf32>
    %cst_66 = arith.constant 9.99999974E-6 : f32
    %143 = vector.broadcast %cst_66 : f32 to vector<32x1xf32>
    %144 = arith.addf %140, %143 : vector<32x1xf32>
    %145 = math.rsqrt %144 : vector<32x1xf32>
    %146 = vector.broadcast %145 : vector<32x1xf32> to vector<32x32xf32>
    %147 = arith.mulf %142, %146 : vector<32x32xf32>
    %148 = vector.broadcast %33 : vector<1x32xf32> to vector<32x32xf32>
    %149 = arith.mulf %147, %148 : vector<32x32xf32>
    %150 = vector.broadcast %35 : vector<1x32xf32> to vector<32x32xf32>
    %151 = arith.addf %149, %150 : vector<32x32xf32>
    %c1 = arith.constant 1 : index
    %c0_67 = arith.constant 0 : index
    %c0_68 = arith.constant 0 : index
    %152 = vector.load %arg7[%c1, %c0_67, %c0_68] : memref<3x224x128xbf16, #tpu.memory_space<vmem>>, vector<1x32x128xbf16>
    %153 = vector.shape_cast %152 : vector<1x32x128xbf16> to vector<32x128xbf16>
    %c1_69 = arith.constant 1 : index
    %c32_70 = arith.constant 32 : index
    %c0_71 = arith.constant 0 : index
    %154 = vector.load %arg7[%c1_69, %c32_70, %c0_71] : memref<3x224x128xbf16, #tpu.memory_space<vmem>>, vector<1x32x32xbf16>
    %155 = vector.shape_cast %154 : vector<1x32x32xbf16> to vector<32x32xbf16>
    %c1_72 = arith.constant 1 : index
    %c64_73 = arith.constant 64 : index
    %c0_74 = arith.constant 0 : index
    %156 = vector.load %arg7[%c1_72, %c64_73, %c0_74] : memref<3x224x128xbf16, #tpu.memory_space<vmem>>, vector<1x32x128xbf16>
    %157 = vector.shape_cast %156 : vector<1x32x128xbf16> to vector<32x128xbf16>
    %c1_75 = arith.constant 1 : index
    %c96_76 = arith.constant 96 : index
    %c0_77 = arith.constant 0 : index
    %158 = vector.load %arg7[%c1_75, %c96_76, %c0_77] : memref<3x224x128xbf16, #tpu.memory_space<vmem>>, vector<1x128x32xbf16>
    %159 = vector.shape_cast %158 : vector<1x128x32xbf16> to vector<128x32xbf16>
    %c1_78 = arith.constant 1 : index
    %c0_79 = arith.constant 0 : index
    %c0_80 = arith.constant 0 : index
    %160 = vector.load %arg8[%c1_78, %c0_79, %c0_80] : memref<3x264x128xf32, #tpu.memory_space<vmem>>, vector<1x256x128xf32>
    %161 = vector.shape_cast %160 : vector<1x256x128xf32> to vector<256x128xf32>
    %c1_81 = arith.constant 1 : index
    %c256_82 = arith.constant 256 : index
    %c0_83 = arith.constant 0 : index
    %162 = vector.load %arg8[%c1_81, %c256_82, %c0_83] : memref<3x264x128xf32, #tpu.memory_space<vmem>>, vector<1x1x32xf32>
    %163 = vector.shape_cast %162 : vector<1x1x32xf32> to vector<1x32xf32>
    %c1_84 = arith.constant 1 : index
    %c257_85 = arith.constant 257 : index
    %c0_86 = arith.constant 0 : index
    %164 = vector.load %arg8[%c1_84, %c257_85, %c0_86] : memref<3x264x128xf32, #tpu.memory_space<vmem>>, vector<1x1x32xf32>
    %165 = vector.shape_cast %164 : vector<1x1x32xf32> to vector<1x32xf32>
    %c1_87 = arith.constant 1 : index
    %c258_88 = arith.constant 258 : index
    %c0_89 = arith.constant 0 : index
    %166 = vector.load %arg8[%c1_87, %c258_88, %c0_89] : memref<3x264x128xf32, #tpu.memory_space<vmem>>, vector<1x1x128xf32>
    %167 = vector.shape_cast %166 : vector<1x1x128xf32> to vector<1x128xf32>
    %c1_90 = arith.constant 1 : index
    %c259_91 = arith.constant 259 : index
    %c0_92 = arith.constant 0 : index
    %168 = vector.load %arg8[%c1_90, %c259_91, %c0_92] : memref<3x264x128xf32, #tpu.memory_space<vmem>>, vector<1x1x32xf32>
    %169 = vector.shape_cast %168 : vector<1x1x32xf32> to vector<1x32xf32>
    %c1_93 = arith.constant 1 : index
    %c260_94 = arith.constant 260 : index
    %c0_95 = arith.constant 0 : index
    %170 = vector.load %arg8[%c1_93, %c260_94, %c0_95] : memref<3x264x128xf32, #tpu.memory_space<vmem>>, vector<1x1x32xf32>
    %171 = vector.shape_cast %170 : vector<1x1x32xf32> to vector<1x32xf32>
    %c1_96 = arith.constant 1 : index
    %c261_97 = arith.constant 261 : index
    %c0_98 = arith.constant 0 : index
    %172 = vector.load %arg8[%c1_96, %c261_97, %c0_98] : memref<3x264x128xf32, #tpu.memory_space<vmem>>, vector<1x1x32xf32>
    %173 = vector.shape_cast %172 : vector<1x1x32xf32> to vector<1x32xf32>
    %c1_99 = arith.constant 1 : index
    %c262_100 = arith.constant 262 : index
    %c0_101 = arith.constant 0 : index
    %174 = vector.load %arg8[%c1_99, %c262_100, %c0_101] : memref<3x264x128xf32, #tpu.memory_space<vmem>>, vector<1x1x128xf32>
    %175 = vector.shape_cast %174 : vector<1x1x128xf32> to vector<1x128xf32>
    %c1_102 = arith.constant 1 : index
    %c263_103 = arith.constant 263 : index
    %c0_104 = arith.constant 0 : index
    %176 = vector.load %arg8[%c1_102, %c263_103, %c0_104] : memref<3x264x128xf32, #tpu.memory_space<vmem>>, vector<1x1x32xf32>
    %177 = vector.shape_cast %176 : vector<1x1x32xf32> to vector<1x32xf32>
    %178 = arith.truncf %151 : vector<32x32xf32> to vector<32x32xbf16>
    %cst_105 = arith.constant dense<0.000000e+00> : vector<32x128xf32>
    %179 = tpu.matmul %178, %153, %cst_105 {dimension_numbers = #tpu.dot_dimension_numbers<[1], [0], [0], [1], [0, 0, 1, 1], [], []>} : vector<32x32xbf16>, vector<32x128xbf16>, vector<32x128xf32> -> vector<32x128xf32>
    %180 = vector.broadcast %167 : vector<1x128xf32> to vector<32x128xf32>
    %181 = arith.addf %179, %180 : vector<32x128xf32>
    %182 = vector.extract_strided_slice %181 {offsets = [0, 64], sizes = [32, 64], strides = [1, 1]} : vector<32x128xf32> to vector<32x64xf32>
    %183 = arith.mulf %181, %181 : vector<32x128xf32>
    %184 = tpu.concatenate %181, %183 in 1 : vector<32x128xf32>, vector<32x128xf32> -> vector<32x256xf32>
    %cst_106 = arith.constant dense<0.000000e+00> : vector<32x128xf32>
    %185 = tpu.matmul %184, %161, %cst_106 {dimension_numbers = #tpu.dot_dimension_numbers<[1], [0], [0], [1], [0, 0, 1, 1], [], []>} : vector<32x256xf32>, vector<256x128xf32>, vector<32x128xf32> -> vector<32x128xf32>
    %186 = vector.extract_strided_slice %185 {offsets = [0, 0], sizes = [32, 64], strides = [1, 1]} : vector<32x128xf32> to vector<32x64xf32>
    %187 = vector.extract_strided_slice %185 {offsets = [0, 64], sizes = [32, 64], strides = [1, 1]} : vector<32x128xf32> to vector<32x64xf32>
    %cst_107 = arith.constant dense<0xFF800000> : vector<32xf32>
    %188 = vector.multi_reduction <maximumf>, %186, %cst_107 [1] : vector<32x64xf32> to vector<32xf32>
    %189 = vector.shape_cast %188 : vector<32xf32> to vector<32x1xf32>
    %190 = vector.broadcast %189 : vector<32x1xf32> to vector<32x64xf32>
    %191 = arith.subf %186, %190 : vector<32x64xf32>
    %192 = math.exp %191 : vector<32x64xf32>
    %193 = vector.shape_cast %187 : vector<32x64xf32> to vector<1x32x64xf32>
    %cst_108 = arith.constant dense<0xFF800000> : vector<1xf32>
    %194 = vector.multi_reduction <maximumf>, %193, %cst_108 [1, 2] : vector<1x32x64xf32> to vector<1xf32>
    %195 = vector.shape_cast %194 : vector<1xf32> to vector<1x1x1xf32>
    %196 = vector.extract %195[0, 0, 0] : f32 from vector<1x1x1xf32>
    %197 = vector.broadcast %196 : f32 to vector<32x64xf32>
    %198 = arith.subf %187, %197 : vector<32x64xf32>
    %199 = math.exp %198 : vector<32x64xf32>
    %200 = vector.extract_strided_slice %199 {offsets = [0, 0], sizes = [16, 64], strides = [1, 1]} : vector<32x64xf32> to vector<16x64xf32>
    %201 = vector.extract_strided_slice %182 {offsets = [0, 0], sizes = [16, 64], strides = [1, 1]} : vector<32x64xf32> to vector<16x64xf32>
    %cst_109 = arith.constant dense<0.000000e+00> : vector<64x64xf32>
    %202 = tpu.matmul %200, %201, %cst_109 {dimension_numbers = #tpu.dot_dimension_numbers<[0], [0], [1], [1], [0, 1, 1, 1], [], []>} : vector<16x64xf32>, vector<16x64xf32>, vector<64x64xf32> -> vector<64x64xf32>
    %203 = arith.mulf %202, %0 : vector<64x64xf32>
    %204 = vector.extract_strided_slice %192 {offsets = [0, 0], sizes = [16, 64], strides = [1, 1]} : vector<32x64xf32> to vector<16x64xf32>
    %cst_110 = arith.constant dense<0.000000e+00> : vector<16x64xf32>
    %205 = tpu.matmul %204, %203, %cst_110 {dimension_numbers = #tpu.dot_dimension_numbers<[1], [0], [0], [1], [0, 0, 1, 1], [], []>} : vector<16x64xf32>, vector<64x64xf32>, vector<16x64xf32> -> vector<16x64xf32>
    %206 = vector.extract_strided_slice %199 {offsets = [16, 0], sizes = [16, 64], strides = [1, 1]} : vector<32x64xf32> to vector<16x64xf32>
    %207 = vector.extract_strided_slice %182 {offsets = [16, 0], sizes = [16, 64], strides = [1, 1]} : vector<32x64xf32> to vector<16x64xf32>
    %cst_111 = arith.constant dense<0.000000e+00> : vector<64x64xf32>
    %208 = tpu.matmul %206, %207, %cst_111 {dimension_numbers = #tpu.dot_dimension_numbers<[0], [0], [1], [1], [0, 1, 1, 1], [], []>} : vector<16x64xf32>, vector<16x64xf32>, vector<64x64xf32> -> vector<64x64xf32>
    %209 = arith.mulf %208, %0 : vector<64x64xf32>
    %210 = vector.extract_strided_slice %192 {offsets = [16, 0], sizes = [16, 64], strides = [1, 1]} : vector<32x64xf32> to vector<16x64xf32>
    %cst_112 = arith.constant dense<0.000000e+00> : vector<16x64xf32>
    %211 = tpu.matmul %210, %209, %cst_112 {dimension_numbers = #tpu.dot_dimension_numbers<[1], [0], [0], [1], [0, 0, 1, 1], [], []>} : vector<16x64xf32>, vector<64x64xf32>, vector<16x64xf32> -> vector<16x64xf32>
    %212 = tpu.concatenate %205, %211 in 0 : vector<16x64xf32>, vector<16x64xf32> -> vector<32x64xf32>
    %213 = vector.extract_strided_slice %212 {offsets = [0, 0], sizes = [32, 32], strides = [1, 1]} : vector<32x64xf32> to vector<32x32xf32>
    %214 = vector.extract_strided_slice %212 {offsets = [0, 32], sizes = [32, 32], strides = [1, 1]} : vector<32x64xf32> to vector<32x32xf32>
    %cst_113 = arith.constant 9.99999997E-7 : f32
    %215 = vector.broadcast %cst_113 : f32 to vector<32x32xf32>
    %216 = arith.addf %214, %215 : vector<32x32xf32>
    %217 = tpu.reciprocal %216 {approx = true} : vector<32x32xf32> -> vector<32x32xf32>
    %218 = arith.mulf %213, %217 : vector<32x32xf32>
    %219 = arith.truncf %218 : vector<32x32xf32> to vector<32x32xbf16>
    %cst_114 = arith.constant dense<0.000000e+00> : vector<32x32xf32>
    %220 = tpu.matmul %219, %155, %cst_114 {dimension_numbers = #tpu.dot_dimension_numbers<[1], [0], [0], [1], [0, 0, 1, 1], [], []>} : vector<32x32xbf16>, vector<32x32xbf16>, vector<32x32xf32> -> vector<32x32xf32>
    %221 = vector.broadcast %169 : vector<1x32xf32> to vector<32x32xf32>
    %222 = arith.addf %220, %221 : vector<32x32xf32>
    %223 = arith.addf %151, %222 : vector<32x32xf32>
    %cst_115 = arith.constant dense<0.000000e+00> : vector<32xf32>
    %224 = vector.multi_reduction <add>, %223, %cst_115 [1] : vector<32x32xf32> to vector<32xf32>
    %225 = vector.shape_cast %224 : vector<32xf32> to vector<32x1xf32>
    %cst_116 = arith.constant 3.125000e-02 : f32
    %226 = vector.broadcast %cst_116 : f32 to vector<32x1xf32>
    %227 = arith.mulf %225, %226 : vector<32x1xf32>
    %228 = arith.mulf %223, %223 : vector<32x32xf32>
    %cst_117 = arith.constant dense<0.000000e+00> : vector<32xf32>
    %229 = vector.multi_reduction <add>, %228, %cst_117 [1] : vector<32x32xf32> to vector<32xf32>
    %230 = vector.shape_cast %229 : vector<32xf32> to vector<32x1xf32>
    %cst_118 = arith.constant 3.125000e-02 : f32
    %231 = vector.broadcast %cst_118 : f32 to vector<32x1xf32>
    %232 = arith.mulf %230, %231 : vector<32x1xf32>
    %233 = arith.mulf %227, %227 : vector<32x1xf32>
    %234 = arith.subf %232, %233 : vector<32x1xf32>
    %235 = vector.broadcast %227 : vector<32x1xf32> to vector<32x32xf32>
    %236 = arith.subf %223, %235 : vector<32x32xf32>
    %cst_119 = arith.constant 9.99999974E-6 : f32
    %237 = vector.broadcast %cst_119 : f32 to vector<32x1xf32>
    %238 = arith.addf %234, %237 : vector<32x1xf32>
    %239 = math.rsqrt %238 : vector<32x1xf32>
    %240 = vector.broadcast %239 : vector<32x1xf32> to vector<32x32xf32>
    %241 = arith.mulf %236, %240 : vector<32x32xf32>
    %242 = vector.broadcast %163 : vector<1x32xf32> to vector<32x32xf32>
    %243 = arith.mulf %241, %242 : vector<32x32xf32>
    %244 = vector.broadcast %165 : vector<1x32xf32> to vector<32x32xf32>
    %245 = arith.addf %243, %244 : vector<32x32xf32>
    %246 = arith.truncf %245 : vector<32x32xf32> to vector<32x32xbf16>
    %cst_120 = arith.constant dense<0.000000e+00> : vector<32x128xf32>
    %247 = tpu.matmul %246, %157, %cst_120 {dimension_numbers = #tpu.dot_dimension_numbers<[1], [0], [0], [1], [0, 0, 1, 1], [], []>} : vector<32x32xbf16>, vector<32x128xbf16>, vector<32x128xf32> -> vector<32x128xf32>
    %248 = vector.broadcast %175 : vector<1x128xf32> to vector<32x128xf32>
    %249 = arith.addf %247, %248 : vector<32x128xf32>
    %250 = arith.mulf %249, %249 : vector<32x128xf32>
    %251 = arith.mulf %249, %250 : vector<32x128xf32>
    %cst_121 = arith.constant 4.471500e-02 : f32
    %252 = vector.broadcast %cst_121 : f32 to vector<32x128xf32>
    %253 = arith.mulf %252, %251 : vector<32x128xf32>
    %254 = arith.addf %249, %253 : vector<32x128xf32>
    %cst_122 = arith.constant 0.797884583 : f32
    %255 = vector.broadcast %cst_122 : f32 to vector<32x128xf32>
    %256 = arith.mulf %255, %254 : vector<32x128xf32>
    %257 = math.tanh %256 : vector<32x128xf32>
    %cst_123 = arith.constant 1.000000e+00 : f32
    %258 = vector.broadcast %cst_123 : f32 to vector<32x128xf32>
    %259 = arith.addf %258, %257 : vector<32x128xf32>
    %cst_124 = arith.constant 5.000000e-01 : f32
    %260 = vector.broadcast %cst_124 : f32 to vector<32x128xf32>
    %261 = arith.mulf %260, %259 : vector<32x128xf32>
    %262 = arith.mulf %249, %261 : vector<32x128xf32>
    %263 = arith.truncf %262 : vector<32x128xf32> to vector<32x128xbf16>
    %cst_125 = arith.constant dense<0.000000e+00> : vector<32x32xf32>
    %264 = tpu.matmul %263, %159, %cst_125 {dimension_numbers = #tpu.dot_dimension_numbers<[1], [0], [0], [1], [0, 0, 1, 1], [], []>} : vector<32x128xbf16>, vector<128x32xbf16>, vector<32x32xf32> -> vector<32x32xf32>
    %265 = vector.broadcast %177 : vector<1x32xf32> to vector<32x32xf32>
    %266 = arith.addf %264, %265 : vector<32x32xf32>
    %267 = arith.addf %245, %266 : vector<32x32xf32>
    %cst_126 = arith.constant dense<0.000000e+00> : vector<32xf32>
    %268 = vector.multi_reduction <add>, %267, %cst_126 [1] : vector<32x32xf32> to vector<32xf32>
    %269 = vector.shape_cast %268 : vector<32xf32> to vector<32x1xf32>
    %cst_127 = arith.constant 3.125000e-02 : f32
    %270 = vector.broadcast %cst_127 : f32 to vector<32x1xf32>
    %271 = arith.mulf %269, %270 : vector<32x1xf32>
    %272 = arith.mulf %267, %267 : vector<32x32xf32>
    %cst_128 = arith.constant dense<0.000000e+00> : vector<32xf32>
    %273 = vector.multi_reduction <add>, %272, %cst_128 [1] : vector<32x32xf32> to vector<32xf32>
    %274 = vector.shape_cast %273 : vector<32xf32> to vector<32x1xf32>
    %cst_129 = arith.constant 3.125000e-02 : f32
    %275 = vector.broadcast %cst_129 : f32 to vector<32x1xf32>
    %276 = arith.mulf %274, %275 : vector<32x1xf32>
    %277 = arith.mulf %271, %271 : vector<32x1xf32>
    %278 = arith.subf %276, %277 : vector<32x1xf32>
    %279 = vector.broadcast %271 : vector<32x1xf32> to vector<32x32xf32>
    %280 = arith.subf %267, %279 : vector<32x32xf32>
    %cst_130 = arith.constant 9.99999974E-6 : f32
    %281 = vector.broadcast %cst_130 : f32 to vector<32x1xf32>
    %282 = arith.addf %278, %281 : vector<32x1xf32>
    %283 = math.rsqrt %282 : vector<32x1xf32>
    %284 = vector.broadcast %283 : vector<32x1xf32> to vector<32x32xf32>
    %285 = arith.mulf %280, %284 : vector<32x32xf32>
    %286 = vector.broadcast %171 : vector<1x32xf32> to vector<32x32xf32>
    %287 = arith.mulf %285, %286 : vector<32x32xf32>
    %288 = vector.broadcast %173 : vector<1x32xf32> to vector<32x32xf32>
    %289 = arith.addf %287, %288 : vector<32x32xf32>
    %c2 = arith.constant 2 : index
    %c0_131 = arith.constant 0 : index
    %c0_132 = arith.constant 0 : index
    %290 = vector.load %arg7[%c2, %c0_131, %c0_132] : memref<3x224x128xbf16, #tpu.memory_space<vmem>>, vector<1x32x128xbf16>
    %291 = vector.shape_cast %290 : vector<1x32x128xbf16> to vector<32x128xbf16>
    %c2_133 = arith.constant 2 : index
    %c32_134 = arith.constant 32 : index
    %c0_135 = arith.constant 0 : index
    %292 = vector.load %arg7[%c2_133, %c32_134, %c0_135] : memref<3x224x128xbf16, #tpu.memory_space<vmem>>, vector<1x32x32xbf16>
    %293 = vector.shape_cast %292 : vector<1x32x32xbf16> to vector<32x32xbf16>
    %c2_136 = arith.constant 2 : index
    %c64_137 = arith.constant 64 : index
    %c0_138 = arith.constant 0 : index
    %294 = vector.load %arg7[%c2_136, %c64_137, %c0_138] : memref<3x224x128xbf16, #tpu.memory_space<vmem>>, vector<1x32x128xbf16>
    %295 = vector.shape_cast %294 : vector<1x32x128xbf16> to vector<32x128xbf16>
    %c2_139 = arith.constant 2 : index
    %c96_140 = arith.constant 96 : index
    %c0_141 = arith.constant 0 : index
    %296 = vector.load %arg7[%c2_139, %c96_140, %c0_141] : memref<3x224x128xbf16, #tpu.memory_space<vmem>>, vector<1x128x32xbf16>
    %297 = vector.shape_cast %296 : vector<1x128x32xbf16> to vector<128x32xbf16>
    %c2_142 = arith.constant 2 : index
    %c0_143 = arith.constant 0 : index
    %c0_144 = arith.constant 0 : index
    %298 = vector.load %arg8[%c2_142, %c0_143, %c0_144] : memref<3x264x128xf32, #tpu.memory_space<vmem>>, vector<1x256x128xf32>
    %299 = vector.shape_cast %298 : vector<1x256x128xf32> to vector<256x128xf32>
    %c2_145 = arith.constant 2 : index
    %c256_146 = arith.constant 256 : index
    %c0_147 = arith.constant 0 : index
    %300 = vector.load %arg8[%c2_145, %c256_146, %c0_147] : memref<3x264x128xf32, #tpu.memory_space<vmem>>, vector<1x1x32xf32>
    %301 = vector.shape_cast %300 : vector<1x1x32xf32> to vector<1x32xf32>
    %c2_148 = arith.constant 2 : index
    %c257_149 = arith.constant 257 : index
    %c0_150 = arith.constant 0 : index
    %302 = vector.load %arg8[%c2_148, %c257_149, %c0_150] : memref<3x264x128xf32, #tpu.memory_space<vmem>>, vector<1x1x32xf32>
    %303 = vector.shape_cast %302 : vector<1x1x32xf32> to vector<1x32xf32>
    %c2_151 = arith.constant 2 : index
    %c258_152 = arith.constant 258 : index
    %c0_153 = arith.constant 0 : index
    %304 = vector.load %arg8[%c2_151, %c258_152, %c0_153] : memref<3x264x128xf32, #tpu.memory_space<vmem>>, vector<1x1x128xf32>
    %305 = vector.shape_cast %304 : vector<1x1x128xf32> to vector<1x128xf32>
    %c2_154 = arith.constant 2 : index
    %c259_155 = arith.constant 259 : index
    %c0_156 = arith.constant 0 : index
    %306 = vector.load %arg8[%c2_154, %c259_155, %c0_156] : memref<3x264x128xf32, #tpu.memory_space<vmem>>, vector<1x1x32xf32>
    %307 = vector.shape_cast %306 : vector<1x1x32xf32> to vector<1x32xf32>
    %c2_157 = arith.constant 2 : index
    %c260_158 = arith.constant 260 : index
    %c0_159 = arith.constant 0 : index
    %308 = vector.load %arg8[%c2_157, %c260_158, %c0_159] : memref<3x264x128xf32, #tpu.memory_space<vmem>>, vector<1x1x32xf32>
    %309 = vector.shape_cast %308 : vector<1x1x32xf32> to vector<1x32xf32>
    %c2_160 = arith.constant 2 : index
    %c261_161 = arith.constant 261 : index
    %c0_162 = arith.constant 0 : index
    %310 = vector.load %arg8[%c2_160, %c261_161, %c0_162] : memref<3x264x128xf32, #tpu.memory_space<vmem>>, vector<1x1x32xf32>
    %311 = vector.shape_cast %310 : vector<1x1x32xf32> to vector<1x32xf32>
    %c2_163 = arith.constant 2 : index
    %c262_164 = arith.constant 262 : index
    %c0_165 = arith.constant 0 : index
    %312 = vector.load %arg8[%c2_163, %c262_164, %c0_165] : memref<3x264x128xf32, #tpu.memory_space<vmem>>, vector<1x1x128xf32>
    %313 = vector.shape_cast %312 : vector<1x1x128xf32> to vector<1x128xf32>
    %c2_166 = arith.constant 2 : index
    %c263_167 = arith.constant 263 : index
    %c0_168 = arith.constant 0 : index
    %314 = vector.load %arg8[%c2_166, %c263_167, %c0_168] : memref<3x264x128xf32, #tpu.memory_space<vmem>>, vector<1x1x32xf32>
    %315 = vector.shape_cast %314 : vector<1x1x32xf32> to vector<1x32xf32>
    %316 = arith.truncf %289 : vector<32x32xf32> to vector<32x32xbf16>
    %cst_169 = arith.constant dense<0.000000e+00> : vector<32x128xf32>
    %317 = tpu.matmul %316, %291, %cst_169 {dimension_numbers = #tpu.dot_dimension_numbers<[1], [0], [0], [1], [0, 0, 1, 1], [], []>} : vector<32x32xbf16>, vector<32x128xbf16>, vector<32x128xf32> -> vector<32x128xf32>
    %318 = vector.broadcast %305 : vector<1x128xf32> to vector<32x128xf32>
    %319 = arith.addf %317, %318 : vector<32x128xf32>
    %320 = vector.extract_strided_slice %319 {offsets = [0, 64], sizes = [32, 64], strides = [1, 1]} : vector<32x128xf32> to vector<32x64xf32>
    %321 = arith.mulf %319, %319 : vector<32x128xf32>
    %322 = tpu.concatenate %319, %321 in 1 : vector<32x128xf32>, vector<32x128xf32> -> vector<32x256xf32>
    %cst_170 = arith.constant dense<0.000000e+00> : vector<32x128xf32>
    %323 = tpu.matmul %322, %299, %cst_170 {dimension_numbers = #tpu.dot_dimension_numbers<[1], [0], [0], [1], [0, 0, 1, 1], [], []>} : vector<32x256xf32>, vector<256x128xf32>, vector<32x128xf32> -> vector<32x128xf32>
    %324 = vector.extract_strided_slice %323 {offsets = [0, 0], sizes = [32, 64], strides = [1, 1]} : vector<32x128xf32> to vector<32x64xf32>
    %325 = vector.extract_strided_slice %323 {offsets = [0, 64], sizes = [32, 64], strides = [1, 1]} : vector<32x128xf32> to vector<32x64xf32>
    %cst_171 = arith.constant dense<0xFF800000> : vector<32xf32>
    %326 = vector.multi_reduction <maximumf>, %324, %cst_171 [1] : vector<32x64xf32> to vector<32xf32>
    %327 = vector.shape_cast %326 : vector<32xf32> to vector<32x1xf32>
    %328 = vector.broadcast %327 : vector<32x1xf32> to vector<32x64xf32>
    %329 = arith.subf %324, %328 : vector<32x64xf32>
    %330 = math.exp %329 : vector<32x64xf32>
    %331 = vector.shape_cast %325 : vector<32x64xf32> to vector<1x32x64xf32>
    %cst_172 = arith.constant dense<0xFF800000> : vector<1xf32>
    %332 = vector.multi_reduction <maximumf>, %331, %cst_172 [1, 2] : vector<1x32x64xf32> to vector<1xf32>
    %333 = vector.shape_cast %332 : vector<1xf32> to vector<1x1x1xf32>
    %334 = vector.extract %333[0, 0, 0] : f32 from vector<1x1x1xf32>
    %335 = vector.broadcast %334 : f32 to vector<32x64xf32>
    %336 = arith.subf %325, %335 : vector<32x64xf32>
    %337 = math.exp %336 : vector<32x64xf32>
    %338 = vector.extract_strided_slice %337 {offsets = [0, 0], sizes = [16, 64], strides = [1, 1]} : vector<32x64xf32> to vector<16x64xf32>
    %339 = vector.extract_strided_slice %320 {offsets = [0, 0], sizes = [16, 64], strides = [1, 1]} : vector<32x64xf32> to vector<16x64xf32>
    %cst_173 = arith.constant dense<0.000000e+00> : vector<64x64xf32>
    %340 = tpu.matmul %338, %339, %cst_173 {dimension_numbers = #tpu.dot_dimension_numbers<[0], [0], [1], [1], [0, 1, 1, 1], [], []>} : vector<16x64xf32>, vector<16x64xf32>, vector<64x64xf32> -> vector<64x64xf32>
    %341 = arith.mulf %340, %0 : vector<64x64xf32>
    %342 = vector.extract_strided_slice %330 {offsets = [0, 0], sizes = [16, 64], strides = [1, 1]} : vector<32x64xf32> to vector<16x64xf32>
    %cst_174 = arith.constant dense<0.000000e+00> : vector<16x64xf32>
    %343 = tpu.matmul %342, %341, %cst_174 {dimension_numbers = #tpu.dot_dimension_numbers<[1], [0], [0], [1], [0, 0, 1, 1], [], []>} : vector<16x64xf32>, vector<64x64xf32>, vector<16x64xf32> -> vector<16x64xf32>
    %344 = vector.extract_strided_slice %337 {offsets = [16, 0], sizes = [16, 64], strides = [1, 1]} : vector<32x64xf32> to vector<16x64xf32>
    %345 = vector.extract_strided_slice %320 {offsets = [16, 0], sizes = [16, 64], strides = [1, 1]} : vector<32x64xf32> to vector<16x64xf32>
    %cst_175 = arith.constant dense<0.000000e+00> : vector<64x64xf32>
    %346 = tpu.matmul %344, %345, %cst_175 {dimension_numbers = #tpu.dot_dimension_numbers<[0], [0], [1], [1], [0, 1, 1, 1], [], []>} : vector<16x64xf32>, vector<16x64xf32>, vector<64x64xf32> -> vector<64x64xf32>
    %347 = arith.mulf %346, %0 : vector<64x64xf32>
    %348 = vector.extract_strided_slice %330 {offsets = [16, 0], sizes = [16, 64], strides = [1, 1]} : vector<32x64xf32> to vector<16x64xf32>
    %cst_176 = arith.constant dense<0.000000e+00> : vector<16x64xf32>
    %349 = tpu.matmul %348, %347, %cst_176 {dimension_numbers = #tpu.dot_dimension_numbers<[1], [0], [0], [1], [0, 0, 1, 1], [], []>} : vector<16x64xf32>, vector<64x64xf32>, vector<16x64xf32> -> vector<16x64xf32>
    %350 = tpu.concatenate %343, %349 in 0 : vector<16x64xf32>, vector<16x64xf32> -> vector<32x64xf32>
    %351 = vector.extract_strided_slice %350 {offsets = [0, 0], sizes = [32, 32], strides = [1, 1]} : vector<32x64xf32> to vector<32x32xf32>
    %352 = vector.extract_strided_slice %350 {offsets = [0, 32], sizes = [32, 32], strides = [1, 1]} : vector<32x64xf32> to vector<32x32xf32>
    %cst_177 = arith.constant 9.99999997E-7 : f32
    %353 = vector.broadcast %cst_177 : f32 to vector<32x32xf32>
    %354 = arith.addf %352, %353 : vector<32x32xf32>
    %355 = tpu.reciprocal %354 {approx = true} : vector<32x32xf32> -> vector<32x32xf32>
    %356 = arith.mulf %351, %355 : vector<32x32xf32>
    %357 = arith.truncf %356 : vector<32x32xf32> to vector<32x32xbf16>
    %cst_178 = arith.constant dense<0.000000e+00> : vector<32x32xf32>
    %358 = tpu.matmul %357, %293, %cst_178 {dimension_numbers = #tpu.dot_dimension_numbers<[1], [0], [0], [1], [0, 0, 1, 1], [], []>} : vector<32x32xbf16>, vector<32x32xbf16>, vector<32x32xf32> -> vector<32x32xf32>
    %359 = vector.broadcast %307 : vector<1x32xf32> to vector<32x32xf32>
    %360 = arith.addf %358, %359 : vector<32x32xf32>
    %361 = arith.addf %289, %360 : vector<32x32xf32>
    %cst_179 = arith.constant dense<0.000000e+00> : vector<32xf32>
    %362 = vector.multi_reduction <add>, %361, %cst_179 [1] : vector<32x32xf32> to vector<32xf32>
    %363 = vector.shape_cast %362 : vector<32xf32> to vector<32x1xf32>
    %cst_180 = arith.constant 3.125000e-02 : f32
    %364 = vector.broadcast %cst_180 : f32 to vector<32x1xf32>
    %365 = arith.mulf %363, %364 : vector<32x1xf32>
    %366 = arith.mulf %361, %361 : vector<32x32xf32>
    %cst_181 = arith.constant dense<0.000000e+00> : vector<32xf32>
    %367 = vector.multi_reduction <add>, %366, %cst_181 [1] : vector<32x32xf32> to vector<32xf32>
    %368 = vector.shape_cast %367 : vector<32xf32> to vector<32x1xf32>
    %cst_182 = arith.constant 3.125000e-02 : f32
    %369 = vector.broadcast %cst_182 : f32 to vector<32x1xf32>
    %370 = arith.mulf %368, %369 : vector<32x1xf32>
    %371 = arith.mulf %365, %365 : vector<32x1xf32>
    %372 = arith.subf %370, %371 : vector<32x1xf32>
    %373 = vector.broadcast %365 : vector<32x1xf32> to vector<32x32xf32>
    %374 = arith.subf %361, %373 : vector<32x32xf32>
    %cst_183 = arith.constant 9.99999974E-6 : f32
    %375 = vector.broadcast %cst_183 : f32 to vector<32x1xf32>
    %376 = arith.addf %372, %375 : vector<32x1xf32>
    %377 = math.rsqrt %376 : vector<32x1xf32>
    %378 = vector.broadcast %377 : vector<32x1xf32> to vector<32x32xf32>
    %379 = arith.mulf %374, %378 : vector<32x32xf32>
    %380 = vector.broadcast %301 : vector<1x32xf32> to vector<32x32xf32>
    %381 = arith.mulf %379, %380 : vector<32x32xf32>
    %382 = vector.broadcast %303 : vector<1x32xf32> to vector<32x32xf32>
    %383 = arith.addf %381, %382 : vector<32x32xf32>
    %384 = arith.truncf %383 : vector<32x32xf32> to vector<32x32xbf16>
    %cst_184 = arith.constant dense<0.000000e+00> : vector<32x128xf32>
    %385 = tpu.matmul %384, %295, %cst_184 {dimension_numbers = #tpu.dot_dimension_numbers<[1], [0], [0], [1], [0, 0, 1, 1], [], []>} : vector<32x32xbf16>, vector<32x128xbf16>, vector<32x128xf32> -> vector<32x128xf32>
    %386 = vector.broadcast %313 : vector<1x128xf32> to vector<32x128xf32>
    %387 = arith.addf %385, %386 : vector<32x128xf32>
    %388 = arith.mulf %387, %387 : vector<32x128xf32>
    %389 = arith.mulf %387, %388 : vector<32x128xf32>
    %cst_185 = arith.constant 4.471500e-02 : f32
    %390 = vector.broadcast %cst_185 : f32 to vector<32x128xf32>
    %391 = arith.mulf %390, %389 : vector<32x128xf32>
    %392 = arith.addf %387, %391 : vector<32x128xf32>
    %cst_186 = arith.constant 0.797884583 : f32
    %393 = vector.broadcast %cst_186 : f32 to vector<32x128xf32>
    %394 = arith.mulf %393, %392 : vector<32x128xf32>
    %395 = math.tanh %394 : vector<32x128xf32>
    %cst_187 = arith.constant 1.000000e+00 : f32
    %396 = vector.broadcast %cst_187 : f32 to vector<32x128xf32>
    %397 = arith.addf %396, %395 : vector<32x128xf32>
    %cst_188 = arith.constant 5.000000e-01 : f32
    %398 = vector.broadcast %cst_188 : f32 to vector<32x128xf32>
    %399 = arith.mulf %398, %397 : vector<32x128xf32>
    %400 = arith.mulf %387, %399 : vector<32x128xf32>
    %401 = arith.truncf %400 : vector<32x128xf32> to vector<32x128xbf16>
    %cst_189 = arith.constant dense<0.000000e+00> : vector<32x32xf32>
    %402 = tpu.matmul %401, %297, %cst_189 {dimension_numbers = #tpu.dot_dimension_numbers<[1], [0], [0], [1], [0, 0, 1, 1], [], []>} : vector<32x128xbf16>, vector<128x32xbf16>, vector<32x32xf32> -> vector<32x32xf32>
    %403 = vector.broadcast %315 : vector<1x32xf32> to vector<32x32xf32>
    %404 = arith.addf %402, %403 : vector<32x32xf32>
    %405 = arith.addf %383, %404 : vector<32x32xf32>
    %cst_190 = arith.constant dense<0.000000e+00> : vector<32xf32>
    %406 = vector.multi_reduction <add>, %405, %cst_190 [1] : vector<32x32xf32> to vector<32xf32>
    %407 = vector.shape_cast %406 : vector<32xf32> to vector<32x1xf32>
    %cst_191 = arith.constant 3.125000e-02 : f32
    %408 = vector.broadcast %cst_191 : f32 to vector<32x1xf32>
    %409 = arith.mulf %407, %408 : vector<32x1xf32>
    %410 = arith.mulf %405, %405 : vector<32x32xf32>
    %cst_192 = arith.constant dense<0.000000e+00> : vector<32xf32>
    %411 = vector.multi_reduction <add>, %410, %cst_192 [1] : vector<32x32xf32> to vector<32xf32>
    %412 = vector.shape_cast %411 : vector<32xf32> to vector<32x1xf32>
    %cst_193 = arith.constant 3.125000e-02 : f32
    %413 = vector.broadcast %cst_193 : f32 to vector<32x1xf32>
    %414 = arith.mulf %412, %413 : vector<32x1xf32>
    %415 = arith.mulf %409, %409 : vector<32x1xf32>
    %416 = arith.subf %414, %415 : vector<32x1xf32>
    %417 = vector.broadcast %409 : vector<32x1xf32> to vector<32x32xf32>
    %418 = arith.subf %405, %417 : vector<32x32xf32>
    %cst_194 = arith.constant 9.99999974E-6 : f32
    %419 = vector.broadcast %cst_194 : f32 to vector<32x1xf32>
    %420 = arith.addf %416, %419 : vector<32x1xf32>
    %421 = math.rsqrt %420 : vector<32x1xf32>
    %422 = vector.broadcast %421 : vector<32x1xf32> to vector<32x32xf32>
    %423 = arith.mulf %418, %422 : vector<32x32xf32>
    %424 = vector.broadcast %309 : vector<1x32xf32> to vector<32x32xf32>
    %425 = arith.mulf %423, %424 : vector<32x32xf32>
    %426 = vector.broadcast %311 : vector<1x32xf32> to vector<32x32xf32>
    %427 = arith.addf %425, %426 : vector<32x32xf32>
    %c0_195 = arith.constant 0 : index
    %c0_196 = arith.constant 0 : index
    %428 = vector.load %arg6[%c0_195, %c0_196] : memref<2x32xf32, #tpu.memory_space<vmem>>, vector<2x32xf32>
    %cst_197 = arith.constant dense<0.000000e+00> : vector<2x32xf32>
    %429 = tpu.matmul %428, %427, %cst_197 {dimension_numbers = #tpu.dot_dimension_numbers<[1], [0], [0], [1], [0, 0, 1, 1], [], []>} : vector<2x32xf32>, vector<32x32xf32>, vector<2x32xf32> -> vector<2x32xf32>
    %c0_198 = arith.constant 0 : index
    %c0_199 = arith.constant 0 : index
    %430 = vector.load %arg9[%c0_198, %c0_199] : memref<2x32xf32, #tpu.memory_space<vmem>>, vector<2x32xf32>
    tpu.vector_store %arg9[%c0_198, %c0_199], %429 {strides = array<i32>} : memref<2x32xf32, #tpu.memory_space<vmem>>, vector<2x32xf32>,
    return
  }
}

</mosaic_0001>

<llo_original>
// kernel: _lambda_.1
$region0: #{_lambda_.1}
  #allocation0 [shape = 'u32[]', space=smem, size = 0x4, offset = 0x4, fixed_abs, tag = 'smem constant byte address 0x4 - core index']
  #allocation1 [shape = 'u32[144,128]{1,0:T(1,128)}', space=vmem, size = 0x12000, scoped, tag = 'internal scratch']
  %s0 = inlined_call_operand.vmem [shape: bf16[32,32], index: 0, kind: input, shape index: {}]
  %s1 = inlined_call_operand.vmem [shape: bf16[32,48], index: 1, kind: input, shape index: {}]
  %s2 = inlined_call_operand.vmem [shape: f32[1,48], index: 2, kind: input, shape index: {}]
  %s3 = inlined_call_operand.vmem [shape: bf16[48,32], index: 3, kind: input, shape index: {}]
  %s4 = inlined_call_operand.vmem [shape: f32[32,32], index: 4, kind: input, shape index: {}]
  %s5 = inlined_call_operand.vmem [shape: f32[64,64], index: 5, kind: input, shape index: {}]
  %s6 = inlined_call_operand.vmem [shape: f32[2,32], index: 6, kind: input, shape index: {}]
  %s7 = inlined_call_operand.hbm [shape: bf16[3,224,128], index: 7, kind: input, shape index: {}]
  %s8 = inlined_call_operand.vmem [shape: f32[3,264,128], index: 8, kind: input, shape index: {}]
  %s9 = inlined_call_operand.hbm [shape: f32[2,32], index: 9, kind: output, shape index: {}]
  %s10 = sld [smem:[#allocation0]]
  $region50: #{_lambda_.1} parent=0
    _
  %s12 = ssub.s32 1, %s10
  %s13 = scalar_select 0, %s12, %s10
  $region1: #{_lambda_.1} parent=0
    #allocation2 [shape = 'u8[172032]{0}', space=vmem, size = 0x2a000, scoped, tag = 'input window, operand 7, single buffered']
    #allocation3 [shape = 's32[1]{0}', space=sflag, size = 0x4, scoped, tag = 'scoped memory for _lambda_.1']
    #allocation4 [shape = 's32[1]{0}', space=sflag, size = 0x4, scoped, tag = 'scoped memory for _lambda_.1']
    #allocation5 [shape = 'u8[1024]{0}', space=vmem, size = 0x400, scoped, tag = 'output window, operand 0, single buffered']
    %14 = vsyncpa [#allocation3], 0
    %15 = vsyncpa [#allocation4], 0
    // Predicated region
    $region2: #{_lambda_.1} parent=1 // pred_check
      _
    $region3: #{_lambda_.1} parent=1 // pred_check_branch
      %17 = sbr.rel (0) target = $region5
    $region4: #{_lambda_.1} parent=1 // pred_region
      _
    $region5: #{_lambda_.1} parent=1 // pred_fallthru
      _
    // Predicated region
    $region6: #{_lambda_.1} parent=1 // pred_check
      _
    $region7: #{_lambda_.1} parent=1 // pred_check_branch
      %19 = sbr.rel (0) target = $region9
    $region8: #{_lambda_.1} parent=1 // pred_region
      _
    $region9: #{_lambda_.1} parent=1 // pred_fallthru
      _
    // Predicated region
    $region10: #{_lambda_.1} parent=1 // pred_check
      _
    $region11: #{_lambda_.1} parent=1 // pred_check_branch
      %21 = sbr.rel (0) target = $region13
    $region12: #{_lambda_.1} parent=1 // pred_region
      _
    $region13: #{_lambda_.1} parent=1 // pred_fallthru
      _
    // Predicated region
    $region14: #{_lambda_.1} parent=1 // pred_check
      _
    $region15: #{_lambda_.1} parent=1 // pred_check_branch
      %23 = sbr.rel (0) target = $region17
    $region16: #{_lambda_.1} parent=1 // pred_region
      _
    $region17: #{_lambda_.1} parent=1 // pred_fallthru
      _
    // Predicated region
    $region18: #{_lambda_.1} parent=1 // pred_check
      _
    $region19: #{_lambda_.1} parent=1 // pred_check_branch
      %25 = sbr.rel (0) target = $region21
    $region20: #{_lambda_.1} parent=1 // pred_region
      _
    $region21: #{_lambda_.1} parent=1 // pred_fallthru
      _
    // Predicated region
    $region22: #{_lambda_.1} parent=1 // pred_check
      _
    $region23: #{_lambda_.1} parent=1 // pred_check_branch
      %27 = sbr.rel (0) target = $region25
    $region24: #{_lambda_.1} parent=1 // pred_region
      _
    $region25: #{_lambda_.1} parent=1 // pred_fallthru
      _
    // Predicated region
    $region26: #{_lambda_.1} parent=1 // pred_check
      _
    $region27: #{_lambda_.1} parent=1 // pred_check_branch
      %29 = sbr.rel (0) target = $region29
    $region28: #{_lambda_.1} parent=1 // pred_region
      _
    $region29: #{_lambda_.1} parent=1 // pred_fallthru
      _
    // Predicated region
    $region30: #{_lambda_.1} parent=1 // pred_check
      _
    $region31: #{_lambda_.1} parent=1 // pred_check_branch
      %31 = sbr.rel (0) target = $region33
    $region32: #{_lambda_.1} parent=1 // pred_region
      %s33 = ssub.s32 5376, 5376
      %34 = vsyncadd [#allocation3], %s33
      %s35 = sshll.u32 [#allocation2], 4
      %s36 = int_to_ptr.vmem [resolvable:$true] %s35
      %41 = dma.hbm_to_vmem [thread:$0]  %s7, 5376, %s36, [#allocation3], 64, 64, 4
    $region33: #{_lambda_.1} parent=1 // pred_fallthru
      _
    // Predicated region
    $region34: #{_lambda_.1} parent=1 // pred_check
      _
    $region35: #{_lambda_.1} parent=1 // pred_check_branch
      %43 = sbr.rel (0) target = $region37
    $region36: #{_lambda_.1} parent=1 // pred_region
      _
    $region37: #{_lambda_.1} parent=1 // pred_fallthru
      _
    // Predicated region
    $region38: #{_lambda_.1} parent=1 // pred_check
      _
    $region39: #{_lambda_.1} parent=1 // pred_check_branch
      %45 = sbr.rel (0) target = $region41
    $region40: #{_lambda_.1} parent=1 // pred_region
      %46 = dma.done [#allocation3], 5376
    $region41: #{_lambda_.1} parent=1 // pred_fallthru
      _
    %v48 = vld [vmem:[%s5] sm:$0xff]
    %v49 = vld [vmem:[%s5 + $0x8] sm:$0xff]
    %v50 = vld [vmem:[%s5 + $0x10] sm:$0xff]
    %v51 = vld [vmem:[%s5 + $0x18] sm:$0xff]
    %v52 = vld [vmem:[%s5 + $0x20] sm:$0xff]
    %v53 = vld [vmem:[%s5 + $0x28] sm:$0xff]
    %v54 = vld [vmem:[%s5 + $0x30] sm:$0xff]
    %v55 = vld [vmem:[%s5 + $0x38] sm:$0xff]
    %v56 = vld [vmem:[%s0] sm:$0xf]
    %v57 = vld [vmem:[%s0 + $0x4] sm:$0xf]
    %v58 = vld [vmem:[%s0 + $0x8] sm:$0xf]
    %v59 = vld [vmem:[%s0 + $0xc] sm:$0xf]
    %v60 = vld [vmem:[%s1] sm:$0xf]
    %v61 = vld [vmem:[%s1 + $0x4] sm:$0xf]
    %v62 = vld [vmem:[%s1 + $0x8] sm:$0xf]
    %v63 = vld [vmem:[%s1 + $0xc] sm:$0xf]
    %v64 = vld [vmem:[%s2] sm:$0x1]
    %v66 = vlaneseq
    %v67 = vshrl.u32 %v66, 7
    %v68 = vsub.s32 0, %v67
    %v69 = vrot.slane %v64, %v68
    %v75 = vunpack.c.l.b16 %v56
    %v76 = vunpack.c.l.b16 %v57
    %v77 = vunpack.c.l.b16 %v58
    %v78 = vunpack.c.l.b16 %v59
    %v79 = vpack.c.b16 %v76, %v75
    %v80 = vpack.c.b16 %v78, %v77
    %v85 = vunpack.c.l.b16 %v60
    %v86 = vunpack.c.l.b16 %v61
    %v87 = vunpack.c.l.b16 %v62
    %v88 = vunpack.c.l.b16 %v63
    %v89 = vpack.c.b16 %v86, %v85
    %v90 = vpack.c.b16 %v88, %v87
    %vm93 = vcmask 261120
    %v95 = vsel %vm93, %v79, 0
    %v98 = vsel %vm93, %v80, 0
    %100 = vmatprep.subr.bf16.mxu0 0
    %101 = vmatpush1.bf16.msra.mxu0 %v89
    %102 = vmatprep.subr.bf16.mxu0 0
    %103 = vmatpush1.bf16.msra.mxu0 %v90
    %104 = vmatprep.subr.bf16.mxu0 0
    %105 = vmatpush1.bf16.msra.mxu0 0
    %106 = vmatprep.subr.bf16.mxu0 0
    %107 = vmatpush1.bf16.msra.mxu0 0
    %108 = vmatprep.subr.bf16.mxu0 0
    %109 = vmatpush1.bf16.msra.mxu0 0
    %110 = vmatprep.subr.bf16.mxu0 0
    %111 = vmatpush1.bf16.msra.mxu0 0
    %112 = vmatprep.subr.bf16.mxu0 0
    %113 = vmatpush1.bf16.msra.mxu0 0
    %114 = vmatprep.subr.bf16.mxu0 0
    %115 = vmatpush1.bf16.msra.mxu0 0
    %116 = vmatprep.subr.bf16.mxu0 0
    %117 = vmatpush1.bf16.msra.mxu0 0
    %118 = vmatprep.subr.bf16.mxu0 0
    %119 = vmatpush1.bf16.msra.mxu0 0
    %120 = vmatprep.subr.bf16.mxu0 0
    %121 = vmatpush1.bf16.msra.mxu0 0
    %122 = vmatprep.subr.bf16.mxu0 0
    %123 = vmatpush1.bf16.msra.mxu0 0
    %124 = vmatprep.subr.bf16.mxu0 0
    %125 = vmatpush1.bf16.msra.mxu0 0
    %126 = vmatprep.subr.bf16.mxu0 0
    %127 = vmatpush1.bf16.msra.mxu0 0
    %128 = vmatprep.subr.bf16.mxu0 0
    %129 = vmatpush1.bf16.msra.mxu0 0
    %130 = vmatprep.subr.bf16.mxu0 0
    %131 = vmatpush1.bf16.msra.mxu0 0
    %132 = vmatprep.mubr.bf16.mxu0 0
    %133 = vmatmul.mubr.bf16.gmra.mrb[0].mxu0 %v95
    %v134 = vpop.f32.mrb[0].mxu0
    %v135 = vadd.f32 %v69, %v134
    %v136 = vpop.f32.mrb[0].mxu0
    %v137 = vpop.f32.mrb[0].mxu0
    %v138 = vadd.f32 %v69, %v137
    %v139 = vpop.f32.mrb[0].mxu0
    %140 = vmatprep.mubr.bf16.mxu0 0
    %141 = vmatmul.mubr.bf16.gmra.mrb[0].mxu0 %v98
    %v142 = vpop.f32.mrb[0].mxu0
    %v143 = vadd.f32 %v69, %v142
    %v144 = vpop.f32.mrb[0].mxu0
    %v145 = vpop.f32.mrb[0].mxu0
    %v146 = vadd.f32 %v69, %v145
    %v147 = vpop.f32.mrb[0].mxu0
    %148 = vdwg.mxu0
    %v149 = vmax.f32 %v135, 0.0
    %v150 = vmax.f32 %v138, 0.0
    %v151 = vmax.f32 %v143, 0.0
    %v152 = vmax.f32 %v146, 0.0
    %v153 = vpack.c.bf16 %v150, %v149
    %v154 = vpack.c.bf16 %v152, %v151
    %v155 = vld [vmem:[%s3] sm:$0xf]
    %v156 = vld [vmem:[%s3 + $0x4] sm:$0xf]
    %v157 = vld [vmem:[%s3 + $0x8] sm:$0xf]
    %v158 = vld [vmem:[%s3 + $0xc] sm:$0xf]
    %v159 = vld [vmem:[%s3 + $0x10] sm:$0xf]
    %v160 = vld [vmem:[%s3 + $0x14] sm:$0xf]
    %v161 = vld [vmem:[%s4] sm:$0xff]
    %v162 = vld [vmem:[%s4 + $0x8] sm:$0xff]
    %v163 = vld [vmem:[%s4 + $0x10] sm:$0xff]
    %v164 = vld [vmem:[%s4 + $0x18] sm:$0xff]
    %v171 = vunpack.c.l.b16 %v155
    %v172 = vunpack.c.l.b16 %v156
    %v173 = vunpack.c.l.b16 %v157
    %v174 = vunpack.c.l.b16 %v158
    %v175 = vunpack.c.l.b16 %v159
    %v176 = vunpack.c.l.b16 %v160
    %v177 = vpack.c.b16 %v172, %v171
    %v178 = vpack.c.b16 %v174, %v173
    %v179 = vpack.c.b16 %v176, %v175
    %vm183 = vcmask 392192
    %v185 = vsel %vm183, %v153, 0
    %v188 = vsel %vm183, %v154, 0
    %190 = vmatprep.subr.bf16.mxu0 0
    %191 = vmatpush1.bf16.msra.mxu0 %v177
    %192 = vmatprep.subr.bf16.mxu0 0
    %193 = vmatpush1.bf16.msra.mxu0 %v178
    %194 = vmatprep.subr.bf16.mxu0 0
    %195 = vmatpush1.bf16.msra.mxu0 %v179
    %196 = vmatprep.subr.bf16.mxu0 0
    %197 = vmatpush1.bf16.msra.mxu0 0
    %198 = vmatprep.subr.bf16.mxu0 0
    %199 = vmatpush1.bf16.msra.mxu0 0
    %200 = vmatprep.subr.bf16.mxu0 0
    %201 = vmatpush1.bf16.msra.mxu0 0
    %202 = vmatprep.subr.bf16.mxu0 0
    %203 = vmatpush1.bf16.msra.mxu0 0
    %204 = vmatprep.subr.bf16.mxu0 0
    %205 = vmatpush1.bf16.msra.mxu0 0
    %206 = vmatprep.subr.bf16.mxu0 0
    %207 = vmatpush1.bf16.msra.mxu0 0
    %208 = vmatprep.subr.bf16.mxu0 0
    %209 = vmatpush1.bf16.msra.mxu0 0
    %210 = vmatprep.subr.bf16.mxu0 0
    %211 = vmatpush1.bf16.msra.mxu0 0
    %212 = vmatprep.subr.bf16.mxu0 0
    %213 = vmatpush1.bf16.msra.mxu0 0
    %214 = vmatprep.subr.bf16.mxu0 0
    %215 = vmatpush1.bf16.msra.mxu0 0
    %216 = vmatprep.subr.bf16.mxu0 0
    %217 = vmatpush1.bf16.msra.mxu0 0
    %218 = vmatprep.subr.bf16.mxu0 0
    %219 = vmatpush1.bf16.msra.mxu0 0
    %220 = vmatprep.subr.bf16.mxu0 0
    %221 = vmatpush1.bf16.msra.mxu0 0
    %222 = vmatprep.mubr.bf16.mxu0 0
    %223 = vmatmul.mubr.bf16.gmra.mrb[0].mxu0 %v185
    %v224 = vpop.f32.mrb[0].mxu0
    %v225 = vadd.f32 %v161, %v224
    %v226 = vpop.f32.mrb[0].mxu0
    %v227 = vpop.f32.mrb[0].mxu0
    %v228 = vadd.f32 %v162, %v227
    %v229 = vpop.f32.mrb[0].mxu0
    %230 = vmatprep.mubr.bf16.mxu0 0
    %231 = vmatmul.mubr.bf16.gmra.mrb[0].mxu0 %v188
    %v232 = vpop.f32.mrb[0].mxu0
    %v233 = vadd.f32 %v163, %v232
    %v234 = vpop.f32.mrb[0].mxu0
    %v235 = vpop.f32.mrb[0].mxu0
    %v236 = vadd.f32 %v164, %v235
    %v237 = vpop.f32.mrb[0].mxu0
    %238 = vdwg.mxu0
    %v239 = vld [vmem:[#allocation2] sm:$0xf]
    %v240 = vld [vmem:[#allocation2 + $0x4] sm:$0xf]
    %v241 = vld [vmem:[#allocation2 + $0x8] sm:$0xf]
    %v242 = vld [vmem:[#allocation2 + $0xc] sm:$0xf]
    %v243 = vld [vmem:[#allocation2 + $0x10] sm:$0xf]
    %v244 = vld [vmem:[#allocation2 + $0x14] sm:$0xf]
    %v245 = vld [vmem:[#allocation2 + $0x18] sm:$0xf]
    %v246 = vld [vmem:[#allocation2 + $0x1c] sm:$0xf]
    %v247 = vld [vmem:[#allocation2 + $0x20] sm:$0xf]
    %v248 = vld [vmem:[#allocation2 + $0x24] sm:$0xf]
    %v249 = vld [vmem:[#allocation2 + $0x28] sm:$0xf]
    %v250 = vld [vmem:[#allocation2 + $0x2c] sm:$0xf]
    %v251 = vld [vmem:[#allocation2 + $0x30] sm:$0xf]
    %v252 = vld [vmem:[#allocation2 + $0x34] sm:$0xf]
    %v253 = vld [vmem:[#allocation2 + $0x38] sm:$0xf]
    %v254 = vld [vmem:[#allocation2 + $0x3c] sm:$0xf]
    %v255 = vld [vmem:[#allocation2 + $0x40] sm:$0xf]
    %v256 = vld [vmem:[#allocation2 + $0x44] sm:$0xf]
    %v257 = vld [vmem:[#allocation2 + $0x48] sm:$0xf]
    %v258 = vld [vmem:[#allocation2 + $0x4c] sm:$0xf]
    %v259 = vld [vmem:[#allocation2 + $0x50] sm:$0xf]
    %v260 = vld [vmem:[#allocation2 + $0x54] sm:$0xf]
    %v261 = vld [vmem:[#allocation2 + $0x58] sm:$0xf]
    %v262 = vld [vmem:[#allocation2 + $0x5c] sm:$0xf]
    %v263 = vld [vmem:[#allocation2 + $0x60] sm:$0xf]
    %v264 = vld [vmem:[#allocation2 + $0x64] sm:$0xf]
    %v265 = vld [vmem:[#allocation2 + $0x68] sm:$0xf]
    %v266 = vld [vmem:[#allocation2 + $0x6c] sm:$0xf]
    %v267 = vld [vmem:[%s8] sm:$0xff]
    %v268 = vld [vmem:[%s8 + $0x8] sm:$0xff]
    %v269 = vld [vmem:[%s8 + $0x10] sm:$0xff]
    %v270 = vld [vmem:[%s8 + $0x18] sm:$0xff]
    %v271 = vld [vmem:[%s8 + $0x20] sm:$0xff]
    %v272 = vld [vmem:[%s8 + $0x28] sm:$0xff]
    %v273 = vld [vmem:[%s8 + $0x30] sm:$0xff]
    %v274 = vld [vmem:[%s8 + $0x38] sm:$0xff]
    %v275 = vld [vmem:[%s8 + $0x40] sm:$0xff]
    %v276 = vld [vmem:[%s8 + $0x48] sm:$0xff]
    %v277 = vld [vmem:[%s8 + $0x50] sm:$0xff]
    %v278 = vld [vmem:[%s8 + $0x58] sm:$0xff]
    %v279 = vld [vmem:[%s8 + $0x60] sm:$0xff]
    %v280 = vld [vmem:[%s8 + $0x68] sm:$0xff]
    %v281 = vld [vmem:[%s8 + $0x70] sm:$0xff]
    %v282 = vld [vmem:[%s8 + $0x78] sm:$0xff]
    %v283 = vld [vmem:[%s8 + $0x80] sm:$0xff]
    %v284 = vld [vmem:[%s8 + $0x88] sm:$0xff]
    %v285 = vld [vmem:[%s8 + $0x90] sm:$0xff]
    %v286 = vld [vmem:[%s8 + $0x98] sm:$0xff]
    %v287 = vld [vmem:[%s8 + $0xa0] sm:$0xff]
    %v288 = vld [vmem:[%s8 + $0xa8] sm:$0xff]
    %v289 = vld [vmem:[%s8 + $0xb0] sm:$0xff]
    %v290 = vld [vmem:[%s8 + $0xb8] sm:$0xff]
    %v291 = vld [vmem:[%s8 + $0xc0] sm:$0xff]
    %v292 = vld [vmem:[%s8 + $0xc8] sm:$0xff]
    %v293 = vld [vmem:[%s8 + $0xd0] sm:$0xff]
    %v294 = vld [vmem:[%s8 + $0xd8] sm:$0xff]
    %v295 = vld [vmem:[%s8 + $0xe0] sm:$0xff]
    %v296 = vld [vmem:[%s8 + $0xe8] sm:$0xff]
    %v297 = vld [vmem:[%s8 + $0xf0] sm:$0xff]
    %v298 = vld [vmem:[%s8 + $0xf8] sm:$0xff]
    %v299 = vld [vmem:[%s8 + $0x100] sm:$0x1]
    %v300 = vld [vmem:[%s8 + $0x101] sm:$0x1]
    %v301 = vld [vmem:[%s8 + $0x102] sm:$0x1]
    %v302 = vld [vmem:[%s8 + $0x103] sm:$0x1]
    %v303 = vld [vmem:[%s8 + $0x104] sm:$0x1]
    %v304 = vld [vmem:[%s8 + $0x105] sm:$0x1]
    %v305 = vld [vmem:[%s8 + $0x106] sm:$0x1]
    %v306 = vld [vmem:[%s8 + $0x107] sm:$0x1]
    %v307 = vpack.c.bf16 %v228, %v225
    %v308 = vpack.c.bf16 %v236, %v233
    %v309 = vlaneseq
    %v310 = vshrl.u32 %v309, 7
    %v311 = vsub.s32 0, %v310
    %v312 = vrot.slane %v301, %v311
    %v317 = vunpack.c.l.b16 %v239
    %v318 = vunpack.c.l.b16 %v240
    %v319 = vunpack.c.l.b16 %v241
    %v320 = vunpack.c.l.b16 %v242
    %v321 = vpack.c.b16 %v318, %v317
    %v322 = vpack.c.b16 %v320, %v319
    %v326 = vsel %vm93, %v307, 0
    %v329 = vsel %vm93, %v308, 0
    %331 = vmatprep.subr.bf16.mxu0 0
    %332 = vmatpush1.bf16.msra.mxu0 %v321
    %333 = vmatprep.subr.bf16.mxu0 0
    %334 = vmatpush1.bf16.msra.mxu0 %v322
    %335 = vmatprep.subr.bf16.mxu0 0
    %336 = vmatpush1.bf16.msra.mxu0 0
    %337 = vmatprep.subr.bf16.mxu0 0
    %338 = vmatpush1.bf16.msra.mxu0 0
    %339 = vmatprep.subr.bf16.mxu0 0
    %340 = vmatpush1.bf16.msra.mxu0 0
    %341 = vmatprep.subr.bf16.mxu0 0
    %342 = vmatpush1.bf16.msra.mxu0 0
    %343 = vmatprep.subr.bf16.mxu0 0
    %344 = vmatpush1.bf16.msra.mxu0 0
    %345 = vmatprep.subr.bf16.mxu0 0
    %346 = vmatpush1.bf16.msra.mxu0 0
    %347 = vmatprep.subr.bf16.mxu0 0
    %348 = vmatpush1.bf16.msra.mxu0 0
    %349 = vmatprep.subr.bf16.mxu0 0
    %350 = vmatpush1.bf16.msra.mxu0 0
    %351 = vmatprep.subr.bf16.mxu0 0
    %352 = vmatpush1.bf16.msra.mxu0 0
    %353 = vmatprep.subr.bf16.mxu0 0
    %354 = vmatpush1.bf16.msra.mxu0 0
    %355 = vmatprep.subr.bf16.mxu0 0
    %356 = vmatpush1.bf16.msra.mxu0 0
    %357 = vmatprep.subr.bf16.mxu0 0
    %358 = vmatpush1.bf16.msra.mxu0 0
    %359 = vmatprep.subr.bf16.mxu0 0
    %360 = vmatpush1.bf16.msra.mxu0 0
    %361 = vmatprep.subr.bf16.mxu0 0
    %362 = vmatpush1.bf16.msra.mxu0 0
    %363 = vmatprep.mubr.bf16.mxu0 0
    %364 = vmatmul.mubr.bf16.gmra.mrb[0].mxu0 %v326
    %v365 = vpop.f32.mrb[0].mxu0
    %v366 = vadd.f32 %v312, %v365
    %v367 = vpop.f32.mrb[0].mxu0
    %v368 = vpop.f32.mrb[0].mxu0
    %v369 = vadd.f32 %v312, %v368
    %v370 = vpop.f32.mrb[0].mxu0
    %371 = vmatprep.mubr.bf16.mxu0 0
    %372 = vmatmul.mubr.bf16.gmra.mrb[0].mxu0 %v329
    %v373 = vpop.f32.mrb[0].mxu0
    %v374 = vadd.f32 %v312, %v373
    %v375 = vpop.f32.mrb[0].mxu0
    %v376 = vpop.f32.mrb[0].mxu0
    %v377 = vadd.f32 %v312, %v376
    %v378 = vpop.f32.mrb[0].mxu0
    %379 = vdwg.mxu0
    %v380 = vmul.f32 %v366, %v366
    %v381 = vmul.f32 %v369, %v369
    %v382 = vmul.f32 %v374, %v374
    %v383 = vmul.f32 %v377, %v377
    %384 = vmatprep.subr.mxu0 0.0
    %385 = vmatpush1.msra.mxu0 %v267
    %386 = vmatprep.subr.mxu0 0.0
    %387 = vmatpush1.msra.mxu0 %v268
    %388 = vmatprep.subr.mxu0 0.0
    %389 = vmatpush1.msra.mxu0 %v269
    %390 = vmatprep.subr.mxu0 0.0
    %391 = vmatpush1.msra.mxu0 %v270
    %392 = vmatprep.subr.mxu0 0.0
    %393 = vmatpush1.msra.mxu0 %v271
    %394 = vmatprep.subr.mxu0 0.0
    %395 = vmatpush1.msra.mxu0 %v272
    %396 = vmatprep.subr.mxu0 0.0
    %397 = vmatpush1.msra.mxu0 %v273
    %398 = vmatprep.subr.mxu0 0.0
    %399 = vmatpush1.msra.mxu0 %v274
    %400 = vmatprep.subr.mxu0 0.0
    %401 = vmatpush1.msra.mxu0 %v275
    %402 = vmatprep.subr.mxu0 0.0
    %403 = vmatpush1.msra.mxu0 %v276
    %404 = vmatprep.subr.mxu0 0.0
    %405 = vmatpush1.msra.mxu0 %v277
    %406 = vmatprep.subr.mxu0 0.0
    %407 = vmatpush1.msra.mxu0 %v278
    %408 = vmatprep.subr.mxu0 0.0
    %409 = vmatpush1.msra.mxu0 %v279
    %410 = vmatprep.subr.mxu0 0.0
    %411 = vmatpush1.msra.mxu0 %v280
    %412 = vmatprep.subr.mxu0 0.0
    %413 = vmatpush1.msra.mxu0 %v281
    %414 = vmatprep.subr.mxu0 0.0
    %415 = vmatpush1.msra.mxu0 %v282
    %416 = vmatprep.subr.mxu0 0.0
    %417 = vmatpush1.msra.mxu0 %v283
    %418 = vmatprep.subr.mxu0 0.0
    %419 = vmatpush1.msra.mxu0 %v284
    %420 = vmatprep.subr.mxu0 0.0
    %421 = vmatpush1.msra.mxu0 %v285
    %422 = vmatprep.subr.mxu0 0.0
    %423 = vmatpush1.msra.mxu0 %v286
    %424 = vmatprep.subr.mxu0 0.0
    %425 = vmatpush1.msra.mxu0 %v287
    %426 = vmatprep.subr.mxu0 0.0
    %427 = vmatpush1.msra.mxu0 %v288
    %428 = vmatprep.subr.mxu0 0.0
    %429 = vmatpush1.msra.mxu0 %v289
    %430 = vmatprep.subr.mxu0 0.0
    %431 = vmatpush1.msra.mxu0 %v290
    %432 = vmatprep.subr.mxu0 0.0
    %433 = vmatpush1.msra.mxu0 %v291
    %434 = vmatprep.subr.mxu0 0.0
    %435 = vmatpush1.msra.mxu0 %v292
    %436 = vmatprep.subr.mxu0 0.0
    %437 = vmatpush1.msra.mxu0 %v293
    %438 = vmatprep.subr.mxu0 0.0
    %439 = vmatpush1.msra.mxu0 %v294
    %440 = vmatprep.subr.mxu0 0.0
    %441 = vmatpush1.msra.mxu0 %v295
    %442 = vmatprep.subr.mxu0 0.0
    %443 = vmatpush1.msra.mxu0 %v296
    %444 = vmatprep.subr.mxu0 0.0
    %445 = vmatpush1.msra.mxu0 %v297
    %446 = vmatprep.subr.mxu0 0.0
    %447 = vmatpush1.msra.mxu0 %v298
    %448 = vmatprep.mubr.f32.mxu0 %v380
    %449 = vmatmul.mubr.f32.gmra.mrb[0].mxu0 %v366
    %v450 = vpop.f32.mrb[0].mxu0
    %v451 = vadd.f32 0.0, %v450
    %v452 = vpop.f32.mrb[0].mxu0
    %453 = vmatprep.mubr.f32.mxu0 %v381
    %454 = vmatmul.mubr.f32.gmra.mrb[0].mxu0 %v369
    %v455 = vpop.f32.mrb[0].mxu0
    %v456 = vadd.f32 0.0, %v455
    %v457 = vpop.f32.mrb[0].mxu0
    %458 = vmatprep.mubr.f32.mxu0 %v382
    %459 = vmatmul.mubr.f32.gmra.mrb[0].mxu0 %v374
    %v460 = vpop.f32.mrb[0].mxu0
    %v461 = vadd.f32 0.0, %v460
    %v462 = vpop.f32.mrb[0].mxu0
    %463 = vmatprep.mubr.f32.mxu0 %v383
    %464 = vmatmul.mubr.f32.gmra.mrb[0].mxu0 %v377
    %v465 = vpop.f32.mrb[0].mxu0
    %v466 = vadd.f32 0.0, %v465
    %v467 = vpop.f32.mrb[0].mxu0
    %468 = vdwg.mxu0
    %vm469 = vcmask 523264
    %v470 = vsel %vm469, %v451, -inf
    %471 = vmax.xlane.f32.xlu0 %v470
    %v472 = vpop.xlane.xlu0 %471
    %v473 = vsel %vm469, %v456, -inf
    %474 = vmax.xlane.f32.xlu0 %v473
    %v475 = vpop.xlane.xlu0 %474
    %v476 = vsel %vm469, %v461, -inf
    %477 = vmax.xlane.f32.xlu0 %v476
    %v478 = vpop.xlane.xlu0 %477
    %v479 = vsel %vm469, %v466, -inf
    %480 = vmax.xlane.f32.xlu0 %v479
    %v481 = vpop.xlane.xlu0 %480
    %v482 = vsub.f32 %v451, %v472
    %v483 = vsub.f32 %v456, %v475
    %v484 = vsub.f32 %v461, %v478
    %v485 = vsub.f32 %v466, %v481
    %v486 = vmul.f32 %v482, 1.442695
    %v487 = vpow.pop %v486
    %v488 = vmul.f32 %v483, 1.442695
    %v489 = vpow.pop %v488
    %v490 = vmul.f32 %v484, 1.442695
    %v491 = vpow.pop %v490
    %v492 = vmul.f32 %v485, 1.442695
    %v493 = vpow.pop %v492
    %vm494 = vcmask 1048064
    %v495 = vsel %vm494, %v451, -inf
    %v496 = vsel %vm494, %v456, -inf
    %v497 = vsel %vm494, %v461, -inf
    %v498 = vsel %vm494, %v466, -inf
    %v499 = vmax.f32 %v495, %v496
    %v500 = vmax.f32 %v497, %v498
    %v501 = vmax.f32 %v499, %v500
    %502 = vmax.xlane.f32.xlu0 %v501
    %v503 = vpop.xlane.xlu0 %502
    %v504 = vrot.slane %v503, 4
    %v505 = vmax.f32 %v503, %v504
    %v506 = vrot.slane %v505, 2
    %v507 = vmax.f32 %v505, %v506
    %v508 = vrot.slane %v507, 1
    %v509 = vmax.f32 %v507, %v508
    %s510 = vtos %v509
    %v511 = vstv %s510
    %v512 = vsub.f32 %v451, %v511
    %v513 = vsub.f32 %v456, %v511
    %v514 = vsub.f32 %v461, %v511
    %v515 = vsub.f32 %v466, %v511
    %v516 = vmul.f32 %v512, 1.442695
    %v517 = vpow.pop %v516
    %v518 = vmul.f32 %v513, 1.442695
    %v519 = vpow.pop %v518
    %v520 = vmul.f32 %v514, 1.442695
    %v521 = vpow.pop %v520
    %v522 = vmul.f32 %v515, 1.442695
    %v523 = vpow.pop %v522
    %526 = vrot.lane.b32.xlu0 %v517, 64
    %v527 = vpop.permute.xlu0 %526
    %528 = vrot.lane.b32.xlu0 %v519, 64
    %v529 = vpop.permute.xlu0 %528
    %532 = vxpose.xlu0.b32.start [1/16] %v527, 128
    %533 = vxpose.xlu0.b32.cont [2/16] %v529, 128
    %534 = vxpose.xlu0.b32.cont [3/16] 0.0, 128
    %535 = vxpose.xlu0.b32.cont [4/16] 0.0, 128
    %536 = vxpose.xlu0.b32.cont [5/16] 0.0, 128
    %537 = vxpose.xlu0.b32.cont [6/16] 0.0, 128
    %538 = vxpose.xlu0.b32.cont [7/16] 0.0, 128
    %539 = vxpose.xlu0.b32.cont [8/16] 0.0, 128
    %540 = vxpose.xlu0.b32.cont [9/16] 0.0, 128
    %541 = vxpose.xlu0.b32.cont [10/16] 0.0, 128
    %542 = vxpose.xlu0.b32.cont [11/16] 0.0, 128
    %543 = vxpose.xlu0.b32.cont [12/16] 0.0, 128
    %544 = vxpose.xlu0.b32.cont [13/16] 0.0, 128
    %545 = vxpose.xlu0.b32.cont [14/16] 0.0, 128
    %546 = vxpose.xlu0.b32.cont [15/16] 0.0, 128
    %547 = vxpose.xlu0.b32.end [16/16] 0.0, 128
    %v548 = vpop.trf.xlu0
    %v549 = vpop.trf.xlu0
    %v550 = vpop.trf.xlu0
    %v551 = vpop.trf.xlu0
    %v552 = vpop.trf.xlu0
    %v553 = vpop.trf.xlu0
    %v554 = vpop.trf.xlu0
    %v555 = vpop.trf.xlu0
    %v556 = vpop.trf.xlu0
    %v557 = vpop.trf.xlu0
    %v558 = vpop.trf.xlu0
    %v559 = vpop.trf.xlu0
    %v560 = vpop.trf.xlu0
    %v561 = vpop.trf.xlu0
    %v562 = vpop.trf.xlu0
    %v563 = vpop.trf.xlu0
    %566 = vrot.lane.b32.xlu0 %v366, 64
    %v567 = vpop.permute.xlu0 %566
    %568 = vrot.lane.b32.xlu0 %v369, 64
    %v569 = vpop.permute.xlu0 %568
    %vm572 = vcmask 130048
    %v574 = vsel %vm572, %v548, 0
    %v577 = vsel %vm572, %v549, 0
    %v580 = vsel %vm572, %v550, 0
    %v583 = vsel %vm572, %v551, 0
    %v586 = vsel %vm572, %v552, 0
    %v589 = vsel %vm572, %v553, 0
    %v592 = vsel %vm572, %v554, 0
    %v595 = vsel %vm572, %v555, 0
    %597 = vmatprep.subr.mxu0 0.0
    %598 = vmatpush1.msra.mxu0 %v567
    %599 = vmatprep.subr.mxu0 0.0
    %600 = vmatpush1.msra.mxu0 %v569
    %601 = vmatprep.subr.mxu0 0.0
    %602 = vmatpush1.msra.mxu0 0.0
    %603 = vmatprep.subr.mxu0 0.0
    %604 = vmatpush1.msra.mxu0 0.0
    %605 = vmatprep.subr.mxu0 0.0
    %606 = vmatpush1.msra.mxu0 0.0
    %607 = vmatprep.subr.mxu0 0.0
    %608 = vmatpush1.msra.mxu0 0.0
    %609 = vmatprep.subr.mxu0 0.0
    %610 = vmatpush1.msra.mxu0 0.0
    %611 = vmatprep.subr.mxu0 0.0
    %612 = vmatpush1.msra.mxu0 0.0
    %613 = vmatprep.subr.mxu0 0.0
    %614 = vmatpush1.msra.mxu0 0.0
    %615 = vmatprep.subr.mxu0 0.0
    %616 = vmatpush1.msra.mxu0 0.0
    %617 = vmatprep.subr.mxu0 0.0
    %618 = vmatpush1.msra.mxu0 0.0
    %619 = vmatprep.subr.mxu0 0.0
    %620 = vmatpush1.msra.mxu0 0.0
    %621 = vmatprep.subr.mxu0 0.0
    %622 = vmatpush1.msra.mxu0 0.0
    %623 = vmatprep.subr.mxu0 0.0
    %624 = vmatpush1.msra.mxu0 0.0
    %625 = vmatprep.subr.mxu0 0.0
    %626 = vmatpush1.msra.mxu0 0.0
    %627 = vmatprep.subr.mxu0 0.0
    %628 = vmatpush1.msra.mxu0 0.0
    %629 = vmatprep.subr.mxu0 0.0
    %630 = vmatpush1.msra.mxu0 0.0
    %631 = vmatprep.subr.mxu0 0.0
    %632 = vmatpush1.msra.mxu0 0.0
    %633 = vmatprep.subr.mxu0 0.0
    %634 = vmatpush1.msra.mxu0 0.0
    %635 = vmatprep.subr.mxu0 0.0
    %636 = vmatpush1.msra.mxu0 0.0
    %637 = vmatprep.subr.mxu0 0.0
    %638 = vmatpush1.msra.mxu0 0.0
    %639 = vmatprep.subr.mxu0 0.0
    %640 = vmatpush1.msra.mxu0 0.0
    %641 = vmatprep.subr.mxu0 0.0
    %642 = vmatpush1.msra.mxu0 0.0
    %643 = vmatprep.subr.mxu0 0.0
    %644 = vmatpush1.msra.mxu0 0.0
    %645 = vmatprep.subr.mxu0 0.0
    %646 = vmatpush1.msra.mxu0 0.0
    %647 = vmatprep.subr.mxu0 0.0
    %648 = vmatpush1.msra.mxu0 0.0
    %649 = vmatprep.subr.mxu0 0.0
    %650 = vmatpush1.msra.mxu0 0.0
    %651 = vmatprep.subr.mxu0 0.0
    %652 = vmatpush1.msra.mxu0 0.0
    %653 = vmatprep.subr.mxu0 0.0
    %654 = vmatpush1.msra.mxu0 0.0
    %655 = vmatprep.subr.mxu0 0.0
    %656 = vmatpush1.msra.mxu0 0.0
    %657 = vmatprep.subr.mxu0 0.0
    %658 = vmatpush1.msra.mxu0 0.0
    %659 = vmatprep.subr.mxu0 0.0
    %660 = vmatpush1.msra.mxu0 0.0
    %661 = vmatprep.mubr.f32.mxu0 0.0
    %662 = vmatmul.mubr.f32.gmra.mrb[0].mxu0 %v574
    %v663 = vpop.f32.mrb[0].mxu0
    %v664 = vadd.f32 0.0, %v663
    %v665 = vpop.f32.mrb[0].mxu0
    %666 = vmatprep.mubr.f32.mxu0 0.0
    %667 = vmatmul.mubr.f32.gmra.mrb[0].mxu0 %v577
    %v668 = vpop.f32.mrb[0].mxu0
    %v669 = vadd.f32 0.0, %v668
    %v670 = vpop.f32.mrb[0].mxu0
    %671 = vmatprep.mubr.f32.mxu0 0.0
    %672 = vmatmul.mubr.f32.gmra.mrb[0].mxu0 %v580
    %v673 = vpop.f32.mrb[0].mxu0
    %v674 = vadd.f32 0.0, %v673
    %v675 = vpop.f32.mrb[0].mxu0
    %676 = vmatprep.mubr.f32.mxu0 0.0
    %677 = vmatmul.mubr.f32.gmra.mrb[0].mxu0 %v583
    %v678 = vpop.f32.mrb[0].mxu0
    %v679 = vadd.f32 0.0, %v678
    %v680 = vpop.f32.mrb[0].mxu0
    %681 = vmatprep.mubr.f32.mxu0 0.0
    %682 = vmatmul.mubr.f32.gmra.mrb[0].mxu0 %v586
    %v683 = vpop.f32.mrb[0].mxu0
    %v684 = vadd.f32 0.0, %v683
    %v685 = vpop.f32.mrb[0].mxu0
    %686 = vmatprep.mubr.f32.mxu0 0.0
    %687 = vmatmul.mubr.f32.gmra.mrb[0].mxu0 %v589
    %v688 = vpop.f32.mrb[0].mxu0
    %v689 = vadd.f32 0.0, %v688
    %v690 = vpop.f32.mrb[0].mxu0
    %691 = vmatprep.mubr.f32.mxu0 0.0
    %692 = vmatmul.mubr.f32.gmra.mrb[0].mxu0 %v592
    %v693 = vpop.f32.mrb[0].mxu0
    %v694 = vadd.f32 0.0, %v693
    %v695 = vpop.f32.mrb[0].mxu0
    %696 = vmatprep.mubr.f32.mxu0 0.0
    %697 = vmatmul.mubr.f32.gmra.mrb[0].mxu0 %v595
    %v698 = vpop.f32.mrb[0].mxu0
    %v699 = vadd.f32 0.0, %v698
    %v700 = vpop.f32.mrb[0].mxu0
    %701 = vdwg.mxu0
    %v702 = vmul.f32 %v664, %v48
    %v703 = vmul.f32 %v669, %v49
    %v704 = vmul.f32 %v674, %v50
    %v705 = vmul.f32 %v679, %v51
    %v706 = vmul.f32 %v684, %v52
    %v707 = vmul.f32 %v689, %v53
    %v708 = vmul.f32 %v694, %v54
    %v709 = vmul.f32 %v699, %v55
    %v711 = vsel %vm469, %v487, 0
    %v714 = vsel %vm469, %v489, 0
    %716 = vmatprep.subr.mxu0 0.0
    %717 = vmatpush1.msra.mxu0 %v702
    %718 = vmatprep.subr.mxu0 0.0
    %719 = vmatpush1.msra.mxu0 %v703
    %720 = vmatprep.subr.mxu0 0.0
    %721 = vmatpush1.msra.mxu0 %v704
    %722 = vmatprep.subr.mxu0 0.0
    %723 = vmatpush1.msra.mxu0 %v705
    %724 = vmatprep.subr.mxu0 0.0
    %725 = vmatpush1.msra.mxu0 %v706
    %726 = vmatprep.subr.mxu0 0.0
    %727 = vmatpush1.msra.mxu0 %v707
    %728 = vmatprep.subr.mxu0 0.0
    %729 = vmatpush1.msra.mxu0 %v708
    %730 = vmatprep.subr.mxu0 0.0
    %731 = vmatpush1.msra.mxu0 %v709
    %732 = vmatprep.subr.mxu0 0.0
    %733 = vmatpush1.msra.mxu0 0.0
    %734 = vmatprep.subr.mxu0 0.0
    %735 = vmatpush1.msra.mxu0 0.0
    %736 = vmatprep.subr.mxu0 0.0
    %737 = vmatpush1.msra.mxu0 0.0
    %738 = vmatprep.subr.mxu0 0.0
    %739 = vmatpush1.msra.mxu0 0.0
    %740 = vmatprep.subr.mxu0 0.0
    %741 = vmatpush1.msra.mxu0 0.0
    %742 = vmatprep.subr.mxu0 0.0
    %743 = vmatpush1.msra.mxu0 0.0
    %744 = vmatprep.subr.mxu0 0.0
    %745 = vmatpush1.msra.mxu0 0.0
    %746 = vmatprep.subr.mxu0 0.0
    %747 = vmatpush1.msra.mxu0 0.0
    %748 = vmatprep.subr.mxu0 0.0
    %749 = vmatpush1.msra.mxu0 0.0
    %750 = vmatprep.subr.mxu0 0.0
    %751 = vmatpush1.msra.mxu0 0.0
    %752 = vmatprep.subr.mxu0 0.0
    %753 = vmatpush1.msra.mxu0 0.0
    %754 = vmatprep.subr.mxu0 0.0
    %755 = vmatpush1.msra.mxu0 0.0
    %756 = vmatprep.subr.mxu0 0.0
    %757 = vmatpush1.msra.mxu0 0.0
    %758 = vmatprep.subr.mxu0 0.0
    %759 = vmatpush1.msra.mxu0 0.0
    %760 = vmatprep.subr.mxu0 0.0
    %761 = vmatpush1.msra.mxu0 0.0
    %762 = vmatprep.subr.mxu0 0.0
    %763 = vmatpush1.msra.mxu0 0.0
    %764 = vmatprep.subr.mxu0 0.0
    %765 = vmatpush1.msra.mxu0 0.0
    %766 = vmatprep.subr.mxu0 0.0
    %767 = vmatpush1.msra.mxu0 0.0
    %768 = vmatprep.subr.mxu0 0.0
    %769 = vmatpush1.msra.mxu0 0.0
    %770 = vmatprep.subr.mxu0 0.0
    %771 = vmatpush1.msra.mxu0 0.0
    %772 = vmatprep.subr.mxu0 0.0
    %773 = vmatpush1.msra.mxu0 0.0
    %774 = vmatprep.subr.mxu0 0.0
    %775 = vmatpush1.msra.mxu0 0.0
    %776 = vmatprep.subr.mxu0 0.0
    %777 = vmatpush1.msra.mxu0 0.0
    %778 = vmatprep.subr.mxu0 0.0
    %779 = vmatpush1.msra.mxu0 0.0
    %780 = vmatprep.mubr.f32.mxu0 0.0
    %781 = vmatmul.mubr.f32.gmra.mrb[0].mxu0 %v711
    %v782 = vpop.f32.mrb[0].mxu0
    %v783 = vadd.f32 0.0, %v782
    %v784 = vpop.f32.mrb[0].mxu0
    %785 = vmatprep.mubr.f32.mxu0 0.0
    %786 = vmatmul.mubr.f32.gmra.mrb[0].mxu0 %v714
    %v787 = vpop.f32.mrb[0].mxu0
    %v788 = vadd.f32 0.0, %v787
    %v789 = vpop.f32.mrb[0].mxu0
    %790 = vdwg.mxu0
    %793 = vrot.lane.b32.xlu0 %v521, 64
    %v794 = vpop.permute.xlu0 %793
    %795 = vrot.lane.b32.xlu0 %v523, 64
    %v796 = vpop.permute.xlu0 %795
    %799 = vxpose.xlu0.b32.start [1/16] %v794, 128
    %800 = vxpose.xlu0.b32.cont [2/16] %v796, 128
    %801 = vxpose.xlu0.b32.cont [3/16] 0.0, 128
    %802 = vxpose.xlu0.b32.cont [4/16] 0.0, 128
    %803 = vxpose.xlu0.b32.cont [5/16] 0.0, 128
    %804 = vxpose.xlu0.b32.cont [6/16] 0.0, 128
    %805 = vxpose.xlu0.b32.cont [7/16] 0.0, 128
    %806 = vxpose.xlu0.b32.cont [8/16] 0.0, 128
    %807 = vxpose.xlu0.b32.cont [9/16] 0.0, 128
    %808 = vxpose.xlu0.b32.cont [10/16] 0.0, 128
    %809 = vxpose.xlu0.b32.cont [11/16] 0.0, 128
    %810 = vxpose.xlu0.b32.cont [12/16] 0.0, 128
    %811 = vxpose.xlu0.b32.cont [13/16] 0.0, 128
    %812 = vxpose.xlu0.b32.cont [14/16] 0.0, 128
    %813 = vxpose.xlu0.b32.cont [15/16] 0.0, 128
    %814 = vxpose.xlu0.b32.end [16/16] 0.0, 128
    %v815 = vpop.trf.xlu0
    %v816 = vpop.trf.xlu0
    %v817 = vpop.trf.xlu0
    %v818 = vpop.trf.xlu0
    %v819 = vpop.trf.xlu0
    %v820 = vpop.trf.xlu0
    %v821 = vpop.trf.xlu0
    %v822 = vpop.trf.xlu0
    %v823 = vpop.trf.xlu0
    %v824 = vpop.trf.xlu0
    %v825 = vpop.trf.xlu0
    %v826 = vpop.trf.xlu0
    %v827 = vpop.trf.xlu0
    %v828 = vpop.trf.xlu0
    %v829 = vpop.trf.xlu0
    %v830 = vpop.trf.xlu0
    %833 = vrot.lane.b32.xlu0 %v374, 64
    %v834 = vpop.permute.xlu0 %833
    %835 = vrot.lane.b32.xlu0 %v377, 64
    %v836 = vpop.permute.xlu0 %835
    %v840 = vsel %vm572, %v815, 0
    %v843 = vsel %vm572, %v816, 0
    %v846 = vsel %vm572, %v817, 0
    %v849 = vsel %vm572, %v818, 0
    %v852 = vsel %vm572, %v819, 0
    %v855 = vsel %vm572, %v820, 0
    %v858 = vsel %vm572, %v821, 0
    %v861 = vsel %vm572, %v822, 0
    %863 = vmatprep.subr.mxu0 0.0
    %864 = vmatpush1.msra.mxu0 %v834
    %865 = vmatprep.subr.mxu0 0.0
    %866 = vmatpush1.msra.mxu0 %v836
    %867 = vmatprep.subr.mxu0 0.0
    %868 = vmatpush1.msra.mxu0 0.0
    %869 = vmatprep.subr.mxu0 0.0
    %870 = vmatpush1.msra.mxu0 0.0
    %871 = vmatprep.subr.mxu0 0.0
    %872 = vmatpush1.msra.mxu0 0.0
    %873 = vmatprep.subr.mxu0 0.0
    %874 = vmatpush1.msra.mxu0 0.0
    %875 = vmatprep.subr.mxu0 0.0
    %876 = vmatpush1.msra.mxu0 0.0
    %877 = vmatprep.subr.mxu0 0.0
    %878 = vmatpush1.msra.mxu0 0.0
    %879 = vmatprep.subr.mxu0 0.0
    %880 = vmatpush1.msra.mxu0 0.0
    %881 = vmatprep.subr.mxu0 0.0
    %882 = vmatpush1.msra.mxu0 0.0
    %883 = vmatprep.subr.mxu0 0.0
    %884 = vmatpush1.msra.mxu0 0.0
    %885 = vmatprep.subr.mxu0 0.0
    %886 = vmatpush1.msra.mxu0 0.0
    %887 = vmatprep.subr.mxu0 0.0
    %888 = vmatpush1.msra.mxu0 0.0
    %889 = vmatprep.subr.mxu0 0.0
    %890 = vmatpush1.msra.mxu0 0.0
    %891 = vmatprep.subr.mxu0 0.0
    %892 = vmatpush1.msra.mxu0 0.0
    %893 = vmatprep.subr.mxu0 0.0
    %894 = vmatpush1.msra.mxu0 0.0
    %895 = vmatprep.subr.mxu0 0.0
    %896 = vmatpush1.msra.mxu0 0.0
    %897 = vmatprep.subr.mxu0 0.0
    %898 = vmatpush1.msra.mxu0 0.0
    %899 = vmatprep.subr.mxu0 0.0
    %900 = vmatpush1.msra.mxu0 0.0
    %901 = vmatprep.subr.mxu0 0.0
    %902 = vmatpush1.msra.mxu0 0.0
    %903 = vmatprep.subr.mxu0 0.0
    %904 = vmatpush1.msra.mxu0 0.0
    %905 = vmatprep.subr.mxu0 0.0
    %906 = vmatpush1.msra.mxu0 0.0
    %907 = vmatprep.subr.mxu0 0.0
    %908 = vmatpush1.msra.mxu0 0.0
    %909 = vmatprep.subr.mxu0 0.0
    %910 = vmatpush1.msra.mxu0 0.0
    %911 = vmatprep.subr.mxu0 0.0
    %912 = vmatpush1.msra.mxu0 0.0
    %913 = vmatprep.subr.mxu0 0.0
    %914 = vmatpush1.msra.mxu0 0.0
    %915 = vmatprep.subr.mxu0 0.0
    %916 = vmatpush1.msra.mxu0 0.0
    %917 = vmatprep.subr.mxu0 0.0
    %918 = vmatpush1.msra.mxu0 0.0
    %919 = vmatprep.subr.mxu0 0.0
    %920 = vmatpush1.msra.mxu0 0.0
    %921 = vmatprep.subr.mxu0 0.0
    %922 = vmatpush1.msra.mxu0 0.0
    %923 = vmatprep.subr.mxu0 0.0
    %924 = vmatpush1.msra.mxu0 0.0
    %925 = vmatprep.subr.mxu0 0.0
    %926 = vmatpush1.msra.mxu0 0.0
    %927 = vmatprep.mubr.f32.mxu0 0.0
    %928 = vmatmul.mubr.f32.gmra.mrb[0].mxu0 %v840
    %v929 = vpop.f32.mrb[0].mxu0
    %v930 = vadd.f32 0.0, %v929
    %v931 = vpop.f32.mrb[0].mxu0
    %932 = vmatprep.mubr.f32.mxu0 0.0
    %933 = vmatmul.mubr.f32.gmra.mrb[0].mxu0 %v843
    %v934 = vpop.f32.mrb[0].mxu0
    %v935 = vadd.f32 0.0, %v934
    %v936 = vpop.f32.mrb[0].mxu0
    %937 = vmatprep.mubr.f32.mxu0 0.0
    %938 = vmatmul.mubr.f32.gmra.mrb[0].mxu0 %v846
    %v939 = vpop.f32.mrb[0].mxu0
    %v940 = vadd.f32 0.0, %v939
    %v941 = vpop.f32.mrb[0].mxu0
    %942 = vmatprep.mubr.f32.mxu0 0.0
    %943 = vmatmul.mubr.f32.gmra.mrb[0].mxu0 %v849
    %v944 = vpop.f32.mrb[0].mxu0
    %v945 = vadd.f32 0.0, %v944
    %v946 = vpop.f32.mrb[0].mxu0
    %947 = vmatprep.mubr.f32.mxu0 0.0
    %948 = vmatmul.mubr.f32.gmra.mrb[0].mxu0 %v852
    %v949 = vpop.f32.mrb[0].mxu0
    %v950 = vadd.f32 0.0, %v949
    %v951 = vpop.f32.mrb[0].mxu0
    %952 = vmatprep.mubr.f32.mxu0 0.0
    %953 = vmatmul.mubr.f32.gmra.mrb[0].mxu0 %v855
    %v954 = vpop.f32.mrb[0].mxu0
    %v955 = vadd.f32 0.0, %v954
    %v956 = vpop.f32.mrb[0].mxu0
    %957 = vmatprep.mubr.f32.mxu0 0.0
    %958 = vmatmul.mubr.f32.gmra.mrb[0].mxu0 %v858
    %v959 = vpop.f32.mrb[0].mxu0
    %v960 = vadd.f32 0.0, %v959
    %v961 = vpop.f32.mrb[0].mxu0
    %962 = vmatprep.mubr.f32.mxu0 0.0
    %963 = vmatmul.mubr.f32.gmra.mrb[0].mxu0 %v861
    %v964 = vpop.f32.mrb[0].mxu0
    %v965 = vadd.f32 0.0, %v964
    %v966 = vpop.f32.mrb[0].mxu0
    %967 = vdwg.mxu0
    %v968 = vmul.f32 %v930, %v48
    %v969 = vmul.f32 %v935, %v49
    %v970 = vmul.f32 %v940, %v50
    %v971 = vmul.f32 %v945, %v51
    %v972 = vmul.f32 %v950, %v52
    %v973 = vmul.f32 %v955, %v53
    %v974 = vmul.f32 %v960, %v54
    %v975 = vmul.f32 %v965, %v55
    %v977 = vsel %vm469, %v491, 0
    %v980 = vsel %vm469, %v493, 0
    %982 = vmatprep.subr.mxu0 0.0
    %983 = vmatpush1.msra.mxu0 %v968
    %984 = vmatprep.subr.mxu0 0.0
    %985 = vmatpush1.msra.mxu0 %v969
    %986 = vmatprep.subr.mxu0 0.0
    %987 = vmatpush1.msra.mxu0 %v970
    %988 = vmatprep.subr.mxu0 0.0
    %989 = vmatpush1.msra.mxu0 %v971
    %990 = vmatprep.subr.mxu0 0.0
    %991 = vmatpush1.msra.mxu0 %v972
    %992 = vmatprep.subr.mxu0 0.0
    %993 = vmatpush1.msra.mxu0 %v973
    %994 = vmatprep.subr.mxu0 0.0
    %995 = vmatpush1.msra.mxu0 %v974
    %996 = vmatprep.subr.mxu0 0.0
    %997 = vmatpush1.msra.mxu0 %v975
    %998 = vmatprep.subr.mxu0 0.0
    %999 = vmatpush1.msra.mxu0 0.0
    %1000 = vmatprep.subr.mxu0 0.0
    %1001 = vmatpush1.msra.mxu0 0.0
    %1002 = vmatprep.subr.mxu0 0.0
    %1003 = vmatpush1.msra.mxu0 0.0
    %1004 = vmatprep.subr.mxu0 0.0
    %1005 = vmatpush1.msra.mxu0 0.0
    %1006 = vmatprep.subr.mxu0 0.0
    %1007 = vmatpush1.msra.mxu0 0.0
    %1008 = vmatprep.subr.mxu0 0.0
    %1009 = vmatpush1.msra.mxu0 0.0
    %1010 = vmatprep.subr.mxu0 0.0
    %1011 = vmatpush1.msra.mxu0 0.0
    %1012 = vmatprep.subr.mxu0 0.0
    %1013 = vmatpush1.msra.mxu0 0.0
    %1014 = vmatprep.subr.mxu0 0.0
    %1015 = vmatpush1.msra.mxu0 0.0
    %1016 = vmatprep.subr.mxu0 0.0
    %1017 = vmatpush1.msra.mxu0 0.0
    %1018 = vmatprep.subr.mxu0 0.0
    %1019 = vmatpush1.msra.mxu0 0.0
    %1020 = vmatprep.subr.mxu0 0.0
    %1021 = vmatpush1.msra.mxu0 0.0
    %1022 = vmatprep.subr.mxu0 0.0
    %1023 = vmatpush1.msra.mxu0 0.0
    %1024 = vmatprep.subr.mxu0 0.0
    %1025 = vmatpush1.msra.mxu0 0.0
    %1026 = vmatprep.subr.mxu0 0.0
    %1027 = vmatpush1.msra.mxu0 0.0
    %1028 = vmatprep.subr.mxu0 0.0
    %1029 = vmatpush1.msra.mxu0 0.0
    %1030 = vmatprep.subr.mxu0 0.0
    %1031 = vmatpush1.msra.mxu0 0.0
    %1032 = vmatprep.subr.mxu0 0.0
    %1033 = vmatpush1.msra.mxu0 0.0
    %1034 = vmatprep.subr.mxu0 0.0
    %1035 = vmatpush1.msra.mxu0 0.0
    %1036 = vmatprep.subr.mxu0 0.0
    %1037 = vmatpush1.msra.mxu0 0.0
    %1038 = vmatprep.subr.mxu0 0.0
    %1039 = vmatpush1.msra.mxu0 0.0
    %1040 = vmatprep.subr.mxu0 0.0
    %1041 = vmatpush1.msra.mxu0 0.0
    %1042 = vmatprep.subr.mxu0 0.0
    %1043 = vmatpush1.msra.mxu0 0.0
    %1044 = vmatprep.subr.mxu0 0.0
    %1045 = vmatpush1.msra.mxu0 0.0
    %1046 = vmatprep.mubr.f32.mxu0 0.0
    %1047 = vmatmul.mubr.f32.gmra.mrb[0].mxu0 %v977
    %v1048 = vpop.f32.mrb[0].mxu0
    %v1049 = vadd.f32 0.0, %v1048
    %v1050 = vpop.f32.mrb[0].mxu0
    %1051 = vmatprep.mubr.f32.mxu0 0.0
    %1052 = vmatmul.mubr.f32.gmra.mrb[0].mxu0 %v980
    %v1053 = vpop.f32.mrb[0].mxu0
    %v1054 = vadd.f32 0.0, %v1053
    %v1055 = vpop.f32.mrb[0].mxu0
    %1056 = vdwg.mxu0
    %v1057 = vadd.f32 %v783, 1e-06
    %v1058 = vadd.f32 %v788, 1e-06
    %v1059 = vadd.f32 %v1049, 1e-06
    %v1060 = vadd.f32 %v1054, 1e-06
    %v1061 = vrcp.pop %v1057
    %v1062 = vrcp.pop %v1058
    %v1063 = vrcp.pop %v1059
    %v1064 = vrcp.pop %v1060
    %1069 = vrot.lane.b32.xlu0 %v1061, 96
    %v1070 = vpop.permute.xlu0 %1069
    %1071 = vrot.lane.b32.xlu0 %v1062, 96
    %v1072 = vpop.permute.xlu0 %1071
    %1073 = vrot.lane.b32.xlu0 %v1063, 96
    %v1074 = vpop.permute.xlu0 %1073
    %1075 = vrot.lane.b32.xlu0 %v1064, 96
    %v1076 = vpop.permute.xlu0 %1075
    %v1081 = vmul.f32 %v783, %v1070
    %v1082 = vmul.f32 %v788, %v1072
    %v1083 = vmul.f32 %v1049, %v1074
    %v1084 = vmul.f32 %v1054, %v1076
    %v1085 = vpack.c.bf16 %v1082, %v1081
    %v1086 = vpack.c.bf16 %v1084, %v1083
    %v1087 = vlaneseq
    %v1088 = vshrl.u32 %v1087, 7
    %v1089 = vsub.s32 0, %v1088
    %v1090 = vrot.slane %v302, %v1089
    %v1095 = vunpack.c.l.b16 %v243
    %v1096 = vunpack.c.l.b16 %v244
    %v1097 = vunpack.c.l.b16 %v245
    %v1098 = vunpack.c.l.b16 %v246
    %v1099 = vpack.c.b16 %v1096, %v1095
    %v1100 = vpack.c.b16 %v1098, %v1097
    %v1104 = vsel %vm93, %v1085, 0
    %v1107 = vsel %vm93, %v1086, 0
    %1109 = vmatprep.subr.bf16.mxu0 0
    %1110 = vmatpush1.bf16.msra.mxu0 %v1099
    %1111 = vmatprep.subr.bf16.mxu0 0
    %1112 = vmatpush1.bf16.msra.mxu0 %v1100
    %1113 = vmatprep.subr.bf16.mxu0 0
    %1114 = vmatpush1.bf16.msra.mxu0 0
    %1115 = vmatprep.subr.bf16.mxu0 0
    %1116 = vmatpush1.bf16.msra.mxu0 0
    %1117 = vmatprep.subr.bf16.mxu0 0
    %1118 = vmatpush1.bf16.msra.mxu0 0
    %1119 = vmatprep.subr.bf16.mxu0 0
    %1120 = vmatpush1.bf16.msra.mxu0 0
    %1121 = vmatprep.subr.bf16.mxu0 0
    %1122 = vmatpush1.bf16.msra.mxu0 0
    %1123 = vmatprep.subr.bf16.mxu0 0
    %1124 = vmatpush1.bf16.msra.mxu0 0
    %1125 = vmatprep.subr.bf16.mxu0 0
    %1126 = vmatpush1.bf16.msra.mxu0 0
    %1127 = vmatprep.subr.bf16.mxu0 0
    %1128 = vmatpush1.bf16.msra.mxu0 0
    %1129 = vmatprep.subr.bf16.mxu0 0
    %1130 = vmatpush1.bf16.msra.mxu0 0
    %1131 = vmatprep.subr.bf16.mxu0 0
    %1132 = vmatpush1.bf16.msra.mxu0 0
    %1133 = vmatprep.subr.bf16.mxu0 0
    %1134 = vmatpush1.bf16.msra.mxu0 0
    %1135 = vmatprep.subr.bf16.mxu0 0
    %1136 = vmatpush1.bf16.msra.mxu0 0
    %1137 = vmatprep.subr.bf16.mxu0 0
    %1138 = vmatpush1.bf16.msra.mxu0 0
    %1139 = vmatprep.subr.bf16.mxu0 0
    %1140 = vmatpush1.bf16.msra.mxu0 0
    %1141 = vmatprep.mubr.bf16.mxu0 0
    %1142 = vmatmul.mubr.bf16.gmra.mrb[0].mxu0 %v1104
    %v1143 = vpop.f32.mrb[0].mxu0
    %v1144 = vadd.f32 %v1090, %v1143
    %v1145 = vpop.f32.mrb[0].mxu0
    %v1146 = vpop.f32.mrb[0].mxu0
    %v1147 = vadd.f32 %v1090, %v1146
    %v1148 = vpop.f32.mrb[0].mxu0
    %1149 = vmatprep.mubr.bf16.mxu0 0
    %1150 = vmatmul.mubr.bf16.gmra.mrb[0].mxu0 %v1107
    %v1151 = vpop.f32.mrb[0].mxu0
    %v1152 = vadd.f32 %v1090, %v1151
    %v1153 = vpop.f32.mrb[0].mxu0
    %v1154 = vpop.f32.mrb[0].mxu0
    %v1155 = vadd.f32 %v1090, %v1154
    %v1156 = vpop.f32.mrb[0].mxu0
    %1157 = vdwg.mxu0
    %v1158 = vadd.f32 %v225, %v1144
    %v1159 = vadd.f32 %v228, %v1147
    %v1160 = vadd.f32 %v233, %v1152
    %v1161 = vadd.f32 %v236, %v1155
    %v1162 = vsel %vm93, %v1158, 0.0
    %1163 = vadd.xlane.f32.xlu0 %v1162
    %v1164 = vpop.xlane.xlu0 %1163
    %v1165 = vsel %vm93, %v1159, 0.0
    %1166 = vadd.xlane.f32.xlu0 %v1165
    %v1167 = vpop.xlane.xlu0 %1166
    %v1168 = vsel %vm93, %v1160, 0.0
    %1169 = vadd.xlane.f32.xlu0 %v1168
    %v1170 = vpop.xlane.xlu0 %1169
    %v1171 = vsel %vm93, %v1161, 0.0
    %1172 = vadd.xlane.f32.xlu0 %v1171
    %v1173 = vpop.xlane.xlu0 %1172
    %v1174 = vmul.f32 %v1164, 0.03125
    %v1175 = vmul.f32 %v1167, 0.03125
    %v1176 = vmul.f32 %v1170, 0.03125
    %v1177 = vmul.f32 %v1173, 0.03125
    %v1178 = vmul.f32 %v1158, %v1158
    %v1179 = vmul.f32 %v1159, %v1159
    %v1180 = vmul.f32 %v1160, %v1160
    %v1181 = vmul.f32 %v1161, %v1161
    %v1182 = vsel %vm93, %v1178, 0.0
    %1183 = vadd.xlane.f32.xlu0 %v1182
    %v1184 = vpop.xlane.xlu0 %1183
    %v1185 = vsel %vm93, %v1179, 0.0
    %1186 = vadd.xlane.f32.xlu0 %v1185
    %v1187 = vpop.xlane.xlu0 %1186
    %v1188 = vsel %vm93, %v1180, 0.0
    %1189 = vadd.xlane.f32.xlu0 %v1188
    %v1190 = vpop.xlane.xlu0 %1189
    %v1191 = vsel %vm93, %v1181, 0.0
    %1192 = vadd.xlane.f32.xlu0 %v1191
    %v1193 = vpop.xlane.xlu0 %1192
    %v1194 = vmul.f32 %v1184, 0.03125
    %v1195 = vmul.f32 %v1187, 0.03125
    %v1196 = vmul.f32 %v1190, 0.03125
    %v1197 = vmul.f32 %v1193, 0.03125
    %v1198 = vmul.f32 %v1174, %v1174
    %v1199 = vmul.f32 %v1175, %v1175
    %v1200 = vmul.f32 %v1176, %v1176
    %v1201 = vmul.f32 %v1177, %v1177
    %v1202 = vsub.f32 %v1194, %v1198
    %v1203 = vsub.f32 %v1195, %v1199
    %v1204 = vsub.f32 %v1196, %v1200
    %v1205 = vsub.f32 %v1197, %v1201
    %v1206 = vsub.f32 %v1158, %v1174
    %v1207 = vsub.f32 %v1159, %v1175
    %v1208 = vsub.f32 %v1160, %v1176
    %v1209 = vsub.f32 %v1161, %v1177
    %v1210 = vadd.f32 %v1202, 1e-05
    %v1211 = vadd.f32 %v1203, 1e-05
    %v1212 = vadd.f32 %v1204, 1e-05
    %v1213 = vadd.f32 %v1205, 1e-05
    %v1214 = vrsqrt.pop %v1210
    %v1215 = vrsqrt.pop %v1211
    %v1216 = vrsqrt.pop %v1212
    %v1217 = vrsqrt.pop %v1213
    %v1218 = vmul.f32 %v1206, %v1214
    %v1219 = vmul.f32 %v1207, %v1215
    %v1220 = vmul.f32 %v1208, %v1216
    %v1221 = vmul.f32 %v1209, %v1217
    %v1222 = vlaneseq
    %v1223 = vshrl.u32 %v1222, 7
    %v1224 = vsub.s32 0, %v1223
    %v1225 = vrot.slane %v299, %v1224
    %v1226 = vmul.f32 %v1218, %v1225
    %v1227 = vmul.f32 %v1219, %v1225
    %v1228 = vmul.f32 %v1220, %v1225
    %v1229 = vmul.f32 %v1221, %v1225
    %v1230 = vlaneseq
    %v1231 = vshrl.u32 %v1230, 7
    %v1232 = vsub.s32 0, %v1231
    %v1233 = vrot.slane %v300, %v1232
    %v1234 = vadd.f32 %v1226, %v1233
    %v1235 = vadd.f32 %v1227, %v1233
    %v1236 = vadd.f32 %v1228, %v1233
    %v1237 = vadd.f32 %v1229, %v1233
    %v1238 = vpack.c.bf16 %v1235, %v1234
    %v1239 = vpack.c.bf16 %v1237, %v1236
    %v1240 = vlaneseq
    %v1241 = vshrl.u32 %v1240, 7
    %v1242 = vsub.s32 0, %v1241
    %v1243 = vrot.slane %v305, %v1242
    %v1248 = vunpack.c.l.b16 %v247
    %v1249 = vunpack.c.l.b16 %v248
    %v1250 = vunpack.c.l.b16 %v249
    %v1251 = vunpack.c.l.b16 %v250
    %v1252 = vpack.c.b16 %v1249, %v1248
    %v1253 = vpack.c.b16 %v1251, %v1250
    %v1257 = vsel %vm93, %v1238, 0
    %v1260 = vsel %vm93, %v1239, 0
    %1262 = vmatprep.subr.bf16.mxu0 0
    %1263 = vmatpush1.bf16.msra.mxu0 %v1252
    %1264 = vmatprep.subr.bf16.mxu0 0
    %1265 = vmatpush1.bf16.msra.mxu0 %v1253
    %1266 = vmatprep.subr.bf16.mxu0 0
    %1267 = vmatpush1.bf16.msra.mxu0 0
    %1268 = vmatprep.subr.bf16.mxu0 0
    %1269 = vmatpush1.bf16.msra.mxu0 0
    %1270 = vmatprep.subr.bf16.mxu0 0
    %1271 = vmatpush1.bf16.msra.mxu0 0
    %1272 = vmatprep.subr.bf16.mxu0 0
    %1273 = vmatpush1.bf16.msra.mxu0 0
    %1274 = vmatprep.subr.bf16.mxu0 0
    %1275 = vmatpush1.bf16.msra.mxu0 0
    %1276 = vmatprep.subr.bf16.mxu0 0
    %1277 = vmatpush1.bf16.msra.mxu0 0
    %1278 = vmatprep.subr.bf16.mxu0 0
    %1279 = vmatpush1.bf16.msra.mxu0 0
    %1280 = vmatprep.subr.bf16.mxu0 0
    %1281 = vmatpush1.bf16.msra.mxu0 0
    %1282 = vmatprep.subr.bf16.mxu0 0
    %1283 = vmatpush1.bf16.msra.mxu0 0
    %1284 = vmatprep.subr.bf16.mxu0 0
    %1285 = vmatpush1.bf16.msra.mxu0 0
    %1286 = vmatprep.subr.bf16.mxu0 0
    %1287 = vmatpush1.bf16.msra.mxu0 0
    %1288 = vmatprep.subr.bf16.mxu0 0
    %1289 = vmatpush1.bf16.msra.mxu0 0
    %1290 = vmatprep.subr.bf16.mxu0 0
    %1291 = vmatpush1.bf16.msra.mxu0 0
    %1292 = vmatprep.subr.bf16.mxu0 0
    %1293 = vmatpush1.bf16.msra.mxu0 0
    %1294 = vmatprep.mubr.bf16.mxu0 0
    %1295 = vmatmul.mubr.bf16.gmra.mrb[0].mxu0 %v1257
    %v1296 = vpop.f32.mrb[0].mxu0
    %v1297 = vadd.f32 %v1243, %v1296
    %v1298 = vpop.f32.mrb[0].mxu0
    %v1299 = vpop.f32.mrb[0].mxu0
    %v1300 = vadd.f32 %v1243, %v1299
    %v1301 = vpop.f32.mrb[0].mxu0
    %1302 = vmatprep.mubr.bf16.mxu0 0
    %1303 = vmatmul.mubr.bf16.gmra.mrb[0].mxu0 %v1260
    %v1304 = vpop.f32.mrb[0].mxu0
    %v1305 = vadd.f32 %v1243, %v1304
    %v1306 = vpop.f32.mrb[0].mxu0
    %v1307 = vpop.f32.mrb[0].mxu0
    %v1308 = vadd.f32 %v1243, %v1307
    %v1309 = vpop.f32.mrb[0].mxu0
    %1310 = vdwg.mxu0
    %v1311 = vmul.f32 %v1297, %v1297
    %v1312 = vmul.f32 %v1300, %v1300
    %v1313 = vmul.f32 %v1305, %v1305
    %v1314 = vmul.f32 %v1308, %v1308
    %v1315 = vmul.f32 %v1297, %v1311
    %v1316 = vmul.f32 %v1300, %v1312
    %v1317 = vmul.f32 %v1305, %v1313
    %v1318 = vmul.f32 %v1308, %v1314
    %v1319 = vmul.f32 %v1315, 0.044715
    %v1320 = vmul.f32 %v1316, 0.044715
    %v1321 = vmul.f32 %v1317, 0.044715
    %v1322 = vmul.f32 %v1318, 0.044715
    %v1323 = vadd.f32 %v1297, %v1319
    %v1324 = vadd.f32 %v1300, %v1320
    %v1325 = vadd.f32 %v1305, %v1321
    %v1326 = vadd.f32 %v1308, %v1322
    %v1327 = vmul.f32 %v1323, 0.7978846
    %v1328 = vmul.f32 %v1324, 0.7978846
    %v1329 = vmul.f32 %v1325, 0.7978846
    %v1330 = vmul.f32 %v1326, 0.7978846
    %v1331 = vtanh.pop %v1327
    %v1332 = vtanh.pop %v1328
    %v1333 = vtanh.pop %v1329
    %v1334 = vtanh.pop %v1330
    %v1335 = vadd.f32 %v1331, 1.0
    %v1336 = vadd.f32 %v1332, 1.0
    %v1337 = vadd.f32 %v1333, 1.0
    %v1338 = vadd.f32 %v1334, 1.0
    %v1339 = vmul.f32 %v1335, 0.5
    %v1340 = vmul.f32 %v1336, 0.5
    %v1341 = vmul.f32 %v1337, 0.5
    %v1342 = vmul.f32 %v1338, 0.5
    %v1343 = vmul.f32 %v1297, %v1339
    %v1344 = vmul.f32 %v1300, %v1340
    %v1345 = vmul.f32 %v1305, %v1341
    %v1346 = vmul.f32 %v1308, %v1342
    %v1347 = vpack.c.bf16 %v1344, %v1343
    %v1348 = vpack.c.bf16 %v1346, %v1345
    %v1349 = vlaneseq
    %v1350 = vshrl.u32 %v1349, 7
    %v1351 = vsub.s32 0, %v1350
    %v1352 = vrot.slane %v306, %v1351
    %v1369 = vunpack.c.l.b16 %v251
    %v1370 = vunpack.c.l.b16 %v252
    %v1371 = vunpack.c.l.b16 %v253
    %v1372 = vunpack.c.l.b16 %v254
    %v1373 = vunpack.c.l.b16 %v255
    %v1374 = vunpack.c.l.b16 %v256
    %v1375 = vunpack.c.l.b16 %v257
    %v1376 = vunpack.c.l.b16 %v258
    %v1377 = vunpack.c.l.b16 %v259
    %v1378 = vunpack.c.l.b16 %v260
    %v1379 = vunpack.c.l.b16 %v261
    %v1380 = vunpack.c.l.b16 %v262
    %v1381 = vunpack.c.l.b16 %v263
    %v1382 = vunpack.c.l.b16 %v264
    %v1383 = vunpack.c.l.b16 %v265
    %v1384 = vunpack.c.l.b16 %v266
    %v1385 = vpack.c.b16 %v1370, %v1369
    %v1386 = vpack.c.b16 %v1372, %v1371
    %v1387 = vpack.c.b16 %v1374, %v1373
    %v1388 = vpack.c.b16 %v1376, %v1375
    %v1389 = vpack.c.b16 %v1378, %v1377
    %v1390 = vpack.c.b16 %v1380, %v1379
    %v1391 = vpack.c.b16 %v1382, %v1381
    %v1392 = vpack.c.b16 %v1384, %v1383
    %1401 = vmatprep.subr.bf16.mxu0 0
    %1402 = vmatpush1.bf16.msra.mxu0 %v1385
    %1403 = vmatprep.subr.bf16.mxu0 0
    %1404 = vmatpush1.bf16.msra.mxu0 %v1386
    %1405 = vmatprep.subr.bf16.mxu0 0
    %1406 = vmatpush1.bf16.msra.mxu0 %v1387
    %1407 = vmatprep.subr.bf16.mxu0 0
    %1408 = vmatpush1.bf16.msra.mxu0 %v1388
    %1409 = vmatprep.subr.bf16.mxu0 0
    %1410 = vmatpush1.bf16.msra.mxu0 %v1389
    %1411 = vmatprep.subr.bf16.mxu0 0
    %1412 = vmatpush1.bf16.msra.mxu0 %v1390
    %1413 = vmatprep.subr.bf16.mxu0 0
    %1414 = vmatpush1.bf16.msra.mxu0 %v1391
    %1415 = vmatprep.subr.bf16.mxu0 0
    %1416 = vmatpush1.bf16.msra.mxu0 %v1392
    %1417 = vmatprep.subr.bf16.mxu0 0
    %1418 = vmatpush1.bf16.msra.mxu0 0
    %1419 = vmatprep.subr.bf16.mxu0 0
    %1420 = vmatpush1.bf16.msra.mxu0 0
    %1421 = vmatprep.subr.bf16.mxu0 0
    %1422 = vmatpush1.bf16.msra.mxu0 0
    %1423 = vmatprep.subr.bf16.mxu0 0
    %1424 = vmatpush1.bf16.msra.mxu0 0
    %1425 = vmatprep.subr.bf16.mxu0 0
    %1426 = vmatpush1.bf16.msra.mxu0 0
    %1427 = vmatprep.subr.bf16.mxu0 0
    %1428 = vmatpush1.bf16.msra.mxu0 0
    %1429 = vmatprep.subr.bf16.mxu0 0
    %1430 = vmatpush1.bf16.msra.mxu0 0
    %1431 = vmatprep.subr.bf16.mxu0 0
    %1432 = vmatpush1.bf16.msra.mxu0 0
    %1433 = vmatprep.mubr.bf16.mxu0 0
    %1434 = vmatmul.mubr.bf16.gmra.mrb[0].mxu0 %v1347
    %v1435 = vpop.f32.mrb[0].mxu0
    %v1436 = vadd.f32 %v1352, %v1435
    %v1437 = vpop.f32.mrb[0].mxu0
    %v1438 = vpop.f32.mrb[0].mxu0
    %v1439 = vadd.f32 %v1352, %v1438
    %v1440 = vpop.f32.mrb[0].mxu0
    %1441 = vmatprep.mubr.bf16.mxu0 0
    %1442 = vmatmul.mubr.bf16.gmra.mrb[0].mxu0 %v1348
    %v1443 = vpop.f32.mrb[0].mxu0
    %v1444 = vadd.f32 %v1352, %v1443
    %v1445 = vpop.f32.mrb[0].mxu0
    %v1446 = vpop.f32.mrb[0].mxu0
    %v1447 = vadd.f32 %v1352, %v1446
    %v1448 = vpop.f32.mrb[0].mxu0
    %1449 = vdwg.mxu0
    %v1450 = vadd.f32 %v1234, %v1436
    %v1451 = vadd.f32 %v1235, %v1439
    %v1452 = vadd.f32 %v1236, %v1444
    %v1453 = vadd.f32 %v1237, %v1447
    %v1454 = vsel %vm93, %v1450, 0.0
    %1455 = vadd.xlane.f32.xlu0 %v1454
    %v1456 = vpop.xlane.xlu0 %1455
    %v1457 = vsel %vm93, %v1451, 0.0
    %1458 = vadd.xlane.f32.xlu0 %v1457
    %v1459 = vpop.xlane.xlu0 %1458
    %v1460 = vsel %vm93, %v1452, 0.0
    %1461 = vadd.xlane.f32.xlu0 %v1460
    %v1462 = vpop.xlane.xlu0 %1461
    %v1463 = vsel %vm93, %v1453, 0.0
    %1464 = vadd.xlane.f32.xlu0 %v1463
    %v1465 = vpop.xlane.xlu0 %1464
    %v1466 = vmul.f32 %v1456, 0.03125
    %v1467 = vmul.f32 %v1459, 0.03125
    %v1468 = vmul.f32 %v1462, 0.03125
    %v1469 = vmul.f32 %v1465, 0.03125
    %v1470 = vmul.f32 %v1450, %v1450
    %v1471 = vmul.f32 %v1451, %v1451
    %v1472 = vmul.f32 %v1452, %v1452
    %v1473 = vmul.f32 %v1453, %v1453
    %v1474 = vsel %vm93, %v1470, 0.0
    %1475 = vadd.xlane.f32.xlu0 %v1474
    %v1476 = vpop.xlane.xlu0 %1475
    %v1477 = vsel %vm93, %v1471, 0.0
    %1478 = vadd.xlane.f32.xlu0 %v1477
    %v1479 = vpop.xlane.xlu0 %1478
    %v1480 = vsel %vm93, %v1472, 0.0
    %1481 = vadd.xlane.f32.xlu0 %v1480
    %v1482 = vpop.xlane.xlu0 %1481
    %v1483 = vsel %vm93, %v1473, 0.0
    %1484 = vadd.xlane.f32.xlu0 %v1483
    %v1485 = vpop.xlane.xlu0 %1484
    %v1486 = vmul.f32 %v1476, 0.03125
    %v1487 = vmul.f32 %v1479, 0.03125
    %v1488 = vmul.f32 %v1482, 0.03125
    %v1489 = vmul.f32 %v1485, 0.03125
    %v1490 = vmul.f32 %v1466, %v1466
    %v1491 = vmul.f32 %v1467, %v1467
    %v1492 = vmul.f32 %v1468, %v1468
    %v1493 = vmul.f32 %v1469, %v1469
    %v1494 = vsub.f32 %v1486, %v1490
    %v1495 = vsub.f32 %v1487, %v1491
    %v1496 = vsub.f32 %v1488, %v1492
    %v1497 = vsub.f32 %v1489, %v1493
    %v1498 = vsub.f32 %v1450, %v1466
    %v1499 = vsub.f32 %v1451, %v1467
    %v1500 = vsub.f32 %v1452, %v1468
    %v1501 = vsub.f32 %v1453, %v1469
    %v1502 = vadd.f32 %v1494, 1e-05
    %v1503 = vadd.f32 %v1495, 1e-05
    %v1504 = vadd.f32 %v1496, 1e-05
    %v1505 = vadd.f32 %v1497, 1e-05
    %v1506 = vrsqrt.pop %v1502
    %v1507 = vrsqrt.pop %v1503
    %v1508 = vrsqrt.pop %v1504
    %v1509 = vrsqrt.pop %v1505
    %v1510 = vmul.f32 %v1498, %v1506
    %v1511 = vmul.f32 %v1499, %v1507
    %v1512 = vmul.f32 %v1500, %v1508
    %v1513 = vmul.f32 %v1501, %v1509
    %v1514 = vlaneseq
    %v1515 = vshrl.u32 %v1514, 7
    %v1516 = vsub.s32 0, %v1515
    %v1517 = vrot.slane %v303, %v1516
    %v1518 = vmul.f32 %v1510, %v1517
    %v1519 = vmul.f32 %v1511, %v1517
    %v1520 = vmul.f32 %v1512, %v1517
    %v1521 = vmul.f32 %v1513, %v1517
    %v1522 = vlaneseq
    %v1523 = vshrl.u32 %v1522, 7
    %v1524 = vsub.s32 0, %v1523
    %v1525 = vrot.slane %v304, %v1524
    %v1526 = vadd.f32 %v1518, %v1525
    %v1527 = vadd.f32 %v1519, %v1525
    %v1528 = vadd.f32 %v1520, %v1525
    %v1529 = vadd.f32 %v1521, %v1525
    %s1530 = scalar_lea.vmem [#allocation2], 112
    %v1531 = vld [vmem:[%s1530] sm:$0xf]
    %v1532 = vld [vmem:[%s1530 + $0x4] sm:$0xf]
    %v1533 = vld [vmem:[%s1530 + $0x8] sm:$0xf]
    %v1534 = vld [vmem:[%s1530 + $0xc] sm:$0xf]
    %v1535 = vld [vmem:[%s1530 + $0x10] sm:$0xf]
    %v1536 = vld [vmem:[%s1530 + $0x14] sm:$0xf]
    %v1537 = vld [vmem:[%s1530 + $0x18] sm:$0xf]
    %v1538 = vld [vmem:[%s1530 + $0x1c] sm:$0xf]
    %v1539 = vld [vmem:[%s1530 + $0x20] sm:$0xf]
    %v1540 = vld [vmem:[%s1530 + $0x24] sm:$0xf]
    %v1541 = vld [vmem:[%s1530 + $0x28] sm:$0xf]
    %v1542 = vld [vmem:[%s1530 + $0x2c] sm:$0xf]
    %v1543 = vld [vmem:[%s1530 + $0x30] sm:$0xf]
    %v1544 = vld [vmem:[%s1530 + $0x34] sm:$0xf]
    %v1545 = vld [vmem:[%s1530 + $0x38] sm:$0xf]
    %v1546 = vld [vmem:[%s1530 + $0x3c] sm:$0xf]
    %v1547 = vld [vmem:[%s1530 + $0x40] sm:$0xf]
    %v1548 = vld [vmem:[%s1530 + $0x44] sm:$0xf]
    %v1549 = vld [vmem:[%s1530 + $0x48] sm:$0xf]
    %v1550 = vld [vmem:[%s1530 + $0x4c] sm:$0xf]
    %v1551 = vld [vmem:[%s1530 + $0x50] sm:$0xf]
    %v1552 = vld [vmem:[%s1530 + $0x54] sm:$0xf]
    %v1553 = vld [vmem:[%s1530 + $0x58] sm:$0xf]
    %v1554 = vld [vmem:[%s1530 + $0x5c] sm:$0xf]
    %v1555 = vld [vmem:[%s1530 + $0x60] sm:$0xf]
    %v1556 = vld [vmem:[%s1530 + $0x64] sm:$0xf]
    %v1557 = vld [vmem:[%s1530 + $0x68] sm:$0xf]
    %v1558 = vld [vmem:[%s1530 + $0x6c] sm:$0xf]
    %s1559 = scalar_lea.vmem %s8, 264
    %v1560 = vld [vmem:[%s1559] sm:$0xff]
    %v1561 = vld [vmem:[%s1559 + $0x8] sm:$0xff]
    %v1562 = vld [vmem:[%s1559 + $0x10] sm:$0xff]
    %v1563 = vld [vmem:[%s1559 + $0x18] sm:$0xff]
    %v1564 = vld [vmem:[%s1559 + $0x20] sm:$0xff]
    %v1565 = vld [vmem:[%s1559 + $0x28] sm:$0xff]
    %v1566 = vld [vmem:[%s1559 + $0x30] sm:$0xff]
    %v1567 = vld [vmem:[%s1559 + $0x38] sm:$0xff]
    %v1568 = vld [vmem:[%s1559 + $0x40] sm:$0xff]
    %v1569 = vld [vmem:[%s1559 + $0x48] sm:$0xff]
    %v1570 = vld [vmem:[%s1559 + $0x50] sm:$0xff]
    %v1571 = vld [vmem:[%s1559 + $0x58] sm:$0xff]
    %v1572 = vld [vmem:[%s1559 + $0x60] sm:$0xff]
    %v1573 = vld [vmem:[%s1559 + $0x68] sm:$0xff]
    %v1574 = vld [vmem:[%s1559 + $0x70] sm:$0xff]
    %v1575 = vld [vmem:[%s1559 + $0x78] sm:$0xff]
    %v1576 = vld [vmem:[%s1559 + $0x80] sm:$0xff]
    %v1577 = vld [vmem:[%s1559 + $0x88] sm:$0xff]
    %v1578 = vld [vmem:[%s1559 + $0x90] sm:$0xff]
    %v1579 = vld [vmem:[%s1559 + $0x98] sm:$0xff]
    %v1580 = vld [vmem:[%s1559 + $0xa0] sm:$0xff]
    %v1581 = vld [vmem:[%s1559 + $0xa8] sm:$0xff]
    %v1582 = vld [vmem:[%s1559 + $0xb0] sm:$0xff]
    %v1583 = vld [vmem:[%s1559 + $0xb8] sm:$0xff]
    %v1584 = vld [vmem:[%s1559 + $0xc0] sm:$0xff]
    %v1585 = vld [vmem:[%s1559 + $0xc8] sm:$0xff]
    %v1586 = vld [vmem:[%s1559 + $0xd0] sm:$0xff]
    %v1587 = vld [vmem:[%s1559 + $0xd8] sm:$0xff]
    %v1588 = vld [vmem:[%s1559 + $0xe0] sm:$0xff]
    %v1589 = vld [vmem:[%s1559 + $0xe8] sm:$0xff]
    %v1590 = vld [vmem:[%s1559 + $0xf0] sm:$0xff]
    %v1591 = vld [vmem:[%s1559 + $0xf8] sm:$0xff]
    %v1592 = vld [vmem:[%s1559 + $0x100] sm:$0x1]
    %v1593 = vld [vmem:[%s1559 + $0x101] sm:$0x1]
    %v1594 = vld [vmem:[%s1559 + $0x102] sm:$0x1]
    %v1595 = vld [vmem:[%s1559 + $0x103] sm:$0x1]
    %v1596 = vld [vmem:[%s1559 + $0x104] sm:$0x1]
    %v1597 = vld [vmem:[%s1559 + $0x105] sm:$0x1]
    %v1598 = vld [vmem:[%s1559 + $0x106] sm:$0x1]
    %v1599 = vld [vmem:[%s1559 + $0x107] sm:$0x1]
    %v1600 = vpack.c.bf16 %v1527, %v1526
    %v1601 = vpack.c.bf16 %v1529, %v1528
    %v1602 = vlaneseq
    %v1603 = vshrl.u32 %v1602, 7
    %v1604 = vsub.s32 0, %v1603
    %v1605 = vrot.slane %v1594, %v1604
    %v1610 = vunpack.c.l.b16 %v1531
    %v1611 = vunpack.c.l.b16 %v1532
    %v1612 = vunpack.c.l.b16 %v1533
    %v1613 = vunpack.c.l.b16 %v1534
    %v1614 = vpack.c.b16 %v1611, %v1610
    %v1615 = vpack.c.b16 %v1613, %v1612
    %v1619 = vsel %vm93, %v1600, 0
    %v1622 = vsel %vm93, %v1601, 0
    %1624 = vmatprep.subr.bf16.mxu0 0
    %1625 = vmatpush1.bf16.msra.mxu0 %v1614
    %1626 = vmatprep.subr.bf16.mxu0 0
    %1627 = vmatpush1.bf16.msra.mxu0 %v1615
    %1628 = vmatprep.subr.bf16.mxu0 0
    %1629 = vmatpush1.bf16.msra.mxu0 0
    %1630 = vmatprep.subr.bf16.mxu0 0
    %1631 = vmatpush1.bf16.msra.mxu0 0
    %1632 = vmatprep.subr.bf16.mxu0 0
    %1633 = vmatpush1.bf16.msra.mxu0 0
    %1634 = vmatprep.subr.bf16.mxu0 0
    %1635 = vmatpush1.bf16.msra.mxu0 0
    %1636 = vmatprep.subr.bf16.mxu0 0
    %1637 = vmatpush1.bf16.msra.mxu0 0
    %1638 = vmatprep.subr.bf16.mxu0 0
    %1639 = vmatpush1.bf16.msra.mxu0 0
    %1640 = vmatprep.subr.bf16.mxu0 0
    %1641 = vmatpush1.bf16.msra.mxu0 0
    %1642 = vmatprep.subr.bf16.mxu0 0
    %1643 = vmatpush1.bf16.msra.mxu0 0
    %1644 = vmatprep.subr.bf16.mxu0 0
    %1645 = vmatpush1.bf16.msra.mxu0 0
    %1646 = vmatprep.subr.bf16.mxu0 0
    %1647 = vmatpush1.bf16.msra.mxu0 0
    %1648 = vmatprep.subr.bf16.mxu0 0
    %1649 = vmatpush1.bf16.msra.mxu0 0
    %1650 = vmatprep.subr.bf16.mxu0 0
    %1651 = vmatpush1.bf16.msra.mxu0 0
    %1652 = vmatprep.subr.bf16.mxu0 0
    %1653 = vmatpush1.bf16.msra.mxu0 0
    %1654 = vmatprep.subr.bf16.mxu0 0
    %1655 = vmatpush1.bf16.msra.mxu0 0
    %1656 = vmatprep.mubr.bf16.mxu0 0
    %1657 = vmatmul.mubr.bf16.gmra.mrb[0].mxu0 %v1619
    %v1658 = vpop.f32.mrb[0].mxu0
    %v1659 = vadd.f32 %v1605, %v1658
    %v1660 = vpop.f32.mrb[0].mxu0
    %v1661 = vpop.f32.mrb[0].mxu0
    %v1662 = vadd.f32 %v1605, %v1661
    %v1663 = vpop.f32.mrb[0].mxu0
    %1664 = vmatprep.mubr.bf16.mxu0 0
    %1665 = vmatmul.mubr.bf16.gmra.mrb[0].mxu0 %v1622
    %v1666 = vpop.f32.mrb[0].mxu0
    %v1667 = vadd.f32 %v1605, %v1666
    %v1668 = vpop.f32.mrb[0].mxu0
    %v1669 = vpop.f32.mrb[0].mxu0
    %v1670 = vadd.f32 %v1605, %v1669
    %v1671 = vpop.f32.mrb[0].mxu0
    %1672 = vdwg.mxu0
    %v1673 = vmul.f32 %v1659, %v1659
    %v1674 = vmul.f32 %v1662, %v1662
    %v1675 = vmul.f32 %v1667, %v1667
    %v1676 = vmul.f32 %v1670, %v1670
    %1677 = vmatprep.subr.mxu0 0.0
    %1678 = vmatpush1.msra.mxu0 %v1560
    %1679 = vmatprep.subr.mxu0 0.0
    %1680 = vmatpush1.msra.mxu0 %v1561
    %1681 = vmatprep.subr.mxu0 0.0
    %1682 = vmatpush1.msra.mxu0 %v1562
    %1683 = vmatprep.subr.mxu0 0.0
    %1684 = vmatpush1.msra.mxu0 %v1563
    %1685 = vmatprep.subr.mxu0 0.0
    %1686 = vmatpush1.msra.mxu0 %v1564
    %1687 = vmatprep.subr.mxu0 0.0
    %1688 = vmatpush1.msra.mxu0 %v1565
    %1689 = vmatprep.subr.mxu0 0.0
    %1690 = vmatpush1.msra.mxu0 %v1566
    %1691 = vmatprep.subr.mxu0 0.0
    %1692 = vmatpush1.msra.mxu0 %v1567
    %1693 = vmatprep.subr.mxu0 0.0
    %1694 = vmatpush1.msra.mxu0 %v1568
    %1695 = vmatprep.subr.mxu0 0.0
    %1696 = vmatpush1.msra.mxu0 %v1569
    %1697 = vmatprep.subr.mxu0 0.0
    %1698 = vmatpush1.msra.mxu0 %v1570
    %1699 = vmatprep.subr.mxu0 0.0
    %1700 = vmatpush1.msra.mxu0 %v1571
    %1701 = vmatprep.subr.mxu0 0.0
    %1702 = vmatpush1.msra.mxu0 %v1572
    %1703 = vmatprep.subr.mxu0 0.0
    %1704 = vmatpush1.msra.mxu0 %v1573
    %1705 = vmatprep.subr.mxu0 0.0
    %1706 = vmatpush1.msra.mxu0 %v1574
    %1707 = vmatprep.subr.mxu0 0.0
    %1708 = vmatpush1.msra.mxu0 %v1575
    %1709 = vmatprep.subr.mxu0 0.0
    %1710 = vmatpush1.msra.mxu0 %v1576
    %1711 = vmatprep.subr.mxu0 0.0
    %1712 = vmatpush1.msra.mxu0 %v1577
    %1713 = vmatprep.subr.mxu0 0.0
    %1714 = vmatpush1.msra.mxu0 %v1578
    %1715 = vmatprep.subr.mxu0 0.0
    %1716 = vmatpush1.msra.mxu0 %v1579
    %1717 = vmatprep.subr.mxu0 0.0
    %1718 = vmatpush1.msra.mxu0 %v1580
    %1719 = vmatprep.subr.mxu0 0.0
    %1720 = vmatpush1.msra.mxu0 %v1581
    %1721 = vmatprep.subr.mxu0 0.0
    %1722 = vmatpush1.msra.mxu0 %v1582
    %1723 = vmatprep.subr.mxu0 0.0
    %1724 = vmatpush1.msra.mxu0 %v1583
    %1725 = vmatprep.subr.mxu0 0.0
    %1726 = vmatpush1.msra.mxu0 %v1584
    %1727 = vmatprep.subr.mxu0 0.0
    %1728 = vmatpush1.msra.mxu0 %v1585
    %1729 = vmatprep.subr.mxu0 0.0
    %1730 = vmatpush1.msra.mxu0 %v1586
    %1731 = vmatprep.subr.mxu0 0.0
    %1732 = vmatpush1.msra.mxu0 %v1587
    %1733 = vmatprep.subr.mxu0 0.0
    %1734 = vmatpush1.msra.mxu0 %v1588
    %1735 = vmatprep.subr.mxu0 0.0
    %1736 = vmatpush1.msra.mxu0 %v1589
    %1737 = vmatprep.subr.mxu0 0.0
    %1738 = vmatpush1.msra.mxu0 %v1590
    %1739 = vmatprep.subr.mxu0 0.0
    %1740 = vmatpush1.msra.mxu0 %v1591
    %1741 = vmatprep.mubr.f32.mxu0 %v1673
    %1742 = vmatmul.mubr.f32.gmra.mrb[0].mxu0 %v1659
    %v1743 = vpop.f32.mrb[0].mxu0
    %v1744 = vadd.f32 0.0, %v1743
    %v1745 = vpop.f32.mrb[0].mxu0
    %1746 = vmatprep.mubr.f32.mxu0 %v1674
    %1747 = vmatmul.mubr.f32.gmra.mrb[0].mxu0 %v1662
    %v1748 = vpop.f32.mrb[0].mxu0
    %v1749 = vadd.f32 0.0, %v1748
    %v1750 = vpop.f32.mrb[0].mxu0
    %1751 = vmatprep.mubr.f32.mxu0 %v1675
    %1752 = vmatmul.mubr.f32.gmra.mrb[0].mxu0 %v1667
    %v1753 = vpop.f32.mrb[0].mxu0
    %v1754 = vadd.f32 0.0, %v1753
    %v1755 = vpop.f32.mrb[0].mxu0
    %1756 = vmatprep.mubr.f32.mxu0 %v1676
    %1757 = vmatmul.mubr.f32.gmra.mrb[0].mxu0 %v1670
    %v1758 = vpop.f32.mrb[0].mxu0
    %v1759 = vadd.f32 0.0, %v1758
    %v1760 = vpop.f32.mrb[0].mxu0
    %1761 = vdwg.mxu0
    %v1762 = vsel %vm469, %v1744, -inf
    %1763 = vmax.xlane.f32.xlu0 %v1762
    %v1764 = vpop.xlane.xlu0 %1763
    %v1765 = vsel %vm469, %v1749, -inf
    %1766 = vmax.xlane.f32.xlu0 %v1765
    %v1767 = vpop.xlane.xlu0 %1766
    %v1768 = vsel %vm469, %v1754, -inf
    %1769 = vmax.xlane.f32.xlu0 %v1768
    %v1770 = vpop.xlane.xlu0 %1769
    %v1771 = vsel %vm469, %v1759, -inf
    %1772 = vmax.xlane.f32.xlu0 %v1771
    %v1773 = vpop.xlane.xlu0 %1772
    %v1774 = vsub.f32 %v1744, %v1764
    %v1775 = vsub.f32 %v1749, %v1767
    %v1776 = vsub.f32 %v1754, %v1770
    %v1777 = vsub.f32 %v1759, %v1773
    %v1778 = vmul.f32 %v1774, 1.442695
    %v1779 = vpow.pop %v1778
    %v1780 = vmul.f32 %v1775, 1.442695
    %v1781 = vpow.pop %v1780
    %v1782 = vmul.f32 %v1776, 1.442695
    %v1783 = vpow.pop %v1782
    %v1784 = vmul.f32 %v1777, 1.442695
    %v1785 = vpow.pop %v1784
    %v1786 = vsel %vm494, %v1744, -inf
    %v1787 = vsel %vm494, %v1749, -inf
    %v1788 = vsel %vm494, %v1754, -inf
    %v1789 = vsel %vm494, %v1759, -inf
    %v1790 = vmax.f32 %v1786, %v1787
    %v1791 = vmax.f32 %v1788, %v1789
    %v1792 = vmax.f32 %v1790, %v1791
    %1793 = vmax.xlane.f32.xlu0 %v1792
    %v1794 = vpop.xlane.xlu0 %1793
    %v1795 = vrot.slane %v1794, 4
    %v1796 = vmax.f32 %v1794, %v1795
    %v1797 = vrot.slane %v1796, 2
    %v1798 = vmax.f32 %v1796, %v1797
    %v1799 = vrot.slane %v1798, 1
    %v1800 = vmax.f32 %v1798, %v1799
    %s1801 = vtos %v1800
    %v1802 = vstv %s1801
    %v1803 = vsub.f32 %v1744, %v1802
    %v1804 = vsub.f32 %v1749, %v1802
    %v1805 = vsub.f32 %v1754, %v1802
    %v1806 = vsub.f32 %v1759, %v1802
    %v1807 = vmul.f32 %v1803, 1.442695
    %v1808 = vpow.pop %v1807
    %v1809 = vmul.f32 %v1804, 1.442695
    %v1810 = vpow.pop %v1809
    %v1811 = vmul.f32 %v1805, 1.442695
    %v1812 = vpow.pop %v1811
    %v1813 = vmul.f32 %v1806, 1.442695
    %v1814 = vpow.pop %v1813
    %1817 = vrot.lane.b32.xlu0 %v1808, 64
    %v1818 = vpop.permute.xlu0 %1817
    %1819 = vrot.lane.b32.xlu0 %v1810, 64
    %v1820 = vpop.permute.xlu0 %1819
    %1823 = vxpose.xlu0.b32.start [1/16] %v1818, 128
    %1824 = vxpose.xlu0.b32.cont [2/16] %v1820, 128
    %1825 = vxpose.xlu0.b32.cont [3/16] 0.0, 128
    %1826 = vxpose.xlu0.b32.cont [4/16] 0.0, 128
    %1827 = vxpose.xlu0.b32.cont [5/16] 0.0, 128
    %1828 = vxpose.xlu0.b32.cont [6/16] 0.0, 128
    %1829 = vxpose.xlu0.b32.cont [7/16] 0.0, 128
    %1830 = vxpose.xlu0.b32.cont [8/16] 0.0, 128
    %1831 = vxpose.xlu0.b32.cont [9/16] 0.0, 128
    %1832 = vxpose.xlu0.b32.cont [10/16] 0.0, 128
    %1833 = vxpose.xlu0.b32.cont [11/16] 0.0, 128
    %1834 = vxpose.xlu0.b32.cont [12/16] 0.0, 128
    %1835 = vxpose.xlu0.b32.cont [13/16] 0.0, 128
    %1836 = vxpose.xlu0.b32.cont [14/16] 0.0, 128
    %1837 = vxpose.xlu0.b32.cont [15/16] 0.0, 128
    %1838 = vxpose.xlu0.b32.end [16/16] 0.0, 128
    %v1839 = vpop.trf.xlu0
    %v1840 = vpop.trf.xlu0
    %v1841 = vpop.trf.xlu0
    %v1842 = vpop.trf.xlu0
    %v1843 = vpop.trf.xlu0
    %v1844 = vpop.trf.xlu0
    %v1845 = vpop.trf.xlu0
    %v1846 = vpop.trf.xlu0
    %v1847 = vpop.trf.xlu0
    %v1848 = vpop.trf.xlu0
    %v1849 = vpop.trf.xlu0
    %v1850 = vpop.trf.xlu0
    %v1851 = vpop.trf.xlu0
    %v1852 = vpop.trf.xlu0
    %v1853 = vpop.trf.xlu0
    %v1854 = vpop.trf.xlu0
    %1857 = vrot.lane.b32.xlu0 %v1659, 64
    %v1858 = vpop.permute.xlu0 %1857
    %1859 = vrot.lane.b32.xlu0 %v1662, 64
    %v1860 = vpop.permute.xlu0 %1859
    %v1864 = vsel %vm572, %v1839, 0
    %v1867 = vsel %vm572, %v1840, 0
    %v1870 = vsel %vm572, %v1841, 0
    %v1873 = vsel %vm572, %v1842, 0
    %v1876 = vsel %vm572, %v1843, 0
    %v1879 = vsel %vm572, %v1844, 0
    %v1882 = vsel %vm572, %v1845, 0
    %v1885 = vsel %vm572, %v1846, 0
    %1887 = vmatprep.subr.mxu0 0.0
    %1888 = vmatpush1.msra.mxu0 %v1858
    %1889 = vmatprep.subr.mxu0 0.0
    %1890 = vmatpush1.msra.mxu0 %v1860
    %1891 = vmatprep.subr.mxu0 0.0
    %1892 = vmatpush1.msra.mxu0 0.0
    %1893 = vmatprep.subr.mxu0 0.0
    %1894 = vmatpush1.msra.mxu0 0.0
    %1895 = vmatprep.subr.mxu0 0.0
    %1896 = vmatpush1.msra.mxu0 0.0
    %1897 = vmatprep.subr.mxu0 0.0
    %1898 = vmatpush1.msra.mxu0 0.0
    %1899 = vmatprep.subr.mxu0 0.0
    %1900 = vmatpush1.msra.mxu0 0.0
    %1901 = vmatprep.subr.mxu0 0.0
    %1902 = vmatpush1.msra.mxu0 0.0
    %1903 = vmatprep.subr.mxu0 0.0
    %1904 = vmatpush1.msra.mxu0 0.0
    %1905 = vmatprep.subr.mxu0 0.0
    %1906 = vmatpush1.msra.mxu0 0.0
    %1907 = vmatprep.subr.mxu0 0.0
    %1908 = vmatpush1.msra.mxu0 0.0
    %1909 = vmatprep.subr.mxu0 0.0
    %1910 = vmatpush1.msra.mxu0 0.0
    %1911 = vmatprep.subr.mxu0 0.0
    %1912 = vmatpush1.msra.mxu0 0.0
    %1913 = vmatprep.subr.mxu0 0.0
    %1914 = vmatpush1.msra.mxu0 0.0
    %1915 = vmatprep.subr.mxu0 0.0
    %1916 = vmatpush1.msra.mxu0 0.0
    %1917 = vmatprep.subr.mxu0 0.0
    %1918 = vmatpush1.msra.mxu0 0.0
    %1919 = vmatprep.subr.mxu0 0.0
    %1920 = vmatpush1.msra.mxu0 0.0
    %1921 = vmatprep.subr.mxu0 0.0
    %1922 = vmatpush1.msra.mxu0 0.0
    %1923 = vmatprep.subr.mxu0 0.0
    %1924 = vmatpush1.msra.mxu0 0.0
    %1925 = vmatprep.subr.mxu0 0.0
    %1926 = vmatpush1.msra.mxu0 0.0
    %1927 = vmatprep.subr.mxu0 0.0
    %1928 = vmatpush1.msra.mxu0 0.0
    %1929 = vmatprep.subr.mxu0 0.0
    %1930 = vmatpush1.msra.mxu0 0.0
    %1931 = vmatprep.subr.mxu0 0.0
    %1932 = vmatpush1.msra.mxu0 0.0
    %1933 = vmatprep.subr.mxu0 0.0
    %1934 = vmatpush1.msra.mxu0 0.0
    %1935 = vmatprep.subr.mxu0 0.0
    %1936 = vmatpush1.msra.mxu0 0.0
    %1937 = vmatprep.subr.mxu0 0.0
    %1938 = vmatpush1.msra.mxu0 0.0
    %1939 = vmatprep.subr.mxu0 0.0
    %1940 = vmatpush1.msra.mxu0 0.0
    %1941 = vmatprep.subr.mxu0 0.0
    %1942 = vmatpush1.msra.mxu0 0.0
    %1943 = vmatprep.subr.mxu0 0.0
    %1944 = vmatpush1.msra.mxu0 0.0
    %1945 = vmatprep.subr.mxu0 0.0
    %1946 = vmatpush1.msra.mxu0 0.0
    %1947 = vmatprep.subr.mxu0 0.0
    %1948 = vmatpush1.msra.mxu0 0.0
    %1949 = vmatprep.subr.mxu0 0.0
    %1950 = vmatpush1.msra.mxu0 0.0
    %1951 = vmatprep.mubr.f32.mxu0 0.0
    %1952 = vmatmul.mubr.f32.gmra.mrb[0].mxu0 %v1864
    %v1953 = vpop.f32.mrb[0].mxu0
    %v1954 = vadd.f32 0.0, %v1953
    %v1955 = vpop.f32.mrb[0].mxu0
    %1956 = vmatprep.mubr.f32.mxu0 0.0
    %1957 = vmatmul.mubr.f32.gmra.mrb[0].mxu0 %v1867
    %v1958 = vpop.f32.mrb[0].mxu0
    %v1959 = vadd.f32 0.0, %v1958
    %v1960 = vpop.f32.mrb[0].mxu0
    %1961 = vmatprep.mubr.f32.mxu0 0.0
    %1962 = vmatmul.mubr.f32.gmra.mrb[0].mxu0 %v1870
    %v1963 = vpop.f32.mrb[0].mxu0
    %v1964 = vadd.f32 0.0, %v1963
    %v1965 = vpop.f32.mrb[0].mxu0
    %1966 = vmatprep.mubr.f32.mxu0 0.0
    %1967 = vmatmul.mubr.f32.gmra.mrb[0].mxu0 %v1873
    %v1968 = vpop.f32.mrb[0].mxu0
    %v1969 = vadd.f32 0.0, %v1968
    %v1970 = vpop.f32.mrb[0].mxu0
    %1971 = vmatprep.mubr.f32.mxu0 0.0
    %1972 = vmatmul.mubr.f32.gmra.mrb[0].mxu0 %v1876
    %v1973 = vpop.f32.mrb[0].mxu0
    %v1974 = vadd.f32 0.0, %v1973
    %v1975 = vpop.f32.mrb[0].mxu0
    %1976 = vmatprep.mubr.f32.mxu0 0.0
    %1977 = vmatmul.mubr.f32.gmra.mrb[0].mxu0 %v1879
    %v1978 = vpop.f32.mrb[0].mxu0
    %v1979 = vadd.f32 0.0, %v1978
    %v1980 = vpop.f32.mrb[0].mxu0
    %1981 = vmatprep.mubr.f32.mxu0 0.0
    %1982 = vmatmul.mubr.f32.gmra.mrb[0].mxu0 %v1882
    %v1983 = vpop.f32.mrb[0].mxu0
    %v1984 = vadd.f32 0.0, %v1983
    %v1985 = vpop.f32.mrb[0].mxu0
    %1986 = vmatprep.mubr.f32.mxu0 0.0
    %1987 = vmatmul.mubr.f32.gmra.mrb[0].mxu0 %v1885
    %v1988 = vpop.f32.mrb[0].mxu0
    %v1989 = vadd.f32 0.0, %v1988
    %v1990 = vpop.f32.mrb[0].mxu0
    %1991 = vdwg.mxu0
    %v1992 = vmul.f32 %v1954, %v48
    %v1993 = vmul.f32 %v1959, %v49
    %v1994 = vmul.f32 %v1964, %v50
    %v1995 = vmul.f32 %v1969, %v51
    %v1996 = vmul.f32 %v1974, %v52
    %v1997 = vmul.f32 %v1979, %v53
    %v1998 = vmul.f32 %v1984, %v54
    %v1999 = vmul.f32 %v1989, %v55
    %v2001 = vsel %vm469, %v1779, 0
    %v2004 = vsel %vm469, %v1781, 0
    %2006 = vmatprep.subr.mxu0 0.0
    %2007 = vmatpush1.msra.mxu0 %v1992
    %2008 = vmatprep.subr.mxu0 0.0
    %2009 = vmatpush1.msra.mxu0 %v1993
    %2010 = vmatprep.subr.mxu0 0.0
    %2011 = vmatpush1.msra.mxu0 %v1994
    %2012 = vmatprep.subr.mxu0 0.0
    %2013 = vmatpush1.msra.mxu0 %v1995
    %2014 = vmatprep.subr.mxu0 0.0
    %2015 = vmatpush1.msra.mxu0 %v1996
    %2016 = vmatprep.subr.mxu0 0.0
    %2017 = vmatpush1.msra.mxu0 %v1997
    %2018 = vmatprep.subr.mxu0 0.0
    %2019 = vmatpush1.msra.mxu0 %v1998
    %2020 = vmatprep.subr.mxu0 0.0
    %2021 = vmatpush1.msra.mxu0 %v1999
    %2022 = vmatprep.subr.mxu0 0.0
    %2023 = vmatpush1.msra.mxu0 0.0
    %2024 = vmatprep.subr.mxu0 0.0
    %2025 = vmatpush1.msra.mxu0 0.0
    %2026 = vmatprep.subr.mxu0 0.0
    %2027 = vmatpush1.msra.mxu0 0.0
    %2028 = vmatprep.subr.mxu0 0.0
    %2029 = vmatpush1.msra.mxu0 0.0
    %2030 = vmatprep.subr.mxu0 0.0
    %2031 = vmatpush1.msra.mxu0 0.0
    %2032 = vmatprep.subr.mxu0 0.0
    %2033 = vmatpush1.msra.mxu0 0.0
    %2034 = vmatprep.subr.mxu0 0.0
    %2035 = vmatpush1.msra.mxu0 0.0
    %2036 = vmatprep.subr.mxu0 0.0
    %2037 = vmatpush1.msra.mxu0 0.0
    %2038 = vmatprep.subr.mxu0 0.0
    %2039 = vmatpush1.msra.mxu0 0.0
    %2040 = vmatprep.subr.mxu0 0.0
    %2041 = vmatpush1.msra.mxu0 0.0
    %2042 = vmatprep.subr.mxu0 0.0
    %2043 = vmatpush1.msra.mxu0 0.0
    %2044 = vmatprep.subr.mxu0 0.0
    %2045 = vmatpush1.msra.mxu0 0.0
    %2046 = vmatprep.subr.mxu0 0.0
    %2047 = vmatpush1.msra.mxu0 0.0
    %2048 = vmatprep.subr.mxu0 0.0
    %2049 = vmatpush1.msra.mxu0 0.0
    %2050 = vmatprep.subr.mxu0 0.0
    %2051 = vmatpush1.msra.mxu0 0.0
    %2052 = vmatprep.subr.mxu0 0.0
    %2053 = vmatpush1.msra.mxu0 0.0
    %2054 = vmatprep.subr.mxu0 0.0
    %2055 = vmatpush1.msra.mxu0 0.0
    %2056 = vmatprep.subr.mxu0 0.0
    %2057 = vmatpush1.msra.mxu0 0.0
    %2058 = vmatprep.subr.mxu0 0.0
    %2059 = vmatpush1.msra.mxu0 0.0
    %2060 = vmatprep.subr.mxu0 0.0
    %2061 = vmatpush1.msra.mxu0 0.0
    %2062 = vmatprep.subr.mxu0 0.0
    %2063 = vmatpush1.msra.mxu0 0.0
    %2064 = vmatprep.subr.mxu0 0.0
    %2065 = vmatpush1.msra.mxu0 0.0
    %2066 = vmatprep.subr.mxu0 0.0
    %2067 = vmatpush1.msra.mxu0 0.0
    %2068 = vmatprep.subr.mxu0 0.0
    %2069 = vmatpush1.msra.mxu0 0.0
    %2070 = vmatprep.mubr.f32.mxu0 0.0
    %2071 = vmatmul.mubr.f32.gmra.mrb[0].mxu0 %v2001
    %v2072 = vpop.f32.mrb[0].mxu0
    %v2073 = vadd.f32 0.0, %v2072
    %v2074 = vpop.f32.mrb[0].mxu0
    %2075 = vmatprep.mubr.f32.mxu0 0.0
    %2076 = vmatmul.mubr.f32.gmra.mrb[0].mxu0 %v2004
    %v2077 = vpop.f32.mrb[0].mxu0
    %v2078 = vadd.f32 0.0, %v2077
    %v2079 = vpop.f32.mrb[0].mxu0
    %2080 = vdwg.mxu0
    %2083 = vrot.lane.b32.xlu0 %v1812, 64
    %v2084 = vpop.permute.xlu0 %2083
    %2085 = vrot.lane.b32.xlu0 %v1814, 64
    %v2086 = vpop.permute.xlu0 %2085
    %2089 = vxpose.xlu0.b32.start [1/16] %v2084, 128
    %2090 = vxpose.xlu0.b32.cont [2/16] %v2086, 128
    %2091 = vxpose.xlu0.b32.cont [3/16] 0.0, 128
    %2092 = vxpose.xlu0.b32.cont [4/16] 0.0, 128
    %2093 = vxpose.xlu0.b32.cont [5/16] 0.0, 128
    %2094 = vxpose.xlu0.b32.cont [6/16] 0.0, 128
    %2095 = vxpose.xlu0.b32.cont [7/16] 0.0, 128
    %2096 = vxpose.xlu0.b32.cont [8/16] 0.0, 128
    %2097 = vxpose.xlu0.b32.cont [9/16] 0.0, 128
    %2098 = vxpose.xlu0.b32.cont [10/16] 0.0, 128
    %2099 = vxpose.xlu0.b32.cont [11/16] 0.0, 128
    %2100 = vxpose.xlu0.b32.cont [12/16] 0.0, 128
    %2101 = vxpose.xlu0.b32.cont [13/16] 0.0, 128
    %2102 = vxpose.xlu0.b32.cont [14/16] 0.0, 128
    %2103 = vxpose.xlu0.b32.cont [15/16] 0.0, 128
    %2104 = vxpose.xlu0.b32.end [16/16] 0.0, 128
    %v2105 = vpop.trf.xlu0
    %v2106 = vpop.trf.xlu0
    %v2107 = vpop.trf.xlu0
    %v2108 = vpop.trf.xlu0
    %v2109 = vpop.trf.xlu0
    %v2110 = vpop.trf.xlu0
    %v2111 = vpop.trf.xlu0
    %v2112 = vpop.trf.xlu0
    %v2113 = vpop.trf.xlu0
    %v2114 = vpop.trf.xlu0
    %v2115 = vpop.trf.xlu0
    %v2116 = vpop.trf.xlu0
    %v2117 = vpop.trf.xlu0
    %v2118 = vpop.trf.xlu0
    %v2119 = vpop.trf.xlu0
    %v2120 = vpop.trf.xlu0
    %2123 = vrot.lane.b32.xlu0 %v1667, 64
    %v2124 = vpop.permute.xlu0 %2123
    %2125 = vrot.lane.b32.xlu0 %v1670, 64
    %v2126 = vpop.permute.xlu0 %2125
    %v2130 = vsel %vm572, %v2105, 0
    %v2133 = vsel %vm572, %v2106, 0
    %v2136 = vsel %vm572, %v2107, 0
    %v2139 = vsel %vm572, %v2108, 0
    %v2142 = vsel %vm572, %v2109, 0
    %v2145 = vsel %vm572, %v2110, 0
    %v2148 = vsel %vm572, %v2111, 0
    %v2151 = vsel %vm572, %v2112, 0
    %2153 = vmatprep.subr.mxu0 0.0
    %2154 = vmatpush1.msra.mxu0 %v2124
    %2155 = vmatprep.subr.mxu0 0.0
    %2156 = vmatpush1.msra.mxu0 %v2126
    %2157 = vmatprep.subr.mxu0 0.0
    %2158 = vmatpush1.msra.mxu0 0.0
    %2159 = vmatprep.subr.mxu0 0.0
    %2160 = vmatpush1.msra.mxu0 0.0
    %2161 = vmatprep.subr.mxu0 0.0
    %2162 = vmatpush1.msra.mxu0 0.0
    %2163 = vmatprep.subr.mxu0 0.0
    %2164 = vmatpush1.msra.mxu0 0.0
    %2165 = vmatprep.subr.mxu0 0.0
    %2166 = vmatpush1.msra.mxu0 0.0
    %2167 = vmatprep.subr.mxu0 0.0
    %2168 = vmatpush1.msra.mxu0 0.0
    %2169 = vmatprep.subr.mxu0 0.0
    %2170 = vmatpush1.msra.mxu0 0.0
    %2171 = vmatprep.subr.mxu0 0.0
    %2172 = vmatpush1.msra.mxu0 0.0
    %2173 = vmatprep.subr.mxu0 0.0
    %2174 = vmatpush1.msra.mxu0 0.0
    %2175 = vmatprep.subr.mxu0 0.0
    %2176 = vmatpush1.msra.mxu0 0.0
    %2177 = vmatprep.subr.mxu0 0.0
    %2178 = vmatpush1.msra.mxu0 0.0
    %2179 = vmatprep.subr.mxu0 0.0
    %2180 = vmatpush1.msra.mxu0 0.0
    %2181 = vmatprep.subr.mxu0 0.0
    %2182 = vmatpush1.msra.mxu0 0.0
    %2183 = vmatprep.subr.mxu0 0.0
    %2184 = vmatpush1.msra.mxu0 0.0
    %2185 = vmatprep.subr.mxu0 0.0
    %2186 = vmatpush1.msra.mxu0 0.0
    %2187 = vmatprep.subr.mxu0 0.0
    %2188 = vmatpush1.msra.mxu0 0.0
    %2189 = vmatprep.subr.mxu0 0.0
    %2190 = vmatpush1.msra.mxu0 0.0
    %2191 = vmatprep.subr.mxu0 0.0
    %2192 = vmatpush1.msra.mxu0 0.0
    %2193 = vmatprep.subr.mxu0 0.0
    %2194 = vmatpush1.msra.mxu0 0.0
    %2195 = vmatprep.subr.mxu0 0.0
    %2196 = vmatpush1.msra.mxu0 0.0
    %2197 = vmatprep.subr.mxu0 0.0
    %2198 = vmatpush1.msra.mxu0 0.0
    %2199 = vmatprep.subr.mxu0 0.0
    %2200 = vmatpush1.msra.mxu0 0.0
    %2201 = vmatprep.subr.mxu0 0.0
    %2202 = vmatpush1.msra.mxu0 0.0
    %2203 = vmatprep.subr.mxu0 0.0
    %2204 = vmatpush1.msra.mxu0 0.0
    %2205 = vmatprep.subr.mxu0 0.0
    %2206 = vmatpush1.msra.mxu0 0.0
    %2207 = vmatprep.subr.mxu0 0.0
    %2208 = vmatpush1.msra.mxu0 0.0
    %2209 = vmatprep.subr.mxu0 0.0
    %2210 = vmatpush1.msra.mxu0 0.0
    %2211 = vmatprep.subr.mxu0 0.0
    %2212 = vmatpush1.msra.mxu0 0.0
    %2213 = vmatprep.subr.mxu0 0.0
    %2214 = vmatpush1.msra.mxu0 0.0
    %2215 = vmatprep.subr.mxu0 0.0
    %2216 = vmatpush1.msra.mxu0 0.0
    %2217 = vmatprep.mubr.f32.mxu0 0.0
    %2218 = vmatmul.mubr.f32.gmra.mrb[0].mxu0 %v2130
    %v2219 = vpop.f32.mrb[0].mxu0
    %v2220 = vadd.f32 0.0, %v2219
    %v2221 = vpop.f32.mrb[0].mxu0
    %2222 = vmatprep.mubr.f32.mxu0 0.0
    %2223 = vmatmul.mubr.f32.gmra.mrb[0].mxu0 %v2133
    %v2224 = vpop.f32.mrb[0].mxu0
    %v2225 = vadd.f32 0.0, %v2224
    %v2226 = vpop.f32.mrb[0].mxu0
    %2227 = vmatprep.mubr.f32.mxu0 0.0
    %2228 = vmatmul.mubr.f32.gmra.mrb[0].mxu0 %v2136
    %v2229 = vpop.f32.mrb[0].mxu0
    %v2230 = vadd.f32 0.0, %v2229
    %v2231 = vpop.f32.mrb[0].mxu0
    %2232 = vmatprep.mubr.f32.mxu0 0.0
    %2233 = vmatmul.mubr.f32.gmra.mrb[0].mxu0 %v2139
    %v2234 = vpop.f32.mrb[0].mxu0
    %v2235 = vadd.f32 0.0, %v2234
    %v2236 = vpop.f32.mrb[0].mxu0
    %2237 = vmatprep.mubr.f32.mxu0 0.0
    %2238 = vmatmul.mubr.f32.gmra.mrb[0].mxu0 %v2142
    %v2239 = vpop.f32.mrb[0].mxu0
    %v2240 = vadd.f32 0.0, %v2239
    %v2241 = vpop.f32.mrb[0].mxu0
    %2242 = vmatprep.mubr.f32.mxu0 0.0
    %2243 = vmatmul.mubr.f32.gmra.mrb[0].mxu0 %v2145
    %v2244 = vpop.f32.mrb[0].mxu0
    %v2245 = vadd.f32 0.0, %v2244
    %v2246 = vpop.f32.mrb[0].mxu0
    %2247 = vmatprep.mubr.f32.mxu0 0.0
    %2248 = vmatmul.mubr.f32.gmra.mrb[0].mxu0 %v2148
    %v2249 = vpop.f32.mrb[0].mxu0
    %v2250 = vadd.f32 0.0, %v2249
    %v2251 = vpop.f32.mrb[0].mxu0
    %2252 = vmatprep.mubr.f32.mxu0 0.0
    %2253 = vmatmul.mubr.f32.gmra.mrb[0].mxu0 %v2151
    %v2254 = vpop.f32.mrb[0].mxu0
    %v2255 = vadd.f32 0.0, %v2254
    %v2256 = vpop.f32.mrb[0].mxu0
    %2257 = vdwg.mxu0
    %v2258 = vmul.f32 %v2220, %v48
    %v2259 = vmul.f32 %v2225, %v49
    %v2260 = vmul.f32 %v2230, %v50
    %v2261 = vmul.f32 %v2235, %v51
    %v2262 = vmul.f32 %v2240, %v52
    %v2263 = vmul.f32 %v2245, %v53
    %v2264 = vmul.f32 %v2250, %v54
    %v2265 = vmul.f32 %v2255, %v55
    %v2267 = vsel %vm469, %v1783, 0
    %v2270 = vsel %vm469, %v1785, 0
    %2272 = vmatprep.subr.mxu0 0.0
    %2273 = vmatpush1.msra.mxu0 %v2258
    %2274 = vmatprep.subr.mxu0 0.0
    %2275 = vmatpush1.msra.mxu0 %v2259
    %2276 = vmatprep.subr.mxu0 0.0
    %2277 = vmatpush1.msra.mxu0 %v2260
    %2278 = vmatprep.subr.mxu0 0.0
    %2279 = vmatpush1.msra.mxu0 %v2261
    %2280 = vmatprep.subr.mxu0 0.0
    %2281 = vmatpush1.msra.mxu0 %v2262
    %2282 = vmatprep.subr.mxu0 0.0
    %2283 = vmatpush1.msra.mxu0 %v2263
    %2284 = vmatprep.subr.mxu0 0.0
    %2285 = vmatpush1.msra.mxu0 %v2264
    %2286 = vmatprep.subr.mxu0 0.0
    %2287 = vmatpush1.msra.mxu0 %v2265
    %2288 = vmatprep.subr.mxu0 0.0
    %2289 = vmatpush1.msra.mxu0 0.0
    %2290 = vmatprep.subr.mxu0 0.0
    %2291 = vmatpush1.msra.mxu0 0.0
    %2292 = vmatprep.subr.mxu0 0.0
    %2293 = vmatpush1.msra.mxu0 0.0
    %2294 = vmatprep.subr.mxu0 0.0
    %2295 = vmatpush1.msra.mxu0 0.0
    %2296 = vmatprep.subr.mxu0 0.0
    %2297 = vmatpush1.msra.mxu0 0.0
    %2298 = vmatprep.subr.mxu0 0.0
    %2299 = vmatpush1.msra.mxu0 0.0
    %2300 = vmatprep.subr.mxu0 0.0
    %2301 = vmatpush1.msra.mxu0 0.0
    %2302 = vmatprep.subr.mxu0 0.0
    %2303 = vmatpush1.msra.mxu0 0.0
    %2304 = vmatprep.subr.mxu0 0.0
    %2305 = vmatpush1.msra.mxu0 0.0
    %2306 = vmatprep.subr.mxu0 0.0
    %2307 = vmatpush1.msra.mxu0 0.0
    %2308 = vmatprep.subr.mxu0 0.0
    %2309 = vmatpush1.msra.mxu0 0.0
    %2310 = vmatprep.subr.mxu0 0.0
    %2311 = vmatpush1.msra.mxu0 0.0
    %2312 = vmatprep.subr.mxu0 0.0
    %2313 = vmatpush1.msra.mxu0 0.0
    %2314 = vmatprep.subr.mxu0 0.0
    %2315 = vmatpush1.msra.mxu0 0.0
    %2316 = vmatprep.subr.mxu0 0.0
    %2317 = vmatpush1.msra.mxu0 0.0
    %2318 = vmatprep.subr.mxu0 0.0
    %2319 = vmatpush1.msra.mxu0 0.0
    %2320 = vmatprep.subr.mxu0 0.0
    %2321 = vmatpush1.msra.mxu0 0.0
    %2322 = vmatprep.subr.mxu0 0.0
    %2323 = vmatpush1.msra.mxu0 0.0
    %2324 = vmatprep.subr.mxu0 0.0
    %2325 = vmatpush1.msra.mxu0 0.0
    %2326 = vmatprep.subr.mxu0 0.0
    %2327 = vmatpush1.msra.mxu0 0.0
    %2328 = vmatprep.subr.mxu0 0.0
    %2329 = vmatpush1.msra.mxu0 0.0
    %2330 = vmatprep.subr.mxu0 0.0
    %2331 = vmatpush1.msra.mxu0 0.0
    %2332 = vmatprep.subr.mxu0 0.0
    %2333 = vmatpush1.msra.mxu0 0.0
    %2334 = vmatprep.subr.mxu0 0.0
    %2335 = vmatpush1.msra.mxu0 0.0
    %2336 = vmatprep.mubr.f32.mxu0 0.0
    %2337 = vmatmul.mubr.f32.gmra.mrb[0].mxu0 %v2267
    %v2338 = vpop.f32.mrb[0].mxu0
    %v2339 = vadd.f32 0.0, %v2338
    %v2340 = vpop.f32.mrb[0].mxu0
    %2341 = vmatprep.mubr.f32.mxu0 0.0
    %2342 = vmatmul.mubr.f32.gmra.mrb[0].mxu0 %v2270
    %v2343 = vpop.f32.mrb[0].mxu0
    %v2344 = vadd.f32 0.0, %v2343
    %v2345 = vpop.f32.mrb[0].mxu0
    %2346 = vdwg.mxu0
    %v2347 = vadd.f32 %v2073, 1e-06
    %v2348 = vadd.f32 %v2078, 1e-06
    %v2349 = vadd.f32 %v2339, 1e-06
    %v2350 = vadd.f32 %v2344, 1e-06
    %v2351 = vrcp.pop %v2347
    %v2352 = vrcp.pop %v2348
    %v2353 = vrcp.pop %v2349
    %v2354 = vrcp.pop %v2350
    %2359 = vrot.lane.b32.xlu0 %v2351, 96
    %v2360 = vpop.permute.xlu0 %2359
    %2361 = vrot.lane.b32.xlu0 %v2352, 96
    %v2362 = vpop.permute.xlu0 %2361
    %2363 = vrot.lane.b32.xlu0 %v2353, 96
    %v2364 = vpop.permute.xlu0 %2363
    %2365 = vrot.lane.b32.xlu0 %v2354, 96
    %v2366 = vpop.permute.xlu0 %2365
    %v2371 = vmul.f32 %v2073, %v2360
    %v2372 = vmul.f32 %v2078, %v2362
    %v2373 = vmul.f32 %v2339, %v2364
    %v2374 = vmul.f32 %v2344, %v2366
    %v2375 = vpack.c.bf16 %v2372, %v2371
    %v2376 = vpack.c.bf16 %v2374, %v2373
    %v2377 = vlaneseq
    %v2378 = vshrl.u32 %v2377, 7
    %v2379 = vsub.s32 0, %v2378
    %v2380 = vrot.slane %v1595, %v2379
    %v2385 = vunpack.c.l.b16 %v1535
    %v2386 = vunpack.c.l.b16 %v1536
    %v2387 = vunpack.c.l.b16 %v1537
    %v2388 = vunpack.c.l.b16 %v1538
    %v2389 = vpack.c.b16 %v2386, %v2385
    %v2390 = vpack.c.b16 %v2388, %v2387
    %v2394 = vsel %vm93, %v2375, 0
    %v2397 = vsel %vm93, %v2376, 0
    %2399 = vmatprep.subr.bf16.mxu0 0
    %2400 = vmatpush1.bf16.msra.mxu0 %v2389
    %2401 = vmatprep.subr.bf16.mxu0 0
    %2402 = vmatpush1.bf16.msra.mxu0 %v2390
    %2403 = vmatprep.subr.bf16.mxu0 0
    %2404 = vmatpush1.bf16.msra.mxu0 0
    %2405 = vmatprep.subr.bf16.mxu0 0
    %2406 = vmatpush1.bf16.msra.mxu0 0
    %2407 = vmatprep.subr.bf16.mxu0 0
    %2408 = vmatpush1.bf16.msra.mxu0 0
    %2409 = vmatprep.subr.bf16.mxu0 0
    %2410 = vmatpush1.bf16.msra.mxu0 0
    %2411 = vmatprep.subr.bf16.mxu0 0
    %2412 = vmatpush1.bf16.msra.mxu0 0
    %2413 = vmatprep.subr.bf16.mxu0 0
    %2414 = vmatpush1.bf16.msra.mxu0 0
    %2415 = vmatprep.subr.bf16.mxu0 0
    %2416 = vmatpush1.bf16.msra.mxu0 0
    %2417 = vmatprep.subr.bf16.mxu0 0
    %2418 = vmatpush1.bf16.msra.mxu0 0
    %2419 = vmatprep.subr.bf16.mxu0 0
    %2420 = vmatpush1.bf16.msra.mxu0 0
    %2421 = vmatprep.subr.bf16.mxu0 0
    %2422 = vmatpush1.bf16.msra.mxu0 0
    %2423 = vmatprep.subr.bf16.mxu0 0
    %2424 = vmatpush1.bf16.msra.mxu0 0
    %2425 = vmatprep.subr.bf16.mxu0 0
    %2426 = vmatpush1.bf16.msra.mxu0 0
    %2427 = vmatprep.subr.bf16.mxu0 0
    %2428 = vmatpush1.bf16.msra.mxu0 0
    %2429 = vmatprep.subr.bf16.mxu0 0
    %2430 = vmatpush1.bf16.msra.mxu0 0
    %2431 = vmatprep.mubr.bf16.mxu0 0
    %2432 = vmatmul.mubr.bf16.gmra.mrb[0].mxu0 %v2394
    %v2433 = vpop.f32.mrb[0].mxu0
    %v2434 = vadd.f32 %v2380, %v2433
    %v2435 = vpop.f32.mrb[0].mxu0
    %v2436 = vpop.f32.mrb[0].mxu0
    %v2437 = vadd.f32 %v2380, %v2436
    %v2438 = vpop.f32.mrb[0].mxu0
    %2439 = vmatprep.mubr.bf16.mxu0 0
    %2440 = vmatmul.mubr.bf16.gmra.mrb[0].mxu0 %v2397
    %v2441 = vpop.f32.mrb[0].mxu0
    %v2442 = vadd.f32 %v2380, %v2441
    %v2443 = vpop.f32.mrb[0].mxu0
    %v2444 = vpop.f32.mrb[0].mxu0
    %v2445 = vadd.f32 %v2380, %v2444
    %v2446 = vpop.f32.mrb[0].mxu0
    %2447 = vdwg.mxu0
    %v2448 = vadd.f32 %v1526, %v2434
    %v2449 = vadd.f32 %v1527, %v2437
    %v2450 = vadd.f32 %v1528, %v2442
    %v2451 = vadd.f32 %v1529, %v2445
    %v2452 = vsel %vm93, %v2448, 0.0
    %2453 = vadd.xlane.f32.xlu0 %v2452
    %v2454 = vpop.xlane.xlu0 %2453
    %v2455 = vsel %vm93, %v2449, 0.0
    %2456 = vadd.xlane.f32.xlu0 %v2455
    %v2457 = vpop.xlane.xlu0 %2456
    %v2458 = vsel %vm93, %v2450, 0.0
    %2459 = vadd.xlane.f32.xlu0 %v2458
    %v2460 = vpop.xlane.xlu0 %2459
    %v2461 = vsel %vm93, %v2451, 0.0
    %2462 = vadd.xlane.f32.xlu0 %v2461
    %v2463 = vpop.xlane.xlu0 %2462
    %v2464 = vmul.f32 %v2454, 0.03125
    %v2465 = vmul.f32 %v2457, 0.03125
    %v2466 = vmul.f32 %v2460, 0.03125
    %v2467 = vmul.f32 %v2463, 0.03125
    %v2468 = vmul.f32 %v2448, %v2448
    %v2469 = vmul.f32 %v2449, %v2449
    %v2470 = vmul.f32 %v2450, %v2450
    %v2471 = vmul.f32 %v2451, %v2451
    %v2472 = vsel %vm93, %v2468, 0.0
    %2473 = vadd.xlane.f32.xlu0 %v2472
    %v2474 = vpop.xlane.xlu0 %2473
    %v2475 = vsel %vm93, %v2469, 0.0
    %2476 = vadd.xlane.f32.xlu0 %v2475
    %v2477 = vpop.xlane.xlu0 %2476
    %v2478 = vsel %vm93, %v2470, 0.0
    %2479 = vadd.xlane.f32.xlu0 %v2478
    %v2480 = vpop.xlane.xlu0 %2479
    %v2481 = vsel %vm93, %v2471, 0.0
    %2482 = vadd.xlane.f32.xlu0 %v2481
    %v2483 = vpop.xlane.xlu0 %2482
    %v2484 = vmul.f32 %v2474, 0.03125
    %v2485 = vmul.f32 %v2477, 0.03125
    %v2486 = vmul.f32 %v2480, 0.03125
    %v2487 = vmul.f32 %v2483, 0.03125
    %v2488 = vmul.f32 %v2464, %v2464
    %v2489 = vmul.f32 %v2465, %v2465
    %v2490 = vmul.f32 %v2466, %v2466
    %v2491 = vmul.f32 %v2467, %v2467
    %v2492 = vsub.f32 %v2484, %v2488
    %v2493 = vsub.f32 %v2485, %v2489
    %v2494 = vsub.f32 %v2486, %v2490
    %v2495 = vsub.f32 %v2487, %v2491
    %v2496 = vsub.f32 %v2448, %v2464
    %v2497 = vsub.f32 %v2449, %v2465
    %v2498 = vsub.f32 %v2450, %v2466
    %v2499 = vsub.f32 %v2451, %v2467
    %v2500 = vadd.f32 %v2492, 1e-05
    %v2501 = vadd.f32 %v2493, 1e-05
    %v2502 = vadd.f32 %v2494, 1e-05
    %v2503 = vadd.f32 %v2495, 1e-05
    %v2504 = vrsqrt.pop %v2500
    %v2505 = vrsqrt.pop %v2501
    %v2506 = vrsqrt.pop %v2502
    %v2507 = vrsqrt.pop %v2503
    %v2508 = vmul.f32 %v2496, %v2504
    %v2509 = vmul.f32 %v2497, %v2505
    %v2510 = vmul.f32 %v2498, %v2506
    %v2511 = vmul.f32 %v2499, %v2507
    %v2512 = vlaneseq
    %v2513 = vshrl.u32 %v2512, 7
    %v2514 = vsub.s32 0, %v2513
    %v2515 = vrot.slane %v1592, %v2514
    %v2516 = vmul.f32 %v2508, %v2515
    %v2517 = vmul.f32 %v2509, %v2515
    %v2518 = vmul.f32 %v2510, %v2515
    %v2519 = vmul.f32 %v2511, %v2515
    %v2520 = vlaneseq
    %v2521 = vshrl.u32 %v2520, 7
    %v2522 = vsub.s32 0, %v2521
    %v2523 = vrot.slane %v1593, %v2522
    %v2524 = vadd.f32 %v2516, %v2523
    %v2525 = vadd.f32 %v2517, %v2523
    %v2526 = vadd.f32 %v2518, %v2523
    %v2527 = vadd.f32 %v2519, %v2523
    %v2528 = vpack.c.bf16 %v2525, %v2524
    %v2529 = vpack.c.bf16 %v2527, %v2526
    %v2530 = vlaneseq
    %v2531 = vshrl.u32 %v2530, 7
    %v2532 = vsub.s32 0, %v2531
    %v2533 = vrot.slane %v1598, %v2532
    %v2538 = vunpack.c.l.b16 %v1539
    %v2539 = vunpack.c.l.b16 %v1540
    %v2540 = vunpack.c.l.b16 %v1541
    %v2541 = vunpack.c.l.b16 %v1542
    %v2542 = vpack.c.b16 %v2539, %v2538
    %v2543 = vpack.c.b16 %v2541, %v2540
    %v2547 = vsel %vm93, %v2528, 0
    %v2550 = vsel %vm93, %v2529, 0
    %2552 = vmatprep.subr.bf16.mxu0 0
    %2553 = vmatpush1.bf16.msra.mxu0 %v2542
    %2554 = vmatprep.subr.bf16.mxu0 0
    %2555 = vmatpush1.bf16.msra.mxu0 %v2543
    %2556 = vmatprep.subr.bf16.mxu0 0
    %2557 = vmatpush1.bf16.msra.mxu0 0
    %2558 = vmatprep.subr.bf16.mxu0 0
    %2559 = vmatpush1.bf16.msra.mxu0 0
    %2560 = vmatprep.subr.bf16.mxu0 0
    %2561 = vmatpush1.bf16.msra.mxu0 0
    %2562 = vmatprep.subr.bf16.mxu0 0
    %2563 = vmatpush1.bf16.msra.mxu0 0
    %2564 = vmatprep.subr.bf16.mxu0 0
    %2565 = vmatpush1.bf16.msra.mxu0 0
    %2566 = vmatprep.subr.bf16.mxu0 0
    %2567 = vmatpush1.bf16.msra.mxu0 0
    %2568 = vmatprep.subr.bf16.mxu0 0
    %2569 = vmatpush1.bf16.msra.mxu0 0
    %2570 = vmatprep.subr.bf16.mxu0 0
    %2571 = vmatpush1.bf16.msra.mxu0 0
    %2572 = vmatprep.subr.bf16.mxu0 0
    %2573 = vmatpush1.bf16.msra.mxu0 0
    %2574 = vmatprep.subr.bf16.mxu0 0
    %2575 = vmatpush1.bf16.msra.mxu0 0
    %2576 = vmatprep.subr.bf16.mxu0 0
    %2577 = vmatpush1.bf16.msra.mxu0 0
    %2578 = vmatprep.subr.bf16.mxu0 0
    %2579 = vmatpush1.bf16.msra.mxu0 0
    %2580 = vmatprep.subr.bf16.mxu0 0
    %2581 = vmatpush1.bf16.msra.mxu0 0
    %2582 = vmatprep.subr.bf16.mxu0 0
    %2583 = vmatpush1.bf16.msra.mxu0 0
    %2584 = vmatprep.mubr.bf16.mxu0 0
    %2585 = vmatmul.mubr.bf16.gmra.mrb[0].mxu0 %v2547
    %v2586 = vpop.f32.mrb[0].mxu0
    %v2587 = vadd.f32 %v2533, %v2586
    %v2588 = vpop.f32.mrb[0].mxu0
    %v2589 = vpop.f32.mrb[0].mxu0
    %v2590 = vadd.f32 %v2533, %v2589
    %v2591 = vpop.f32.mrb[0].mxu0
    %2592 = vmatprep.mubr.bf16.mxu0 0
    %2593 = vmatmul.mubr.bf16.gmra.mrb[0].mxu0 %v2550
    %v2594 = vpop.f32.mrb[0].mxu0
    %v2595 = vadd.f32 %v2533, %v2594
    %v2596 = vpop.f32.mrb[0].mxu0
    %v2597 = vpop.f32.mrb[0].mxu0
    %v2598 = vadd.f32 %v2533, %v2597
    %v2599 = vpop.f32.mrb[0].mxu0
    %2600 = vdwg.mxu0
    %v2601 = vmul.f32 %v2587, %v2587
    %v2602 = vmul.f32 %v2590, %v2590
    %v2603 = vmul.f32 %v2595, %v2595
    %v2604 = vmul.f32 %v2598, %v2598
    %v2605 = vmul.f32 %v2587, %v2601
    %v2606 = vmul.f32 %v2590, %v2602
    %v2607 = vmul.f32 %v2595, %v2603
    %v2608 = vmul.f32 %v2598, %v2604
    %v2609 = vmul.f32 %v2605, 0.044715
    %v2610 = vmul.f32 %v2606, 0.044715
    %v2611 = vmul.f32 %v2607, 0.044715
    %v2612 = vmul.f32 %v2608, 0.044715
    %v2613 = vadd.f32 %v2587, %v2609
    %v2614 = vadd.f32 %v2590, %v2610
    %v2615 = vadd.f32 %v2595, %v2611
    %v2616 = vadd.f32 %v2598, %v2612
    %v2617 = vmul.f32 %v2613, 0.7978846
    %v2618 = vmul.f32 %v2614, 0.7978846
    %v2619 = vmul.f32 %v2615, 0.7978846
    %v2620 = vmul.f32 %v2616, 0.7978846
    %v2621 = vtanh.pop %v2617
    %v2622 = vtanh.pop %v2618
    %v2623 = vtanh.pop %v2619
    %v2624 = vtanh.pop %v2620
    %v2625 = vadd.f32 %v2621, 1.0
    %v2626 = vadd.f32 %v2622, 1.0
    %v2627 = vadd.f32 %v2623, 1.0
    %v2628 = vadd.f32 %v2624, 1.0
    %v2629 = vmul.f32 %v2625, 0.5
    %v2630 = vmul.f32 %v2626, 0.5
    %v2631 = vmul.f32 %v2627, 0.5
    %v2632 = vmul.f32 %v2628, 0.5
    %v2633 = vmul.f32 %v2587, %v2629
    %v2634 = vmul.f32 %v2590, %v2630
    %v2635 = vmul.f32 %v2595, %v2631
    %v2636 = vmul.f32 %v2598, %v2632
    %v2637 = vpack.c.bf16 %v2634, %v2633
    %v2638 = vpack.c.bf16 %v2636, %v2635
    %v2639 = vlaneseq
    %v2640 = vshrl.u32 %v2639, 7
    %v2641 = vsub.s32 0, %v2640
    %v2642 = vrot.slane %v1599, %v2641
    %v2659 = vunpack.c.l.b16 %v1543
    %v2660 = vunpack.c.l.b16 %v1544
    %v2661 = vunpack.c.l.b16 %v1545
    %v2662 = vunpack.c.l.b16 %v1546
    %v2663 = vunpack.c.l.b16 %v1547
    %v2664 = vunpack.c.l.b16 %v1548
    %v2665 = vunpack.c.l.b16 %v1549
    %v2666 = vunpack.c.l.b16 %v1550
    %v2667 = vunpack.c.l.b16 %v1551
    %v2668 = vunpack.c.l.b16 %v1552
    %v2669 = vunpack.c.l.b16 %v1553
    %v2670 = vunpack.c.l.b16 %v1554
    %v2671 = vunpack.c.l.b16 %v1555
    %v2672 = vunpack.c.l.b16 %v1556
    %v2673 = vunpack.c.l.b16 %v1557
    %v2674 = vunpack.c.l.b16 %v1558
    %v2675 = vpack.c.b16 %v2660, %v2659
    %v2676 = vpack.c.b16 %v2662, %v2661
    %v2677 = vpack.c.b16 %v2664, %v2663
    %v2678 = vpack.c.b16 %v2666, %v2665
    %v2679 = vpack.c.b16 %v2668, %v2667
    %v2680 = vpack.c.b16 %v2670, %v2669
    %v2681 = vpack.c.b16 %v2672, %v2671
    %v2682 = vpack.c.b16 %v2674, %v2673
    %2691 = vmatprep.subr.bf16.mxu0 0
    %2692 = vmatpush1.bf16.msra.mxu0 %v2675
    %2693 = vmatprep.subr.bf16.mxu0 0
    %2694 = vmatpush1.bf16.msra.mxu0 %v2676
    %2695 = vmatprep.subr.bf16.mxu0 0
    %2696 = vmatpush1.bf16.msra.mxu0 %v2677
    %2697 = vmatprep.subr.bf16.mxu0 0
    %2698 = vmatpush1.bf16.msra.mxu0 %v2678
    %2699 = vmatprep.subr.bf16.mxu0 0
    %2700 = vmatpush1.bf16.msra.mxu0 %v2679
    %2701 = vmatprep.subr.bf16.mxu0 0
    %2702 = vmatpush1.bf16.msra.mxu0 %v2680
    %2703 = vmatprep.subr.bf16.mxu0 0
    %2704 = vmatpush1.bf16.msra.mxu0 %v2681
    %2705 = vmatprep.subr.bf16.mxu0 0
    %2706 = vmatpush1.bf16.msra.mxu0 %v2682
    %2707 = vmatprep.subr.bf16.mxu0 0
    %2708 = vmatpush1.bf16.msra.mxu0 0
    %2709 = vmatprep.subr.bf16.mxu0 0
    %2710 = vmatpush1.bf16.msra.mxu0 0
    %2711 = vmatprep.subr.bf16.mxu0 0
    %2712 = vmatpush1.bf16.msra.mxu0 0
    %2713 = vmatprep.subr.bf16.mxu0 0
    %2714 = vmatpush1.bf16.msra.mxu0 0
    %2715 = vmatprep.subr.bf16.mxu0 0
    %2716 = vmatpush1.bf16.msra.mxu0 0
    %2717 = vmatprep.subr.bf16.mxu0 0
    %2718 = vmatpush1.bf16.msra.mxu0 0
    %2719 = vmatprep.subr.bf16.mxu0 0
    %2720 = vmatpush1.bf16.msra.mxu0 0
    %2721 = vmatprep.subr.bf16.mxu0 0
    %2722 = vmatpush1.bf16.msra.mxu0 0
    %2723 = vmatprep.mubr.bf16.mxu0 0
    %2724 = vmatmul.mubr.bf16.gmra.mrb[0].mxu0 %v2637
    %v2725 = vpop.f32.mrb[0].mxu0
    %v2726 = vadd.f32 %v2642, %v2725
    %v2727 = vpop.f32.mrb[0].mxu0
    %v2728 = vpop.f32.mrb[0].mxu0
    %v2729 = vadd.f32 %v2642, %v2728
    %v2730 = vpop.f32.mrb[0].mxu0
    %2731 = vmatprep.mubr.bf16.mxu0 0
    %2732 = vmatmul.mubr.bf16.gmra.mrb[0].mxu0 %v2638
    %v2733 = vpop.f32.mrb[0].mxu0
    %v2734 = vadd.f32 %v2642, %v2733
    %v2735 = vpop.f32.mrb[0].mxu0
    %v2736 = vpop.f32.mrb[0].mxu0
    %v2737 = vadd.f32 %v2642, %v2736
    %v2738 = vpop.f32.mrb[0].mxu0
    %2739 = vdwg.mxu0
    %v2740 = vadd.f32 %v2524, %v2726
    %v2741 = vadd.f32 %v2525, %v2729
    %v2742 = vadd.f32 %v2526, %v2734
    %v2743 = vadd.f32 %v2527, %v2737
    %v2744 = vsel %vm93, %v2740, 0.0
    %2745 = vadd.xlane.f32.xlu0 %v2744
    %v2746 = vpop.xlane.xlu0 %2745
    %v2747 = vsel %vm93, %v2741, 0.0
    %2748 = vadd.xlane.f32.xlu0 %v2747
    %v2749 = vpop.xlane.xlu0 %2748
    %v2750 = vsel %vm93, %v2742, 0.0
    %2751 = vadd.xlane.f32.xlu0 %v2750
    %v2752 = vpop.xlane.xlu0 %2751
    %v2753 = vsel %vm93, %v2743, 0.0
    %2754 = vadd.xlane.f32.xlu0 %v2753
    %v2755 = vpop.xlane.xlu0 %2754
    %v2756 = vmul.f32 %v2746, 0.03125
    %v2757 = vmul.f32 %v2749, 0.03125
    %v2758 = vmul.f32 %v2752, 0.03125
    %v2759 = vmul.f32 %v2755, 0.03125
    %v2760 = vmul.f32 %v2740, %v2740
    %v2761 = vmul.f32 %v2741, %v2741
    %v2762 = vmul.f32 %v2742, %v2742
    %v2763 = vmul.f32 %v2743, %v2743
    %v2764 = vsel %vm93, %v2760, 0.0
    %2765 = vadd.xlane.f32.xlu0 %v2764
    %v2766 = vpop.xlane.xlu0 %2765
    %v2767 = vsel %vm93, %v2761, 0.0
    %2768 = vadd.xlane.f32.xlu0 %v2767
    %v2769 = vpop.xlane.xlu0 %2768
    %v2770 = vsel %vm93, %v2762, 0.0
    %2771 = vadd.xlane.f32.xlu0 %v2770
    %v2772 = vpop.xlane.xlu0 %2771
    %v2773 = vsel %vm93, %v2763, 0.0
    %2774 = vadd.xlane.f32.xlu0 %v2773
    %v2775 = vpop.xlane.xlu0 %2774
    %v2776 = vmul.f32 %v2766, 0.03125
    %v2777 = vmul.f32 %v2769, 0.03125
    %v2778 = vmul.f32 %v2772, 0.03125
    %v2779 = vmul.f32 %v2775, 0.03125
    %v2780 = vmul.f32 %v2756, %v2756
    %v2781 = vmul.f32 %v2757, %v2757
    %v2782 = vmul.f32 %v2758, %v2758
    %v2783 = vmul.f32 %v2759, %v2759
    %v2784 = vsub.f32 %v2776, %v2780
    %v2785 = vsub.f32 %v2777, %v2781
    %v2786 = vsub.f32 %v2778, %v2782
    %v2787 = vsub.f32 %v2779, %v2783
    %v2788 = vsub.f32 %v2740, %v2756
    %v2789 = vsub.f32 %v2741, %v2757
    %v2790 = vsub.f32 %v2742, %v2758
    %v2791 = vsub.f32 %v2743, %v2759
    %v2792 = vadd.f32 %v2784, 1e-05
    %v2793 = vadd.f32 %v2785, 1e-05
    %v2794 = vadd.f32 %v2786, 1e-05
    %v2795 = vadd.f32 %v2787, 1e-05
    %v2796 = vrsqrt.pop %v2792
    %v2797 = vrsqrt.pop %v2793
    %v2798 = vrsqrt.pop %v2794
    %v2799 = vrsqrt.pop %v2795
    %v2800 = vmul.f32 %v2788, %v2796
    %v2801 = vmul.f32 %v2789, %v2797
    %v2802 = vmul.f32 %v2790, %v2798
    %v2803 = vmul.f32 %v2791, %v2799
    %v2804 = vlaneseq
    %v2805 = vshrl.u32 %v2804, 7
    %v2806 = vsub.s32 0, %v2805
    %v2807 = vrot.slane %v1596, %v2806
    %v2808 = vmul.f32 %v2800, %v2807
    %v2809 = vmul.f32 %v2801, %v2807
    %v2810 = vmul.f32 %v2802, %v2807
    %v2811 = vmul.f32 %v2803, %v2807
    %v2812 = vlaneseq
    %v2813 = vshrl.u32 %v2812, 7
    %v2814 = vsub.s32 0, %v2813
    %v2815 = vrot.slane %v1597, %v2814
    %v2816 = vadd.f32 %v2808, %v2815
    %v2817 = vadd.f32 %v2809, %v2815
    %v2818 = vadd.f32 %v2810, %v2815
    %v2819 = vadd.f32 %v2811, %v2815
    %s2820 = scalar_lea.vmem [#allocation2], 224
    %v2821 = vld [vmem:[%s2820] sm:$0xf]
    %v2822 = vld [vmem:[%s2820 + $0x4] sm:$0xf]
    %v2823 = vld [vmem:[%s2820 + $0x8] sm:$0xf]
    %v2824 = vld [vmem:[%s2820 + $0xc] sm:$0xf]
    %v2825 = vld [vmem:[%s2820 + $0x10] sm:$0xf]
    %v2826 = vld [vmem:[%s2820 + $0x14] sm:$0xf]
    %v2827 = vld [vmem:[%s2820 + $0x18] sm:$0xf]
    %v2828 = vld [vmem:[%s2820 + $0x1c] sm:$0xf]
    %v2829 = vld [vmem:[%s2820 + $0x20] sm:$0xf]
    %v2830 = vld [vmem:[%s2820 + $0x24] sm:$0xf]
    %v2831 = vld [vmem:[%s2820 + $0x28] sm:$0xf]
    %v2832 = vld [vmem:[%s2820 + $0x2c] sm:$0xf]
    %v2833 = vld [vmem:[%s2820 + $0x30] sm:$0xf]
    %v2834 = vld [vmem:[%s2820 + $0x34] sm:$0xf]
    %v2835 = vld [vmem:[%s2820 + $0x38] sm:$0xf]
    %v2836 = vld [vmem:[%s2820 + $0x3c] sm:$0xf]
    %v2837 = vld [vmem:[%s2820 + $0x40] sm:$0xf]
    %v2838 = vld [vmem:[%s2820 + $0x44] sm:$0xf]
    %v2839 = vld [vmem:[%s2820 + $0x48] sm:$0xf]
    %v2840 = vld [vmem:[%s2820 + $0x4c] sm:$0xf]
    %v2841 = vld [vmem:[%s2820 + $0x50] sm:$0xf]
    %v2842 = vld [vmem:[%s2820 + $0x54] sm:$0xf]
    %v2843 = vld [vmem:[%s2820 + $0x58] sm:$0xf]
    %v2844 = vld [vmem:[%s2820 + $0x5c] sm:$0xf]
    %v2845 = vld [vmem:[%s2820 + $0x60] sm:$0xf]
    %v2846 = vld [vmem:[%s2820 + $0x64] sm:$0xf]
    %v2847 = vld [vmem:[%s2820 + $0x68] sm:$0xf]
    %v2848 = vld [vmem:[%s2820 + $0x6c] sm:$0xf]
    %s2849 = scalar_lea.vmem %s8, 528
    %v2850 = vld [vmem:[%s2849] sm:$0xff]
    %v2851 = vld [vmem:[%s2849 + $0x8] sm:$0xff]
    %v2852 = vld [vmem:[%s2849 + $0x10] sm:$0xff]
    %v2853 = vld [vmem:[%s2849 + $0x18] sm:$0xff]
    %v2854 = vld [vmem:[%s2849 + $0x20] sm:$0xff]
    %v2855 = vld [vmem:[%s2849 + $0x28] sm:$0xff]
    %v2856 = vld [vmem:[%s2849 + $0x30] sm:$0xff]
    %v2857 = vld [vmem:[%s2849 + $0x38] sm:$0xff]
    %v2858 = vld [vmem:[%s2849 + $0x40] sm:$0xff]
    %v2859 = vld [vmem:[%s2849 + $0x48] sm:$0xff]
    %v2860 = vld [vmem:[%s2849 + $0x50] sm:$0xff]
    %v2861 = vld [vmem:[%s2849 + $0x58] sm:$0xff]
    %v2862 = vld [vmem:[%s2849 + $0x60] sm:$0xff]
    %v2863 = vld [vmem:[%s2849 + $0x68] sm:$0xff]
    %v2864 = vld [vmem:[%s2849 + $0x70] sm:$0xff]
    %v2865 = vld [vmem:[%s2849 + $0x78] sm:$0xff]
    %v2866 = vld [vmem:[%s2849 + $0x80] sm:$0xff]
    %v2867 = vld [vmem:[%s2849 + $0x88] sm:$0xff]
    %v2868 = vld [vmem:[%s2849 + $0x90] sm:$0xff]
    %v2869 = vld [vmem:[%s2849 + $0x98] sm:$0xff]
    %v2870 = vld [vmem:[%s2849 + $0xa0] sm:$0xff]
    %v2871 = vld [vmem:[%s2849 + $0xa8] sm:$0xff]
    %v2872 = vld [vmem:[%s2849 + $0xb0] sm:$0xff]
    %v2873 = vld [vmem:[%s2849 + $0xb8] sm:$0xff]
    %v2874 = vld [vmem:[%s2849 + $0xc0] sm:$0xff]
    %v2875 = vld [vmem:[%s2849 + $0xc8] sm:$0xff]
    %v2876 = vld [vmem:[%s2849 + $0xd0] sm:$0xff]
    %v2877 = vld [vmem:[%s2849 + $0xd8] sm:$0xff]
    %v2878 = vld [vmem:[%s2849 + $0xe0] sm:$0xff]
    %v2879 = vld [vmem:[%s2849 + $0xe8] sm:$0xff]
    %v2880 = vld [vmem:[%s2849 + $0xf0] sm:$0xff]
    %v2881 = vld [vmem:[%s2849 + $0xf8] sm:$0xff]
    %v2882 = vld [vmem:[%s2849 + $0x100] sm:$0x1]
    %v2883 = vld [vmem:[%s2849 + $0x101] sm:$0x1]
    %v2884 = vld [vmem:[%s2849 + $0x102] sm:$0x1]
    %v2885 = vld [vmem:[%s2849 + $0x103] sm:$0x1]
    %v2886 = vld [vmem:[%s2849 + $0x104] sm:$0x1]
    %v2887 = vld [vmem:[%s2849 + $0x105] sm:$0x1]
    %v2888 = vld [vmem:[%s2849 + $0x106] sm:$0x1]
    %v2889 = vld [vmem:[%s2849 + $0x107] sm:$0x1]
    %v2890 = vpack.c.bf16 %v2817, %v2816
    %v2891 = vpack.c.bf16 %v2819, %v2818
    %v2892 = vlaneseq
    %v2893 = vshrl.u32 %v2892, 7
    %v2894 = vsub.s32 0, %v2893
    %v2895 = vrot.slane %v2884, %v2894
    %v2900 = vunpack.c.l.b16 %v2821
    %v2901 = vunpack.c.l.b16 %v2822
    %v2902 = vunpack.c.l.b16 %v2823
    %v2903 = vunpack.c.l.b16 %v2824
    %v2904 = vpack.c.b16 %v2901, %v2900
    %v2905 = vpack.c.b16 %v2903, %v2902
    %v2909 = vsel %vm93, %v2890, 0
    %v2912 = vsel %vm93, %v2891, 0
    %2914 = vmatprep.subr.bf16.mxu0 0
    %2915 = vmatpush1.bf16.msra.mxu0 %v2904
    %2916 = vmatprep.subr.bf16.mxu0 0
    %2917 = vmatpush1.bf16.msra.mxu0 %v2905
    %2918 = vmatprep.subr.bf16.mxu0 0
    %2919 = vmatpush1.bf16.msra.mxu0 0
    %2920 = vmatprep.subr.bf16.mxu0 0
    %2921 = vmatpush1.bf16.msra.mxu0 0
    %2922 = vmatprep.subr.bf16.mxu0 0
    %2923 = vmatpush1.bf16.msra.mxu0 0
    %2924 = vmatprep.subr.bf16.mxu0 0
    %2925 = vmatpush1.bf16.msra.mxu0 0
    %2926 = vmatprep.subr.bf16.mxu0 0
    %2927 = vmatpush1.bf16.msra.mxu0 0
    %2928 = vmatprep.subr.bf16.mxu0 0
    %2929 = vmatpush1.bf16.msra.mxu0 0
    %2930 = vmatprep.subr.bf16.mxu0 0
    %2931 = vmatpush1.bf16.msra.mxu0 0
    %2932 = vmatprep.subr.bf16.mxu0 0
    %2933 = vmatpush1.bf16.msra.mxu0 0
    %2934 = vmatprep.subr.bf16.mxu0 0
    %2935 = vmatpush1.bf16.msra.mxu0 0
    %2936 = vmatprep.subr.bf16.mxu0 0
    %2937 = vmatpush1.bf16.msra.mxu0 0
    %2938 = vmatprep.subr.bf16.mxu0 0
    %2939 = vmatpush1.bf16.msra.mxu0 0
    %2940 = vmatprep.subr.bf16.mxu0 0
    %2941 = vmatpush1.bf16.msra.mxu0 0
    %2942 = vmatprep.subr.bf16.mxu0 0
    %2943 = vmatpush1.bf16.msra.mxu0 0
    %2944 = vmatprep.subr.bf16.mxu0 0
    %2945 = vmatpush1.bf16.msra.mxu0 0
    %2946 = vmatprep.mubr.bf16.mxu0 0
    %2947 = vmatmul.mubr.bf16.gmra.mrb[0].mxu0 %v2909
    %v2948 = vpop.f32.mrb[0].mxu0
    %v2949 = vadd.f32 %v2895, %v2948
    %v2950 = vpop.f32.mrb[0].mxu0
    %v2951 = vpop.f32.mrb[0].mxu0
    %v2952 = vadd.f32 %v2895, %v2951
    %v2953 = vpop.f32.mrb[0].mxu0
    %2954 = vmatprep.mubr.bf16.mxu0 0
    %2955 = vmatmul.mubr.bf16.gmra.mrb[0].mxu0 %v2912
    %v2956 = vpop.f32.mrb[0].mxu0
    %v2957 = vadd.f32 %v2895, %v2956
    %v2958 = vpop.f32.mrb[0].mxu0
    %v2959 = vpop.f32.mrb[0].mxu0
    %v2960 = vadd.f32 %v2895, %v2959
    %v2961 = vpop.f32.mrb[0].mxu0
    %2962 = vdwg.mxu0
    %v2963 = vmul.f32 %v2949, %v2949
    %v2964 = vmul.f32 %v2952, %v2952
    %v2965 = vmul.f32 %v2957, %v2957
    %v2966 = vmul.f32 %v2960, %v2960
    %2967 = vmatprep.subr.mxu0 0.0
    %2968 = vmatpush1.msra.mxu0 %v2850
    %2969 = vmatprep.subr.mxu0 0.0
    %2970 = vmatpush1.msra.mxu0 %v2851
    %2971 = vmatprep.subr.mxu0 0.0
    %2972 = vmatpush1.msra.mxu0 %v2852
    %2973 = vmatprep.subr.mxu0 0.0
    %2974 = vmatpush1.msra.mxu0 %v2853
    %2975 = vmatprep.subr.mxu0 0.0
    %2976 = vmatpush1.msra.mxu0 %v2854
    %2977 = vmatprep.subr.mxu0 0.0
    %2978 = vmatpush1.msra.mxu0 %v2855
    %2979 = vmatprep.subr.mxu0 0.0
    %2980 = vmatpush1.msra.mxu0 %v2856
    %2981 = vmatprep.subr.mxu0 0.0
    %2982 = vmatpush1.msra.mxu0 %v2857
    %2983 = vmatprep.subr.mxu0 0.0
    %2984 = vmatpush1.msra.mxu0 %v2858
    %2985 = vmatprep.subr.mxu0 0.0
    %2986 = vmatpush1.msra.mxu0 %v2859
    %2987 = vmatprep.subr.mxu0 0.0
    %2988 = vmatpush1.msra.mxu0 %v2860
    %2989 = vmatprep.subr.mxu0 0.0
    %2990 = vmatpush1.msra.mxu0 %v2861
    %2991 = vmatprep.subr.mxu0 0.0
    %2992 = vmatpush1.msra.mxu0 %v2862
    %2993 = vmatprep.subr.mxu0 0.0
    %2994 = vmatpush1.msra.mxu0 %v2863
    %2995 = vmatprep.subr.mxu0 0.0
    %2996 = vmatpush1.msra.mxu0 %v2864
    %2997 = vmatprep.subr.mxu0 0.0
    %2998 = vmatpush1.msra.mxu0 %v2865
    %2999 = vmatprep.subr.mxu0 0.0
    %3000 = vmatpush1.msra.mxu0 %v2866
    %3001 = vmatprep.subr.mxu0 0.0
    %3002 = vmatpush1.msra.mxu0 %v2867
    %3003 = vmatprep.subr.mxu0 0.0
    %3004 = vmatpush1.msra.mxu0 %v2868
    %3005 = vmatprep.subr.mxu0 0.0
    %3006 = vmatpush1.msra.mxu0 %v2869
    %3007 = vmatprep.subr.mxu0 0.0
    %3008 = vmatpush1.msra.mxu0 %v2870
    %3009 = vmatprep.subr.mxu0 0.0
    %3010 = vmatpush1.msra.mxu0 %v2871
    %3011 = vmatprep.subr.mxu0 0.0
    %3012 = vmatpush1.msra.mxu0 %v2872
    %3013 = vmatprep.subr.mxu0 0.0
    %3014 = vmatpush1.msra.mxu0 %v2873
    %3015 = vmatprep.subr.mxu0 0.0
    %3016 = vmatpush1.msra.mxu0 %v2874
    %3017 = vmatprep.subr.mxu0 0.0
    %3018 = vmatpush1.msra.mxu0 %v2875
    %3019 = vmatprep.subr.mxu0 0.0
    %3020 = vmatpush1.msra.mxu0 %v2876
    %3021 = vmatprep.subr.mxu0 0.0
    %3022 = vmatpush1.msra.mxu0 %v2877
    %3023 = vmatprep.subr.mxu0 0.0
    %3024 = vmatpush1.msra.mxu0 %v2878
    %3025 = vmatprep.subr.mxu0 0.0
    %3026 = vmatpush1.msra.mxu0 %v2879
    %3027 = vmatprep.subr.mxu0 0.0
    %3028 = vmatpush1.msra.mxu0 %v2880
    %3029 = vmatprep.subr.mxu0 0.0
    %3030 = vmatpush1.msra.mxu0 %v2881
    %3031 = vmatprep.mubr.f32.mxu0 %v2963
    %3032 = vmatmul.mubr.f32.gmra.mrb[0].mxu0 %v2949
    %v3033 = vpop.f32.mrb[0].mxu0
    %v3034 = vadd.f32 0.0, %v3033
    %v3035 = vpop.f32.mrb[0].mxu0
    %3036 = vmatprep.mubr.f32.mxu0 %v2964
    %3037 = vmatmul.mubr.f32.gmra.mrb[0].mxu0 %v2952
    %v3038 = vpop.f32.mrb[0].mxu0
    %v3039 = vadd.f32 0.0, %v3038
    %v3040 = vpop.f32.mrb[0].mxu0
    %3041 = vmatprep.mubr.f32.mxu0 %v2965
    %3042 = vmatmul.mubr.f32.gmra.mrb[0].mxu0 %v2957
    %v3043 = vpop.f32.mrb[0].mxu0
    %v3044 = vadd.f32 0.0, %v3043
    %v3045 = vpop.f32.mrb[0].mxu0
    %3046 = vmatprep.mubr.f32.mxu0 %v2966
    %3047 = vmatmul.mubr.f32.gmra.mrb[0].mxu0 %v2960
    %v3048 = vpop.f32.mrb[0].mxu0
    %v3049 = vadd.f32 0.0, %v3048
    %v3050 = vpop.f32.mrb[0].mxu0
    %3051 = vdwg.mxu0
    %v3052 = vsel %vm469, %v3034, -inf
    %3053 = vmax.xlane.f32.xlu0 %v3052
    %v3054 = vpop.xlane.xlu0 %3053
    %v3055 = vsel %vm469, %v3039, -inf
    %3056 = vmax.xlane.f32.xlu0 %v3055
    %v3057 = vpop.xlane.xlu0 %3056
    %v3058 = vsel %vm469, %v3044, -inf
    %3059 = vmax.xlane.f32.xlu0 %v3058
    %v3060 = vpop.xlane.xlu0 %3059
    %v3061 = vsel %vm469, %v3049, -inf
    %3062 = vmax.xlane.f32.xlu0 %v3061
    %v3063 = vpop.xlane.xlu0 %3062
    %v3064 = vsub.f32 %v3034, %v3054
    %v3065 = vsub.f32 %v3039, %v3057
    %v3066 = vsub.f32 %v3044, %v3060
    %v3067 = vsub.f32 %v3049, %v3063
    %v3068 = vmul.f32 %v3064, 1.442695
    %v3069 = vpow.pop %v3068
    %v3070 = vmul.f32 %v3065, 1.442695
    %v3071 = vpow.pop %v3070
    %v3072 = vmul.f32 %v3066, 1.442695
    %v3073 = vpow.pop %v3072
    %v3074 = vmul.f32 %v3067, 1.442695
    %v3075 = vpow.pop %v3074
    %v3076 = vsel %vm494, %v3034, -inf
    %v3077 = vsel %vm494, %v3039, -inf
    %v3078 = vsel %vm494, %v3044, -inf
    %v3079 = vsel %vm494, %v3049, -inf
    %v3080 = vmax.f32 %v3076, %v3077
    %v3081 = vmax.f32 %v3078, %v3079
    %v3082 = vmax.f32 %v3080, %v3081
    %3083 = vmax.xlane.f32.xlu0 %v3082
    %v3084 = vpop.xlane.xlu0 %3083
    %v3085 = vrot.slane %v3084, 4
    %v3086 = vmax.f32 %v3084, %v3085
    %v3087 = vrot.slane %v3086, 2
    %v3088 = vmax.f32 %v3086, %v3087
    %v3089 = vrot.slane %v3088, 1
    %v3090 = vmax.f32 %v3088, %v3089
    %s3091 = vtos %v3090
    %v3092 = vstv %s3091
    %v3093 = vsub.f32 %v3034, %v3092
    %v3094 = vsub.f32 %v3039, %v3092
    %v3095 = vsub.f32 %v3044, %v3092
    %v3096 = vsub.f32 %v3049, %v3092
    %v3097 = vmul.f32 %v3093, 1.442695
    %v3098 = vpow.pop %v3097
    %v3099 = vmul.f32 %v3094, 1.442695
    %v3100 = vpow.pop %v3099
    %v3101 = vmul.f32 %v3095, 1.442695
    %v3102 = vpow.pop %v3101
    %v3103 = vmul.f32 %v3096, 1.442695
    %v3104 = vpow.pop %v3103
    %3107 = vrot.lane.b32.xlu0 %v3098, 64
    %v3108 = vpop.permute.xlu0 %3107
    %3109 = vrot.lane.b32.xlu0 %v3100, 64
    %v3110 = vpop.permute.xlu0 %3109
    %3113 = vxpose.xlu0.b32.start [1/16] %v3108, 128
    %3114 = vxpose.xlu0.b32.cont [2/16] %v3110, 128
    %3115 = vxpose.xlu0.b32.cont [3/16] 0.0, 128
    %3116 = vxpose.xlu0.b32.cont [4/16] 0.0, 128
    %3117 = vxpose.xlu0.b32.cont [5/16] 0.0, 128
    %3118 = vxpose.xlu0.b32.cont [6/16] 0.0, 128
    %3119 = vxpose.xlu0.b32.cont [7/16] 0.0, 128
    %3120 = vxpose.xlu0.b32.cont [8/16] 0.0, 128
    %3121 = vxpose.xlu0.b32.cont [9/16] 0.0, 128
    %3122 = vxpose.xlu0.b32.cont [10/16] 0.0, 128
    %3123 = vxpose.xlu0.b32.cont [11/16] 0.0, 128
    %3124 = vxpose.xlu0.b32.cont [12/16] 0.0, 128
    %3125 = vxpose.xlu0.b32.cont [13/16] 0.0, 128
    %3126 = vxpose.xlu0.b32.cont [14/16] 0.0, 128
    %3127 = vxpose.xlu0.b32.cont [15/16] 0.0, 128
    %3128 = vxpose.xlu0.b32.end [16/16] 0.0, 128
    %v3129 = vpop.trf.xlu0
    %v3130 = vpop.trf.xlu0
    %v3131 = vpop.trf.xlu0
    %v3132 = vpop.trf.xlu0
    %v3133 = vpop.trf.xlu0
    %v3134 = vpop.trf.xlu0
    %v3135 = vpop.trf.xlu0
    %v3136 = vpop.trf.xlu0
    %v3137 = vpop.trf.xlu0
    %v3138 = vpop.trf.xlu0
    %v3139 = vpop.trf.xlu0
    %v3140 = vpop.trf.xlu0
    %v3141 = vpop.trf.xlu0
    %v3142 = vpop.trf.xlu0
    %v3143 = vpop.trf.xlu0
    %v3144 = vpop.trf.xlu0
    %3147 = vrot.lane.b32.xlu0 %v2949, 64
    %v3148 = vpop.permute.xlu0 %3147
    %3149 = vrot.lane.b32.xlu0 %v2952, 64
    %v3150 = vpop.permute.xlu0 %3149
    %v3154 = vsel %vm572, %v3129, 0
    %v3157 = vsel %vm572, %v3130, 0
    %v3160 = vsel %vm572, %v3131, 0
    %v3163 = vsel %vm572, %v3132, 0
    %v3166 = vsel %vm572, %v3133, 0
    %v3169 = vsel %vm572, %v3134, 0
    %v3172 = vsel %vm572, %v3135, 0
    %v3175 = vsel %vm572, %v3136, 0
    %3177 = vmatprep.subr.mxu0 0.0
    %3178 = vmatpush1.msra.mxu0 %v3148
    %3179 = vmatprep.subr.mxu0 0.0
    %3180 = vmatpush1.msra.mxu0 %v3150
    %3181 = vmatprep.subr.mxu0 0.0
    %3182 = vmatpush1.msra.mxu0 0.0
    %3183 = vmatprep.subr.mxu0 0.0
    %3184 = vmatpush1.msra.mxu0 0.0
    %3185 = vmatprep.subr.mxu0 0.0
    %3186 = vmatpush1.msra.mxu0 0.0
    %3187 = vmatprep.subr.mxu0 0.0
    %3188 = vmatpush1.msra.mxu0 0.0
    %3189 = vmatprep.subr.mxu0 0.0
    %3190 = vmatpush1.msra.mxu0 0.0
    %3191 = vmatprep.subr.mxu0 0.0
    %3192 = vmatpush1.msra.mxu0 0.0
    %3193 = vmatprep.subr.mxu0 0.0
    %3194 = vmatpush1.msra.mxu0 0.0
    %3195 = vmatprep.subr.mxu0 0.0
    %3196 = vmatpush1.msra.mxu0 0.0
    %3197 = vmatprep.subr.mxu0 0.0
    %3198 = vmatpush1.msra.mxu0 0.0
    %3199 = vmatprep.subr.mxu0 0.0
    %3200 = vmatpush1.msra.mxu0 0.0
    %3201 = vmatprep.subr.mxu0 0.0
    %3202 = vmatpush1.msra.mxu0 0.0
    %3203 = vmatprep.subr.mxu0 0.0
    %3204 = vmatpush1.msra.mxu0 0.0
    %3205 = vmatprep.subr.mxu0 0.0
    %3206 = vmatpush1.msra.mxu0 0.0
    %3207 = vmatprep.subr.mxu0 0.0
    %3208 = vmatpush1.msra.mxu0 0.0
    %3209 = vmatprep.subr.mxu0 0.0
    %3210 = vmatpush1.msra.mxu0 0.0
    %3211 = vmatprep.subr.mxu0 0.0
    %3212 = vmatpush1.msra.mxu0 0.0
    %3213 = vmatprep.subr.mxu0 0.0
    %3214 = vmatpush1.msra.mxu0 0.0
    %3215 = vmatprep.subr.mxu0 0.0
    %3216 = vmatpush1.msra.mxu0 0.0
    %3217 = vmatprep.subr.mxu0 0.0
    %3218 = vmatpush1.msra.mxu0 0.0
    %3219 = vmatprep.subr.mxu0 0.0
    %3220 = vmatpush1.msra.mxu0 0.0
    %3221 = vmatprep.subr.mxu0 0.0
    %3222 = vmatpush1.msra.mxu0 0.0
    %3223 = vmatprep.subr.mxu0 0.0
    %3224 = vmatpush1.msra.mxu0 0.0
    %3225 = vmatprep.subr.mxu0 0.0
    %3226 = vmatpush1.msra.mxu0 0.0
    %3227 = vmatprep.subr.mxu0 0.0
    %3228 = vmatpush1.msra.mxu0 0.0
    %3229 = vmatprep.subr.mxu0 0.0
    %3230 = vmatpush1.msra.mxu0 0.0
    %3231 = vmatprep.subr.mxu0 0.0
    %3232 = vmatpush1.msra.mxu0 0.0
    %3233 = vmatprep.subr.mxu0 0.0
    %3234 = vmatpush1.msra.mxu0 0.0
    %3235 = vmatprep.subr.mxu0 0.0
    %3236 = vmatpush1.msra.mxu0 0.0
    %3237 = vmatprep.subr.mxu0 0.0
    %3238 = vmatpush1.msra.mxu0 0.0
    %3239 = vmatprep.subr.mxu0 0.0
    %3240 = vmatpush1.msra.mxu0 0.0
    %3241 = vmatprep.mubr.f32.mxu0 0.0
    %3242 = vmatmul.mubr.f32.gmra.mrb[0].mxu0 %v3154
    %v3243 = vpop.f32.mrb[0].mxu0
    %v3244 = vadd.f32 0.0, %v3243
    %v3245 = vpop.f32.mrb[0].mxu0
    %3246 = vmatprep.mubr.f32.mxu0 0.0
    %3247 = vmatmul.mubr.f32.gmra.mrb[0].mxu0 %v3157
    %v3248 = vpop.f32.mrb[0].mxu0
    %v3249 = vadd.f32 0.0, %v3248
    %v3250 = vpop.f32.mrb[0].mxu0
    %3251 = vmatprep.mubr.f32.mxu0 0.0
    %3252 = vmatmul.mubr.f32.gmra.mrb[0].mxu0 %v3160
    %v3253 = vpop.f32.mrb[0].mxu0
    %v3254 = vadd.f32 0.0, %v3253
    %v3255 = vpop.f32.mrb[0].mxu0
    %3256 = vmatprep.mubr.f32.mxu0 0.0
    %3257 = vmatmul.mubr.f32.gmra.mrb[0].mxu0 %v3163
    %v3258 = vpop.f32.mrb[0].mxu0
    %v3259 = vadd.f32 0.0, %v3258
    %v3260 = vpop.f32.mrb[0].mxu0
    %3261 = vmatprep.mubr.f32.mxu0 0.0
    %3262 = vmatmul.mubr.f32.gmra.mrb[0].mxu0 %v3166
    %v3263 = vpop.f32.mrb[0].mxu0
    %v3264 = vadd.f32 0.0, %v3263
    %v3265 = vpop.f32.mrb[0].mxu0
    %3266 = vmatprep.mubr.f32.mxu0 0.0
    %3267 = vmatmul.mubr.f32.gmra.mrb[0].mxu0 %v3169
    %v3268 = vpop.f32.mrb[0].mxu0
    %v3269 = vadd.f32 0.0, %v3268
    %v3270 = vpop.f32.mrb[0].mxu0
    %3271 = vmatprep.mubr.f32.mxu0 0.0
    %3272 = vmatmul.mubr.f32.gmra.mrb[0].mxu0 %v3172
    %v3273 = vpop.f32.mrb[0].mxu0
    %v3274 = vadd.f32 0.0, %v3273
    %v3275 = vpop.f32.mrb[0].mxu0
    %3276 = vmatprep.mubr.f32.mxu0 0.0
    %3277 = vmatmul.mubr.f32.gmra.mrb[0].mxu0 %v3175
    %v3278 = vpop.f32.mrb[0].mxu0
    %v3279 = vadd.f32 0.0, %v3278
    %v3280 = vpop.f32.mrb[0].mxu0
    %3281 = vdwg.mxu0
    %v3282 = vmul.f32 %v3244, %v48
    %v3283 = vmul.f32 %v3249, %v49
    %v3284 = vmul.f32 %v3254, %v50
    %v3285 = vmul.f32 %v3259, %v51
    %v3286 = vmul.f32 %v3264, %v52
    %v3287 = vmul.f32 %v3269, %v53
    %v3288 = vmul.f32 %v3274, %v54
    %v3289 = vmul.f32 %v3279, %v55
    %v3291 = vsel %vm469, %v3069, 0
    %v3294 = vsel %vm469, %v3071, 0
    %3296 = vmatprep.subr.mxu0 0.0
    %3297 = vmatpush1.msra.mxu0 %v3282
    %3298 = vmatprep.subr.mxu0 0.0
    %3299 = vmatpush1.msra.mxu0 %v3283
    %3300 = vmatprep.subr.mxu0 0.0
    %3301 = vmatpush1.msra.mxu0 %v3284
    %3302 = vmatprep.subr.mxu0 0.0
    %3303 = vmatpush1.msra.mxu0 %v3285
    %3304 = vmatprep.subr.mxu0 0.0
    %3305 = vmatpush1.msra.mxu0 %v3286
    %3306 = vmatprep.subr.mxu0 0.0
    %3307 = vmatpush1.msra.mxu0 %v3287
    %3308 = vmatprep.subr.mxu0 0.0
    %3309 = vmatpush1.msra.mxu0 %v3288
    %3310 = vmatprep.subr.mxu0 0.0
    %3311 = vmatpush1.msra.mxu0 %v3289
    %3312 = vmatprep.subr.mxu0 0.0
    %3313 = vmatpush1.msra.mxu0 0.0
    %3314 = vmatprep.subr.mxu0 0.0
    %3315 = vmatpush1.msra.mxu0 0.0
    %3316 = vmatprep.subr.mxu0 0.0
    %3317 = vmatpush1.msra.mxu0 0.0
    %3318 = vmatprep.subr.mxu0 0.0
    %3319 = vmatpush1.msra.mxu0 0.0
    %3320 = vmatprep.subr.mxu0 0.0
    %3321 = vmatpush1.msra.mxu0 0.0
    %3322 = vmatprep.subr.mxu0 0.0
    %3323 = vmatpush1.msra.mxu0 0.0
    %3324 = vmatprep.subr.mxu0 0.0
    %3325 = vmatpush1.msra.mxu0 0.0
    %3326 = vmatprep.subr.mxu0 0.0
    %3327 = vmatpush1.msra.mxu0 0.0
    %3328 = vmatprep.subr.mxu0 0.0
    %3329 = vmatpush1.msra.mxu0 0.0
    %3330 = vmatprep.subr.mxu0 0.0
    %3331 = vmatpush1.msra.mxu0 0.0
    %3332 = vmatprep.subr.mxu0 0.0
    %3333 = vmatpush1.msra.mxu0 0.0
    %3334 = vmatprep.subr.mxu0 0.0
    %3335 = vmatpush1.msra.mxu0 0.0
    %3336 = vmatprep.subr.mxu0 0.0
    %3337 = vmatpush1.msra.mxu0 0.0
    %3338 = vmatprep.subr.mxu0 0.0
    %3339 = vmatpush1.msra.mxu0 0.0
    %3340 = vmatprep.subr.mxu0 0.0
    %3341 = vmatpush1.msra.mxu0 0.0
    %3342 = vmatprep.subr.mxu0 0.0
    %3343 = vmatpush1.msra.mxu0 0.0
    %3344 = vmatprep.subr.mxu0 0.0
    %3345 = vmatpush1.msra.mxu0 0.0
    %3346 = vmatprep.subr.mxu0 0.0
    %3347 = vmatpush1.msra.mxu0 0.0
    %3348 = vmatprep.subr.mxu0 0.0
    %3349 = vmatpush1.msra.mxu0 0.0
    %3350 = vmatprep.subr.mxu0 0.0
    %3351 = vmatpush1.msra.mxu0 0.0
    %3352 = vmatprep.subr.mxu0 0.0
    %3353 = vmatpush1.msra.mxu0 0.0
    %3354 = vmatprep.subr.mxu0 0.0
    %3355 = vmatpush1.msra.mxu0 0.0
    %3356 = vmatprep.subr.mxu0 0.0
    %3357 = vmatpush1.msra.mxu0 0.0
    %3358 = vmatprep.subr.mxu0 0.0
    %3359 = vmatpush1.msra.mxu0 0.0
    %3360 = vmatprep.mubr.f32.mxu0 0.0
    %3361 = vmatmul.mubr.f32.gmra.mrb[0].mxu0 %v3291
    %v3362 = vpop.f32.mrb[0].mxu0
    %v3363 = vadd.f32 0.0, %v3362
    %v3364 = vpop.f32.mrb[0].mxu0
    %3365 = vmatprep.mubr.f32.mxu0 0.0
    %3366 = vmatmul.mubr.f32.gmra.mrb[0].mxu0 %v3294
    %v3367 = vpop.f32.mrb[0].mxu0
    %v3368 = vadd.f32 0.0, %v3367
    %v3369 = vpop.f32.mrb[0].mxu0
    %3370 = vdwg.mxu0
    %3373 = vrot.lane.b32.xlu0 %v3102, 64
    %v3374 = vpop.permute.xlu0 %3373
    %3375 = vrot.lane.b32.xlu0 %v3104, 64
    %v3376 = vpop.permute.xlu0 %3375
    %3379 = vxpose.xlu0.b32.start [1/16] %v3374, 128
    %3380 = vxpose.xlu0.b32.cont [2/16] %v3376, 128
    %3381 = vxpose.xlu0.b32.cont [3/16] 0.0, 128
    %3382 = vxpose.xlu0.b32.cont [4/16] 0.0, 128
    %3383 = vxpose.xlu0.b32.cont [5/16] 0.0, 128
    %3384 = vxpose.xlu0.b32.cont [6/16] 0.0, 128
    %3385 = vxpose.xlu0.b32.cont [7/16] 0.0, 128
    %3386 = vxpose.xlu0.b32.cont [8/16] 0.0, 128
    %3387 = vxpose.xlu0.b32.cont [9/16] 0.0, 128
    %3388 = vxpose.xlu0.b32.cont [10/16] 0.0, 128
    %3389 = vxpose.xlu0.b32.cont [11/16] 0.0, 128
    %3390 = vxpose.xlu0.b32.cont [12/16] 0.0, 128
    %3391 = vxpose.xlu0.b32.cont [13/16] 0.0, 128
    %3392 = vxpose.xlu0.b32.cont [14/16] 0.0, 128
    %3393 = vxpose.xlu0.b32.cont [15/16] 0.0, 128
    %3394 = vxpose.xlu0.b32.end [16/16] 0.0, 128
    %v3395 = vpop.trf.xlu0
    %v3396 = vpop.trf.xlu0
    %v3397 = vpop.trf.xlu0
    %v3398 = vpop.trf.xlu0
    %v3399 = vpop.trf.xlu0
    %v3400 = vpop.trf.xlu0
    %v3401 = vpop.trf.xlu0
    %v3402 = vpop.trf.xlu0
    %v3403 = vpop.trf.xlu0
    %v3404 = vpop.trf.xlu0
    %v3405 = vpop.trf.xlu0
    %v3406 = vpop.trf.xlu0
    %v3407 = vpop.trf.xlu0
    %v3408 = vpop.trf.xlu0
    %v3409 = vpop.trf.xlu0
    %v3410 = vpop.trf.xlu0
    %3413 = vrot.lane.b32.xlu0 %v2957, 64
    %v3414 = vpop.permute.xlu0 %3413
    %3415 = vrot.lane.b32.xlu0 %v2960, 64
    %v3416 = vpop.permute.xlu0 %3415
    %v3420 = vsel %vm572, %v3395, 0
    %v3423 = vsel %vm572, %v3396, 0
    %v3426 = vsel %vm572, %v3397, 0
    %v3429 = vsel %vm572, %v3398, 0
    %v3432 = vsel %vm572, %v3399, 0
    %v3435 = vsel %vm572, %v3400, 0
    %v3438 = vsel %vm572, %v3401, 0
    %v3441 = vsel %vm572, %v3402, 0
    %3443 = vmatprep.subr.mxu0 0.0
    %3444 = vmatpush1.msra.mxu0 %v3414
    %3445 = vmatprep.subr.mxu0 0.0
    %3446 = vmatpush1.msra.mxu0 %v3416
    %3447 = vmatprep.subr.mxu0 0.0
    %3448 = vmatpush1.msra.mxu0 0.0
    %3449 = vmatprep.subr.mxu0 0.0
    %3450 = vmatpush1.msra.mxu0 0.0
    %3451 = vmatprep.subr.mxu0 0.0
    %3452 = vmatpush1.msra.mxu0 0.0
    %3453 = vmatprep.subr.mxu0 0.0
    %3454 = vmatpush1.msra.mxu0 0.0
    %3455 = vmatprep.subr.mxu0 0.0
    %3456 = vmatpush1.msra.mxu0 0.0
    %3457 = vmatprep.subr.mxu0 0.0
    %3458 = vmatpush1.msra.mxu0 0.0
    %3459 = vmatprep.subr.mxu0 0.0
    %3460 = vmatpush1.msra.mxu0 0.0
    %3461 = vmatprep.subr.mxu0 0.0
    %3462 = vmatpush1.msra.mxu0 0.0
    %3463 = vmatprep.subr.mxu0 0.0
    %3464 = vmatpush1.msra.mxu0 0.0
    %3465 = vmatprep.subr.mxu0 0.0
    %3466 = vmatpush1.msra.mxu0 0.0
    %3467 = vmatprep.subr.mxu0 0.0
    %3468 = vmatpush1.msra.mxu0 0.0
    %3469 = vmatprep.subr.mxu0 0.0
    %3470 = vmatpush1.msra.mxu0 0.0
    %3471 = vmatprep.subr.mxu0 0.0
    %3472 = vmatpush1.msra.mxu0 0.0
    %3473 = vmatprep.subr.mxu0 0.0
    %3474 = vmatpush1.msra.mxu0 0.0
    %3475 = vmatprep.subr.mxu0 0.0
    %3476 = vmatpush1.msra.mxu0 0.0
    %3477 = vmatprep.subr.mxu0 0.0
    %3478 = vmatpush1.msra.mxu0 0.0
    %3479 = vmatprep.subr.mxu0 0.0
    %3480 = vmatpush1.msra.mxu0 0.0
    %3481 = vmatprep.subr.mxu0 0.0
    %3482 = vmatpush1.msra.mxu0 0.0
    %3483 = vmatprep.subr.mxu0 0.0
    %3484 = vmatpush1.msra.mxu0 0.0
    %3485 = vmatprep.subr.mxu0 0.0
    %3486 = vmatpush1.msra.mxu0 0.0
    %3487 = vmatprep.subr.mxu0 0.0
    %3488 = vmatpush1.msra.mxu0 0.0
    %3489 = vmatprep.subr.mxu0 0.0
    %3490 = vmatpush1.msra.mxu0 0.0
    %3491 = vmatprep.subr.mxu0 0.0
    %3492 = vmatpush1.msra.mxu0 0.0
    %3493 = vmatprep.subr.mxu0 0.0
    %3494 = vmatpush1.msra.mxu0 0.0
    %3495 = vmatprep.subr.mxu0 0.0
    %3496 = vmatpush1.msra.mxu0 0.0
    %3497 = vmatprep.subr.mxu0 0.0
    %3498 = vmatpush1.msra.mxu0 0.0
    %3499 = vmatprep.subr.mxu0 0.0
    %3500 = vmatpush1.msra.mxu0 0.0
    %3501 = vmatprep.subr.mxu0 0.0
    %3502 = vmatpush1.msra.mxu0 0.0
    %3503 = vmatprep.subr.mxu0 0.0
    %3504 = vmatpush1.msra.mxu0 0.0
    %3505 = vmatprep.subr.mxu0 0.0
    %3506 = vmatpush1.msra.mxu0 0.0
    %3507 = vmatprep.mubr.f32.mxu0 0.0
    %3508 = vmatmul.mubr.f32.gmra.mrb[0].mxu0 %v3420
    %v3509 = vpop.f32.mrb[0].mxu0
    %v3510 = vadd.f32 0.0, %v3509
    %v3511 = vpop.f32.mrb[0].mxu0
    %3512 = vmatprep.mubr.f32.mxu0 0.0
    %3513 = vmatmul.mubr.f32.gmra.mrb[0].mxu0 %v3423
    %v3514 = vpop.f32.mrb[0].mxu0
    %v3515 = vadd.f32 0.0, %v3514
    %v3516 = vpop.f32.mrb[0].mxu0
    %3517 = vmatprep.mubr.f32.mxu0 0.0
    %3518 = vmatmul.mubr.f32.gmra.mrb[0].mxu0 %v3426
    %v3519 = vpop.f32.mrb[0].mxu0
    %v3520 = vadd.f32 0.0, %v3519
    %v3521 = vpop.f32.mrb[0].mxu0
    %3522 = vmatprep.mubr.f32.mxu0 0.0
    %3523 = vmatmul.mubr.f32.gmra.mrb[0].mxu0 %v3429
    %v3524 = vpop.f32.mrb[0].mxu0
    %v3525 = vadd.f32 0.0, %v3524
    %v3526 = vpop.f32.mrb[0].mxu0
    %3527 = vmatprep.mubr.f32.mxu0 0.0
    %3528 = vmatmul.mubr.f32.gmra.mrb[0].mxu0 %v3432
    %v3529 = vpop.f32.mrb[0].mxu0
    %v3530 = vadd.f32 0.0, %v3529
    %v3531 = vpop.f32.mrb[0].mxu0
    %3532 = vmatprep.mubr.f32.mxu0 0.0
    %3533 = vmatmul.mubr.f32.gmra.mrb[0].mxu0 %v3435
    %v3534 = vpop.f32.mrb[0].mxu0
    %v3535 = vadd.f32 0.0, %v3534
    %v3536 = vpop.f32.mrb[0].mxu0
    %3537 = vmatprep.mubr.f32.mxu0 0.0
    %3538 = vmatmul.mubr.f32.gmra.mrb[0].mxu0 %v3438
    %v3539 = vpop.f32.mrb[0].mxu0
    %v3540 = vadd.f32 0.0, %v3539
    %v3541 = vpop.f32.mrb[0].mxu0
    %3542 = vmatprep.mubr.f32.mxu0 0.0
    %3543 = vmatmul.mubr.f32.gmra.mrb[0].mxu0 %v3441
    %v3544 = vpop.f32.mrb[0].mxu0
    %v3545 = vadd.f32 0.0, %v3544
    %v3546 = vpop.f32.mrb[0].mxu0
    %3547 = vdwg.mxu0
    %v3548 = vmul.f32 %v3510, %v48
    %v3549 = vmul.f32 %v3515, %v49
    %v3550 = vmul.f32 %v3520, %v50
    %v3551 = vmul.f32 %v3525, %v51
    %v3552 = vmul.f32 %v3530, %v52
    %v3553 = vmul.f32 %v3535, %v53
    %v3554 = vmul.f32 %v3540, %v54
    %v3555 = vmul.f32 %v3545, %v55
    %v3557 = vsel %vm469, %v3073, 0
    %v3560 = vsel %vm469, %v3075, 0
    %3562 = vmatprep.subr.mxu0 0.0
    %3563 = vmatpush1.msra.mxu0 %v3548
    %3564 = vmatprep.subr.mxu0 0.0
    %3565 = vmatpush1.msra.mxu0 %v3549
    %3566 = vmatprep.subr.mxu0 0.0
    %3567 = vmatpush1.msra.mxu0 %v3550
    %3568 = vmatprep.subr.mxu0 0.0
    %3569 = vmatpush1.msra.mxu0 %v3551
    %3570 = vmatprep.subr.mxu0 0.0
    %3571 = vmatpush1.msra.mxu0 %v3552
    %3572 = vmatprep.subr.mxu0 0.0
    %3573 = vmatpush1.msra.mxu0 %v3553
    %3574 = vmatprep.subr.mxu0 0.0
    %3575 = vmatpush1.msra.mxu0 %v3554
    %3576 = vmatprep.subr.mxu0 0.0
    %3577 = vmatpush1.msra.mxu0 %v3555
    %3578 = vmatprep.subr.mxu0 0.0
    %3579 = vmatpush1.msra.mxu0 0.0
    %3580 = vmatprep.subr.mxu0 0.0
    %3581 = vmatpush1.msra.mxu0 0.0
    %3582 = vmatprep.subr.mxu0 0.0
    %3583 = vmatpush1.msra.mxu0 0.0
    %3584 = vmatprep.subr.mxu0 0.0
    %3585 = vmatpush1.msra.mxu0 0.0
    %3586 = vmatprep.subr.mxu0 0.0
    %3587 = vmatpush1.msra.mxu0 0.0
    %3588 = vmatprep.subr.mxu0 0.0
    %3589 = vmatpush1.msra.mxu0 0.0
    %3590 = vmatprep.subr.mxu0 0.0
    %3591 = vmatpush1.msra.mxu0 0.0
    %3592 = vmatprep.subr.mxu0 0.0
    %3593 = vmatpush1.msra.mxu0 0.0
    %3594 = vmatprep.subr.mxu0 0.0
    %3595 = vmatpush1.msra.mxu0 0.0
    %3596 = vmatprep.subr.mxu0 0.0
    %3597 = vmatpush1.msra.mxu0 0.0
    %3598 = vmatprep.subr.mxu0 0.0
    %3599 = vmatpush1.msra.mxu0 0.0
    %3600 = vmatprep.subr.mxu0 0.0
    %3601 = vmatpush1.msra.mxu0 0.0
    %3602 = vmatprep.subr.mxu0 0.0
    %3603 = vmatpush1.msra.mxu0 0.0
    %3604 = vmatprep.subr.mxu0 0.0
    %3605 = vmatpush1.msra.mxu0 0.0
    %3606 = vmatprep.subr.mxu0 0.0
    %3607 = vmatpush1.msra.mxu0 0.0
    %3608 = vmatprep.subr.mxu0 0.0
    %3609 = vmatpush1.msra.mxu0 0.0
    %3610 = vmatprep.subr.mxu0 0.0
    %3611 = vmatpush1.msra.mxu0 0.0
    %3612 = vmatprep.subr.mxu0 0.0
    %3613 = vmatpush1.msra.mxu0 0.0
    %3614 = vmatprep.subr.mxu0 0.0
    %3615 = vmatpush1.msra.mxu0 0.0
    %3616 = vmatprep.subr.mxu0 0.0
    %3617 = vmatpush1.msra.mxu0 0.0
    %3618 = vmatprep.subr.mxu0 0.0
    %3619 = vmatpush1.msra.mxu0 0.0
    %3620 = vmatprep.subr.mxu0 0.0
    %3621 = vmatpush1.msra.mxu0 0.0
    %3622 = vmatprep.subr.mxu0 0.0
    %3623 = vmatpush1.msra.mxu0 0.0
    %3624 = vmatprep.subr.mxu0 0.0
    %3625 = vmatpush1.msra.mxu0 0.0
    %3626 = vmatprep.mubr.f32.mxu0 0.0
    %3627 = vmatmul.mubr.f32.gmra.mrb[0].mxu0 %v3557
    %v3628 = vpop.f32.mrb[0].mxu0
    %v3629 = vadd.f32 0.0, %v3628
    %v3630 = vpop.f32.mrb[0].mxu0
    %3631 = vmatprep.mubr.f32.mxu0 0.0
    %3632 = vmatmul.mubr.f32.gmra.mrb[0].mxu0 %v3560
    %v3633 = vpop.f32.mrb[0].mxu0
    %v3634 = vadd.f32 0.0, %v3633
    %v3635 = vpop.f32.mrb[0].mxu0
    %3636 = vdwg.mxu0
    %v3637 = vadd.f32 %v3363, 1e-06
    %v3638 = vadd.f32 %v3368, 1e-06
    %v3639 = vadd.f32 %v3629, 1e-06
    %v3640 = vadd.f32 %v3634, 1e-06
    %v3641 = vrcp.pop %v3637
    %v3642 = vrcp.pop %v3638
    %v3643 = vrcp.pop %v3639
    %v3644 = vrcp.pop %v3640
    %3649 = vrot.lane.b32.xlu0 %v3641, 96
    %v3650 = vpop.permute.xlu0 %3649
    %3651 = vrot.lane.b32.xlu0 %v3642, 96
    %v3652 = vpop.permute.xlu0 %3651
    %3653 = vrot.lane.b32.xlu0 %v3643, 96
    %v3654 = vpop.permute.xlu0 %3653
    %3655 = vrot.lane.b32.xlu0 %v3644, 96
    %v3656 = vpop.permute.xlu0 %3655
    %v3661 = vmul.f32 %v3363, %v3650
    %v3662 = vmul.f32 %v3368, %v3652
    %v3663 = vmul.f32 %v3629, %v3654
    %v3664 = vmul.f32 %v3634, %v3656
    %v3665 = vpack.c.bf16 %v3662, %v3661
    %v3666 = vpack.c.bf16 %v3664, %v3663
    %v3667 = vlaneseq
    %v3668 = vshrl.u32 %v3667, 7
    %v3669 = vsub.s32 0, %v3668
    %v3670 = vrot.slane %v2885, %v3669
    %v3675 = vunpack.c.l.b16 %v2825
    %v3676 = vunpack.c.l.b16 %v2826
    %v3677 = vunpack.c.l.b16 %v2827
    %v3678 = vunpack.c.l.b16 %v2828
    %v3679 = vpack.c.b16 %v3676, %v3675
    %v3680 = vpack.c.b16 %v3678, %v3677
    %v3684 = vsel %vm93, %v3665, 0
    %v3687 = vsel %vm93, %v3666, 0
    %3689 = vmatprep.subr.bf16.mxu0 0
    %3690 = vmatpush1.bf16.msra.mxu0 %v3679
    %3691 = vmatprep.subr.bf16.mxu0 0
    %3692 = vmatpush1.bf16.msra.mxu0 %v3680
    %3693 = vmatprep.subr.bf16.mxu0 0
    %3694 = vmatpush1.bf16.msra.mxu0 0
    %3695 = vmatprep.subr.bf16.mxu0 0
    %3696 = vmatpush1.bf16.msra.mxu0 0
    %3697 = vmatprep.subr.bf16.mxu0 0
    %3698 = vmatpush1.bf16.msra.mxu0 0
    %3699 = vmatprep.subr.bf16.mxu0 0
    %3700 = vmatpush1.bf16.msra.mxu0 0
    %3701 = vmatprep.subr.bf16.mxu0 0
    %3702 = vmatpush1.bf16.msra.mxu0 0
    %3703 = vmatprep.subr.bf16.mxu0 0
    %3704 = vmatpush1.bf16.msra.mxu0 0
    %3705 = vmatprep.subr.bf16.mxu0 0
    %3706 = vmatpush1.bf16.msra.mxu0 0
    %3707 = vmatprep.subr.bf16.mxu0 0
    %3708 = vmatpush1.bf16.msra.mxu0 0
    %3709 = vmatprep.subr.bf16.mxu0 0
    %3710 = vmatpush1.bf16.msra.mxu0 0
    %3711 = vmatprep.subr.bf16.mxu0 0
    %3712 = vmatpush1.bf16.msra.mxu0 0
    %3713 = vmatprep.subr.bf16.mxu0 0
    %3714 = vmatpush1.bf16.msra.mxu0 0
    %3715 = vmatprep.subr.bf16.mxu0 0
    %3716 = vmatpush1.bf16.msra.mxu0 0
    %3717 = vmatprep.subr.bf16.mxu0 0
    %3718 = vmatpush1.bf16.msra.mxu0 0
    %3719 = vmatprep.subr.bf16.mxu0 0
    %3720 = vmatpush1.bf16.msra.mxu0 0
    %3721 = vmatprep.mubr.bf16.mxu0 0
    %3722 = vmatmul.mubr.bf16.gmra.mrb[0].mxu0 %v3684
    %v3723 = vpop.f32.mrb[0].mxu0
    %v3724 = vadd.f32 %v3670, %v3723
    %v3725 = vpop.f32.mrb[0].mxu0
    %v3726 = vpop.f32.mrb[0].mxu0
    %v3727 = vadd.f32 %v3670, %v3726
    %v3728 = vpop.f32.mrb[0].mxu0
    %3729 = vmatprep.mubr.bf16.mxu0 0
    %3730 = vmatmul.mubr.bf16.gmra.mrb[0].mxu0 %v3687
    %v3731 = vpop.f32.mrb[0].mxu0
    %v3732 = vadd.f32 %v3670, %v3731
    %v3733 = vpop.f32.mrb[0].mxu0
    %v3734 = vpop.f32.mrb[0].mxu0
    %v3735 = vadd.f32 %v3670, %v3734
    %v3736 = vpop.f32.mrb[0].mxu0
    %3737 = vdwg.mxu0
    %v3738 = vadd.f32 %v2816, %v3724
    %v3739 = vadd.f32 %v2817, %v3727
    %v3740 = vadd.f32 %v2818, %v3732
    %v3741 = vadd.f32 %v2819, %v3735
    %v3742 = vsel %vm93, %v3738, 0.0
    %3743 = vadd.xlane.f32.xlu0 %v3742
    %v3744 = vpop.xlane.xlu0 %3743
    %v3745 = vsel %vm93, %v3739, 0.0
    %3746 = vadd.xlane.f32.xlu0 %v3745
    %v3747 = vpop.xlane.xlu0 %3746
    %v3748 = vsel %vm93, %v3740, 0.0
    %3749 = vadd.xlane.f32.xlu0 %v3748
    %v3750 = vpop.xlane.xlu0 %3749
    %v3751 = vsel %vm93, %v3741, 0.0
    %3752 = vadd.xlane.f32.xlu0 %v3751
    %v3753 = vpop.xlane.xlu0 %3752
    %v3754 = vmul.f32 %v3744, 0.03125
    %v3755 = vmul.f32 %v3747, 0.03125
    %v3756 = vmul.f32 %v3750, 0.03125
    %v3757 = vmul.f32 %v3753, 0.03125
    %v3758 = vmul.f32 %v3738, %v3738
    %v3759 = vmul.f32 %v3739, %v3739
    %v3760 = vmul.f32 %v3740, %v3740
    %v3761 = vmul.f32 %v3741, %v3741
    %v3762 = vsel %vm93, %v3758, 0.0
    %3763 = vadd.xlane.f32.xlu0 %v3762
    %v3764 = vpop.xlane.xlu0 %3763
    %v3765 = vsel %vm93, %v3759, 0.0
    %3766 = vadd.xlane.f32.xlu0 %v3765
    %v3767 = vpop.xlane.xlu0 %3766
    %v3768 = vsel %vm93, %v3760, 0.0
    %3769 = vadd.xlane.f32.xlu0 %v3768
    %v3770 = vpop.xlane.xlu0 %3769
    %v3771 = vsel %vm93, %v3761, 0.0
    %3772 = vadd.xlane.f32.xlu0 %v3771
    %v3773 = vpop.xlane.xlu0 %3772
    %v3774 = vmul.f32 %v3764, 0.03125
    %v3775 = vmul.f32 %v3767, 0.03125
    %v3776 = vmul.f32 %v3770, 0.03125
    %v3777 = vmul.f32 %v3773, 0.03125
    %v3778 = vmul.f32 %v3754, %v3754
    %v3779 = vmul.f32 %v3755, %v3755
    %v3780 = vmul.f32 %v3756, %v3756
    %v3781 = vmul.f32 %v3757, %v3757
    %v3782 = vsub.f32 %v3774, %v3778
    %v3783 = vsub.f32 %v3775, %v3779
    %v3784 = vsub.f32 %v3776, %v3780
    %v3785 = vsub.f32 %v3777, %v3781
    %v3786 = vsub.f32 %v3738, %v3754
    %v3787 = vsub.f32 %v3739, %v3755
    %v3788 = vsub.f32 %v3740, %v3756
    %v3789 = vsub.f32 %v3741, %v3757
    %v3790 = vadd.f32 %v3782, 1e-05
    %v3791 = vadd.f32 %v3783, 1e-05
    %v3792 = vadd.f32 %v3784, 1e-05
    %v3793 = vadd.f32 %v3785, 1e-05
    %v3794 = vrsqrt.pop %v3790
    %v3795 = vrsqrt.pop %v3791
    %v3796 = vrsqrt.pop %v3792
    %v3797 = vrsqrt.pop %v3793
    %v3798 = vmul.f32 %v3786, %v3794
    %v3799 = vmul.f32 %v3787, %v3795
    %v3800 = vmul.f32 %v3788, %v3796
    %v3801 = vmul.f32 %v3789, %v3797
    %v3802 = vlaneseq
    %v3803 = vshrl.u32 %v3802, 7
    %v3804 = vsub.s32 0, %v3803
    %v3805 = vrot.slane %v2882, %v3804
    %v3806 = vmul.f32 %v3798, %v3805
    %v3807 = vmul.f32 %v3799, %v3805
    %v3808 = vmul.f32 %v3800, %v3805
    %v3809 = vmul.f32 %v3801, %v3805
    %v3810 = vlaneseq
    %v3811 = vshrl.u32 %v3810, 7
    %v3812 = vsub.s32 0, %v3811
    %v3813 = vrot.slane %v2883, %v3812
    %v3814 = vadd.f32 %v3806, %v3813
    %v3815 = vadd.f32 %v3807, %v3813
    %v3816 = vadd.f32 %v3808, %v3813
    %v3817 = vadd.f32 %v3809, %v3813
    %v3818 = vpack.c.bf16 %v3815, %v3814
    %v3819 = vpack.c.bf16 %v3817, %v3816
    %v3820 = vlaneseq
    %v3821 = vshrl.u32 %v3820, 7
    %v3822 = vsub.s32 0, %v3821
    %v3823 = vrot.slane %v2888, %v3822
    %v3828 = vunpack.c.l.b16 %v2829
    %v3829 = vunpack.c.l.b16 %v2830
    %v3830 = vunpack.c.l.b16 %v2831
    %v3831 = vunpack.c.l.b16 %v2832
    %v3832 = vpack.c.b16 %v3829, %v3828
    %v3833 = vpack.c.b16 %v3831, %v3830
    %v3837 = vsel %vm93, %v3818, 0
    %v3840 = vsel %vm93, %v3819, 0
    %3842 = vmatprep.subr.bf16.mxu0 0
    %3843 = vmatpush1.bf16.msra.mxu0 %v3832
    %3844 = vmatprep.subr.bf16.mxu0 0
    %3845 = vmatpush1.bf16.msra.mxu0 %v3833
    %3846 = vmatprep.subr.bf16.mxu0 0
    %3847 = vmatpush1.bf16.msra.mxu0 0
    %3848 = vmatprep.subr.bf16.mxu0 0
    %3849 = vmatpush1.bf16.msra.mxu0 0
    %3850 = vmatprep.subr.bf16.mxu0 0
    %3851 = vmatpush1.bf16.msra.mxu0 0
    %3852 = vmatprep.subr.bf16.mxu0 0
    %3853 = vmatpush1.bf16.msra.mxu0 0
    %3854 = vmatprep.subr.bf16.mxu0 0
    %3855 = vmatpush1.bf16.msra.mxu0 0
    %3856 = vmatprep.subr.bf16.mxu0 0
    %3857 = vmatpush1.bf16.msra.mxu0 0
    %3858 = vmatprep.subr.bf16.mxu0 0
    %3859 = vmatpush1.bf16.msra.mxu0 0
    %3860 = vmatprep.subr.bf16.mxu0 0
    %3861 = vmatpush1.bf16.msra.mxu0 0
    %3862 = vmatprep.subr.bf16.mxu0 0
    %3863 = vmatpush1.bf16.msra.mxu0 0
    %3864 = vmatprep.subr.bf16.mxu0 0
    %3865 = vmatpush1.bf16.msra.mxu0 0
    %3866 = vmatprep.subr.bf16.mxu0 0
    %3867 = vmatpush1.bf16.msra.mxu0 0
    %3868 = vmatprep.subr.bf16.mxu0 0
    %3869 = vmatpush1.bf16.msra.mxu0 0
    %3870 = vmatprep.subr.bf16.mxu0 0
    %3871 = vmatpush1.bf16.msra.mxu0 0
    %3872 = vmatprep.subr.bf16.mxu0 0
    %3873 = vmatpush1.bf16.msra.mxu0 0
    %3874 = vmatprep.mubr.bf16.mxu0 0
    %3875 = vmatmul.mubr.bf16.gmra.mrb[0].mxu0 %v3837
    %v3876 = vpop.f32.mrb[0].mxu0
    %v3877 = vadd.f32 %v3823, %v3876
    %v3878 = vpop.f32.mrb[0].mxu0
    %v3879 = vpop.f32.mrb[0].mxu0
    %v3880 = vadd.f32 %v3823, %v3879
    %v3881 = vpop.f32.mrb[0].mxu0
    %3882 = vmatprep.mubr.bf16.mxu0 0
    %3883 = vmatmul.mubr.bf16.gmra.mrb[0].mxu0 %v3840
    %v3884 = vpop.f32.mrb[0].mxu0
    %v3885 = vadd.f32 %v3823, %v3884
    %v3886 = vpop.f32.mrb[0].mxu0
    %v3887 = vpop.f32.mrb[0].mxu0
    %v3888 = vadd.f32 %v3823, %v3887
    %v3889 = vpop.f32.mrb[0].mxu0
    %3890 = vdwg.mxu0
    %v3891 = vmul.f32 %v3877, %v3877
    %v3892 = vmul.f32 %v3880, %v3880
    %v3893 = vmul.f32 %v3885, %v3885
    %v3894 = vmul.f32 %v3888, %v3888
    %v3895 = vmul.f32 %v3877, %v3891
    %v3896 = vmul.f32 %v3880, %v3892
    %v3897 = vmul.f32 %v3885, %v3893
    %v3898 = vmul.f32 %v3888, %v3894
    %v3899 = vmul.f32 %v3895, 0.044715
    %v3900 = vmul.f32 %v3896, 0.044715
    %v3901 = vmul.f32 %v3897, 0.044715
    %v3902 = vmul.f32 %v3898, 0.044715
    %v3903 = vadd.f32 %v3877, %v3899
    %v3904 = vadd.f32 %v3880, %v3900
    %v3905 = vadd.f32 %v3885, %v3901
    %v3906 = vadd.f32 %v3888, %v3902
    %v3907 = vmul.f32 %v3903, 0.7978846
    %v3908 = vmul.f32 %v3904, 0.7978846
    %v3909 = vmul.f32 %v3905, 0.7978846
    %v3910 = vmul.f32 %v3906, 0.7978846
    %v3911 = vtanh.pop %v3907
    %v3912 = vtanh.pop %v3908
    %v3913 = vtanh.pop %v3909
    %v3914 = vtanh.pop %v3910
    %v3915 = vadd.f32 %v3911, 1.0
    %v3916 = vadd.f32 %v3912, 1.0
    %v3917 = vadd.f32 %v3913, 1.0
    %v3918 = vadd.f32 %v3914, 1.0
    %v3919 = vmul.f32 %v3915, 0.5
    %v3920 = vmul.f32 %v3916, 0.5
    %v3921 = vmul.f32 %v3917, 0.5
    %v3922 = vmul.f32 %v3918, 0.5
    %v3923 = vmul.f32 %v3877, %v3919
    %v3924 = vmul.f32 %v3880, %v3920
    %v3925 = vmul.f32 %v3885, %v3921
    %v3926 = vmul.f32 %v3888, %v3922
    %v3927 = vpack.c.bf16 %v3924, %v3923
    %v3928 = vpack.c.bf16 %v3926, %v3925
    %v3929 = vlaneseq
    %v3930 = vshrl.u32 %v3929, 7
    %v3931 = vsub.s32 0, %v3930
    %v3932 = vrot.slane %v2889, %v3931
    %v3949 = vunpack.c.l.b16 %v2833
    %v3950 = vunpack.c.l.b16 %v2834
    %v3951 = vunpack.c.l.b16 %v2835
    %v3952 = vunpack.c.l.b16 %v2836
    %v3953 = vunpack.c.l.b16 %v2837
    %v3954 = vunpack.c.l.b16 %v2838
    %v3955 = vunpack.c.l.b16 %v2839
    %v3956 = vunpack.c.l.b16 %v2840
    %v3957 = vunpack.c.l.b16 %v2841
    %v3958 = vunpack.c.l.b16 %v2842
    %v3959 = vunpack.c.l.b16 %v2843
    %v3960 = vunpack.c.l.b16 %v2844
    %v3961 = vunpack.c.l.b16 %v2845
    %v3962 = vunpack.c.l.b16 %v2846
    %v3963 = vunpack.c.l.b16 %v2847
    %v3964 = vunpack.c.l.b16 %v2848
    %v3965 = vpack.c.b16 %v3950, %v3949
    %v3966 = vpack.c.b16 %v3952, %v3951
    %v3967 = vpack.c.b16 %v3954, %v3953
    %v3968 = vpack.c.b16 %v3956, %v3955
    %v3969 = vpack.c.b16 %v3958, %v3957
    %v3970 = vpack.c.b16 %v3960, %v3959
    %v3971 = vpack.c.b16 %v3962, %v3961
    %v3972 = vpack.c.b16 %v3964, %v3963
    %3981 = vmatprep.subr.bf16.mxu0 0
    %3982 = vmatpush1.bf16.msra.mxu0 %v3965
    %3983 = vmatprep.subr.bf16.mxu0 0
    %3984 = vmatpush1.bf16.msra.mxu0 %v3966
    %3985 = vmatprep.subr.bf16.mxu0 0
    %3986 = vmatpush1.bf16.msra.mxu0 %v3967
    %3987 = vmatprep.subr.bf16.mxu0 0
    %3988 = vmatpush1.bf16.msra.mxu0 %v3968
    %3989 = vmatprep.subr.bf16.mxu0 0
    %3990 = vmatpush1.bf16.msra.mxu0 %v3969
    %3991 = vmatprep.subr.bf16.mxu0 0
    %3992 = vmatpush1.bf16.msra.mxu0 %v3970
    %3993 = vmatprep.subr.bf16.mxu0 0
    %3994 = vmatpush1.bf16.msra.mxu0 %v3971
    %3995 = vmatprep.subr.bf16.mxu0 0
    %3996 = vmatpush1.bf16.msra.mxu0 %v3972
    %3997 = vmatprep.subr.bf16.mxu0 0
    %3998 = vmatpush1.bf16.msra.mxu0 0
    %3999 = vmatprep.subr.bf16.mxu0 0
    %4000 = vmatpush1.bf16.msra.mxu0 0
    %4001 = vmatprep.subr.bf16.mxu0 0
    %4002 = vmatpush1.bf16.msra.mxu0 0
    %4003 = vmatprep.subr.bf16.mxu0 0
    %4004 = vmatpush1.bf16.msra.mxu0 0
    %4005 = vmatprep.subr.bf16.mxu0 0
    %4006 = vmatpush1.bf16.msra.mxu0 0
    %4007 = vmatprep.subr.bf16.mxu0 0
    %4008 = vmatpush1.bf16.msra.mxu0 0
    %4009 = vmatprep.subr.bf16.mxu0 0
    %4010 = vmatpush1.bf16.msra.mxu0 0
    %4011 = vmatprep.subr.bf16.mxu0 0
    %4012 = vmatpush1.bf16.msra.mxu0 0
    %4013 = vmatprep.mubr.bf16.mxu0 0
    %4014 = vmatmul.mubr.bf16.gmra.mrb[0].mxu0 %v3927
    %v4015 = vpop.f32.mrb[0].mxu0
    %v4016 = vadd.f32 %v3932, %v4015
    %v4017 = vpop.f32.mrb[0].mxu0
    %v4018 = vpop.f32.mrb[0].mxu0
    %v4019 = vadd.f32 %v3932, %v4018
    %v4020 = vpop.f32.mrb[0].mxu0
    %4021 = vmatprep.mubr.bf16.mxu0 0
    %4022 = vmatmul.mubr.bf16.gmra.mrb[0].mxu0 %v3928
    %v4023 = vpop.f32.mrb[0].mxu0
    %v4024 = vadd.f32 %v3932, %v4023
    %v4025 = vpop.f32.mrb[0].mxu0
    %v4026 = vpop.f32.mrb[0].mxu0
    %v4027 = vadd.f32 %v3932, %v4026
    %v4028 = vpop.f32.mrb[0].mxu0
    %4029 = vdwg.mxu0
    %v4030 = vadd.f32 %v3814, %v4016
    %v4031 = vadd.f32 %v3815, %v4019
    %v4032 = vadd.f32 %v3816, %v4024
    %v4033 = vadd.f32 %v3817, %v4027
    %v4034 = vsel %vm93, %v4030, 0.0
    %4035 = vadd.xlane.f32.xlu0 %v4034
    %v4036 = vpop.xlane.xlu0 %4035
    %v4037 = vsel %vm93, %v4031, 0.0
    %4038 = vadd.xlane.f32.xlu0 %v4037
    %v4039 = vpop.xlane.xlu0 %4038
    %v4040 = vsel %vm93, %v4032, 0.0
    %4041 = vadd.xlane.f32.xlu0 %v4040
    %v4042 = vpop.xlane.xlu0 %4041
    %v4043 = vsel %vm93, %v4033, 0.0
    %4044 = vadd.xlane.f32.xlu0 %v4043
    %v4045 = vpop.xlane.xlu0 %4044
    %v4046 = vmul.f32 %v4036, 0.03125
    %v4047 = vmul.f32 %v4039, 0.03125
    %v4048 = vmul.f32 %v4042, 0.03125
    %v4049 = vmul.f32 %v4045, 0.03125
    %v4050 = vmul.f32 %v4030, %v4030
    %v4051 = vmul.f32 %v4031, %v4031
    %v4052 = vmul.f32 %v4032, %v4032
    %v4053 = vmul.f32 %v4033, %v4033
    %v4054 = vsel %vm93, %v4050, 0.0
    %4055 = vadd.xlane.f32.xlu0 %v4054
    %v4056 = vpop.xlane.xlu0 %4055
    %v4057 = vsel %vm93, %v4051, 0.0
    %4058 = vadd.xlane.f32.xlu0 %v4057
    %v4059 = vpop.xlane.xlu0 %4058
    %v4060 = vsel %vm93, %v4052, 0.0
    %4061 = vadd.xlane.f32.xlu0 %v4060
    %v4062 = vpop.xlane.xlu0 %4061
    %v4063 = vsel %vm93, %v4053, 0.0
    %4064 = vadd.xlane.f32.xlu0 %v4063
    %v4065 = vpop.xlane.xlu0 %4064
    %v4066 = vmul.f32 %v4056, 0.03125
    %v4067 = vmul.f32 %v4059, 0.03125
    %v4068 = vmul.f32 %v4062, 0.03125
    %v4069 = vmul.f32 %v4065, 0.03125
    %v4070 = vmul.f32 %v4046, %v4046
    %v4071 = vmul.f32 %v4047, %v4047
    %v4072 = vmul.f32 %v4048, %v4048
    %v4073 = vmul.f32 %v4049, %v4049
    %v4074 = vsub.f32 %v4066, %v4070
    %v4075 = vsub.f32 %v4067, %v4071
    %v4076 = vsub.f32 %v4068, %v4072
    %v4077 = vsub.f32 %v4069, %v4073
    %v4078 = vsub.f32 %v4030, %v4046
    %v4079 = vsub.f32 %v4031, %v4047
    %v4080 = vsub.f32 %v4032, %v4048
    %v4081 = vsub.f32 %v4033, %v4049
    %v4082 = vadd.f32 %v4074, 1e-05
    %v4083 = vadd.f32 %v4075, 1e-05
    %v4084 = vadd.f32 %v4076, 1e-05
    %v4085 = vadd.f32 %v4077, 1e-05
    %v4086 = vrsqrt.pop %v4082
    %v4087 = vrsqrt.pop %v4083
    %v4088 = vrsqrt.pop %v4084
    %v4089 = vrsqrt.pop %v4085
    %v4090 = vmul.f32 %v4078, %v4086
    %v4091 = vmul.f32 %v4079, %v4087
    %v4092 = vmul.f32 %v4080, %v4088
    %v4093 = vmul.f32 %v4081, %v4089
    %v4094 = vlaneseq
    %v4095 = vshrl.u32 %v4094, 7
    %v4096 = vsub.s32 0, %v4095
    %v4097 = vrot.slane %v2886, %v4096
    %v4098 = vmul.f32 %v4090, %v4097
    %v4099 = vmul.f32 %v4091, %v4097
    %v4100 = vmul.f32 %v4092, %v4097
    %v4101 = vmul.f32 %v4093, %v4097
    %v4102 = vlaneseq
    %v4103 = vshrl.u32 %v4102, 7
    %v4104 = vsub.s32 0, %v4103
    %v4105 = vrot.slane %v2887, %v4104
    %v4106 = vadd.f32 %v4098, %v4105
    %v4107 = vadd.f32 %v4099, %v4105
    %v4108 = vadd.f32 %v4100, %v4105
    %v4109 = vadd.f32 %v4101, %v4105
    %v4110 = vld [vmem:[%s6] sm:$0x3]
    %v4112 = vsel %vm93, %v4110, 0
    %4114 = vmatprep.subr.mxu0 0.0
    %4115 = vmatpush1.msra.mxu0 %v4106
    %4116 = vmatprep.subr.mxu0 0.0
    %4117 = vmatpush1.msra.mxu0 %v4107
    %4118 = vmatprep.subr.mxu0 0.0
    %4119 = vmatpush1.msra.mxu0 %v4108
    %4120 = vmatprep.subr.mxu0 0.0
    %4121 = vmatpush1.msra.mxu0 %v4109
    %4122 = vmatprep.subr.mxu0 0.0
    %4123 = vmatpush1.msra.mxu0 0.0
    %4124 = vmatprep.subr.mxu0 0.0
    %4125 = vmatpush1.msra.mxu0 0.0
    %4126 = vmatprep.subr.mxu0 0.0
    %4127 = vmatpush1.msra.mxu0 0.0
    %4128 = vmatprep.subr.mxu0 0.0
    %4129 = vmatpush1.msra.mxu0 0.0
    %4130 = vmatprep.subr.mxu0 0.0
    %4131 = vmatpush1.msra.mxu0 0.0
    %4132 = vmatprep.subr.mxu0 0.0
    %4133 = vmatpush1.msra.mxu0 0.0
    %4134 = vmatprep.subr.mxu0 0.0
    %4135 = vmatpush1.msra.mxu0 0.0
    %4136 = vmatprep.subr.mxu0 0.0
    %4137 = vmatpush1.msra.mxu0 0.0
    %4138 = vmatprep.subr.mxu0 0.0
    %4139 = vmatpush1.msra.mxu0 0.0
    %4140 = vmatprep.subr.mxu0 0.0
    %4141 = vmatpush1.msra.mxu0 0.0
    %4142 = vmatprep.subr.mxu0 0.0
    %4143 = vmatpush1.msra.mxu0 0.0
    %4144 = vmatprep.subr.mxu0 0.0
    %4145 = vmatpush1.msra.mxu0 0.0
    %4146 = vmatprep.subr.mxu0 0.0
    %4147 = vmatpush1.msra.mxu0 0.0
    %4148 = vmatprep.subr.mxu0 0.0
    %4149 = vmatpush1.msra.mxu0 0.0
    %4150 = vmatprep.subr.mxu0 0.0
    %4151 = vmatpush1.msra.mxu0 0.0
    %4152 = vmatprep.subr.mxu0 0.0
    %4153 = vmatpush1.msra.mxu0 0.0
    %4154 = vmatprep.subr.mxu0 0.0
    %4155 = vmatpush1.msra.mxu0 0.0
    %4156 = vmatprep.subr.mxu0 0.0
    %4157 = vmatpush1.msra.mxu0 0.0
    %4158 = vmatprep.subr.mxu0 0.0
    %4159 = vmatpush1.msra.mxu0 0.0
    %4160 = vmatprep.subr.mxu0 0.0
    %4161 = vmatpush1.msra.mxu0 0.0
    %4162 = vmatprep.subr.mxu0 0.0
    %4163 = vmatpush1.msra.mxu0 0.0
    %4164 = vmatprep.subr.mxu0 0.0
    %4165 = vmatpush1.msra.mxu0 0.0
    %4166 = vmatprep.subr.mxu0 0.0
    %4167 = vmatpush1.msra.mxu0 0.0
    %4168 = vmatprep.subr.mxu0 0.0
    %4169 = vmatpush1.msra.mxu0 0.0
    %4170 = vmatprep.subr.mxu0 0.0
    %4171 = vmatpush1.msra.mxu0 0.0
    %4172 = vmatprep.subr.mxu0 0.0
    %4173 = vmatpush1.msra.mxu0 0.0
    %4174 = vmatprep.subr.mxu0 0.0
    %4175 = vmatpush1.msra.mxu0 0.0
    %4176 = vmatprep.subr.mxu0 0.0
    %4177 = vmatpush1.msra.mxu0 0.0
    %4178 = vmatprep.mubr.f32.mxu0 0.0
    %4179 = vmatmul.mubr.f32.gmra.mrb[0].mxu0 %v4112
    %v4180 = vpop.f32.mrb[0].mxu0
    %v4181 = vadd.f32 0.0, %v4180
    %v4182 = vpop.f32.mrb[0].mxu0
    %4183 = vdwg.mxu0
    %vm4184 = vcmask 254976
    %4185 = vst.msk [vmem:[#allocation5] sm:$0x3] %vm4184, %v4181
    // Predicated region
    $region42: #{_lambda_.1} parent=1 // pred_check
      _
    $region43: #{_lambda_.1} parent=1 // pred_check_branch
      %4187 = sbr.rel (0) target = $region45
    $region44: #{_lambda_.1} parent=1 // pred_region
      %s4189 = ssub.s32 32, 32
      %4190 = vsyncadd [#allocation4], %s4189
      %s4192 = sshll.u32 [#allocation5], 4
      %s4193 = int_to_ptr.vmem [resolvable:$true] %s4192
      %4195 = dma.vmem_to_hbm [thread:$0]  %s4193, 32, %s9, [#allocation4]
    $region45: #{_lambda_.1} parent=1 // pred_fallthru
      _
    // Predicated region
    $region46: #{_lambda_.1} parent=1 // pred_check
      _
    $region47: #{_lambda_.1} parent=1 // pred_check_branch
      %4197 = sbr.rel (0) target = $region49
    $region48: #{_lambda_.1} parent=1 // pred_region
      %4198 = dma.done [#allocation4], 32
    $region49: #{_lambda_.1} parent=1 // pred_fallthru
      _
    %4199 = vsyncpa [#allocation3], 1
    %4200 = vsyncpa [#allocation4], 1

</llo_original>
